<compile_context>
chip_gen: v6e
topology: v6e:2x2x1
jax: 0.10.0
libtpu: 0.0.40
codegen_flags: <defaults>
</compile_context>

<pallas_src>
import functools

import jax
import jax.numpy as jnp
from jax.experimental import pallas as pl
from jax.experimental.pallas import tpu as pltpu


# -----------------------------------------------------------------------------
# Pallas kernel: one grid step == TB batch elements, everything lives in VMEM.
# -----------------------------------------------------------------------------
def _tracenet_kernel(layer_i, has_pm, dims, *args):
    TB, S, H, F = dims
    M = TB * S
    f32 = jnp.float32

    if layer_i == 0:
        (x_ref, aux_ref, wca_ref, bca_ref,
         w1_ref, w2_ref, abias_ref, wv_ref, gate_ref,
         h_ref, l_ref, a_ref) = args
    else:
        (x_ref, aux_ref, ahat_ref, wa_ref, ba_ref,
         w1_ref, w2_ref, abias_ref, wv_ref, gate_ref,
         h_ref, l_ref, a_ref) = args

    aux = aux_ref[...]                               # (TB, S, naux) f32
    mask_col = aux[:, :, 0:1]                        # (TB, S, 1) additive mask
    iw_col = aux[:, :, 1:2]                          # (TB, S, 1) item weights

    w1 = w1_ref[...]                                 # (F, F)
    w2 = w2_ref[...]                                 # (F, F)
    abias = abias_ref[...]                           # (1, F)
    wv = wv_ref[...]                                 # (F, 1)
    gate = gate_ref[0]                               # scalar sigmoid gate (SMEM)

    x2 = x_ref[...]                                  # (M, H); fed to the MXU in its
                                                     # HBM dtype (bf16 OK on v6e/v7x)

    # ---- projections + ReLU; dropout == identity (eval mode) ----------------
    if layer_i == 0:
        # C and A share the LHS -> one fused (M,H)@(H,2F) weight push.
        ca = jnp.dot(x2, wca_ref[...], preferred_element_type=f32) + bca_ref[...]
        ca = jnp.maximum(ca, 0.0)                    # (M, 2F)
        C2 = ca[:, :F]
        A2 = ca[:, F:]
    else:
        A2 = jnp.maximum(
            jnp.dot(x2, wa_ref[...], preferred_element_type=f32) + ba_ref[...],
            0.0)                                     # (M, F)
        C2 = jnp.maximum(ahat_ref[...].astype(f32), 0.0)

    if has_pm:
        # independent bernoulli masks for C and for A (as in the torch module)
        C2 = C2 * aux[:, :, 2:3].reshape(M, 1)
        A2 = A2 * aux[:, :, 3:4].reshape(M, 1)

    C3 = C2.reshape(TB, S, F)                        # free leading-dim split

    # ---- q = C^T L : VPU broadcast-multiply + reduce over S ------------------
    # (replaces the per-batch (1,S)@(S,F) MXU pushes; MXU stays on projections)
    q = jnp.sum(iw_col * C3, axis=1)                 # (TB, F)

    # ---- shared w2 projection for both attention blocks: one stacked matmul --
    ca_stack = jnp.concatenate([C2, A2], axis=0)     # (2M, F), sublane concat
    ca_w2 = jnp.dot(ca_stack, w2, preferred_element_type=f32)
    C_w2 = ca_w2[:M].reshape(TB, S, F)
    A_w2 = ca_w2[M:].reshape(TB, S, F)

    # ---- additive attention #1: alpha = v^T tanh(w1 q + w2 C + bias) ---------
    q_w1 = jnp.dot(q, w1, preferred_element_type=f32).reshape(TB, 1, F)
    e1 = jnp.tanh(q_w1 + C_w2 + abias)               # (TB, S, F)
    alpha = jnp.dot(e1.reshape(M, F), wv,
                    preferred_element_type=f32).reshape(TB, S, 1)
    alpha = alpha + mask_col

    # softmax over the sequence axis (approx EUP reciprocal for the denominator)
    alpha = jnp.exp(alpha - jnp.max(alpha, axis=1, keepdims=True))
    alpha = alpha * pl.reciprocal(jnp.sum(alpha, axis=1, keepdims=True),
                                  approx=True)

    # ---- h = C^T alpha : VPU broadcast-multiply + reduce over S --------------
    h = jnp.sum(alpha * C3, axis=1)                  # (TB, F)
    h_ref[...] = h.reshape(TB, 1, F).astype(h_ref.dtype)   # lane-dense store

    # ---- additive attention #2 over A, then layer gate + mask ----------------
    h_w1 = jnp.dot(h, w1, preferred_element_type=f32).reshape(TB, 1, F)
    e2 = jnp.tanh(h_w1 + A_w2 + abias)               # (TB, S, F)
    z_col = jnp.dot(e2.reshape(M, F), wv,
                    preferred_element_type=f32).reshape(TB, S, 1)
    z_col = z_col * gate + mask_col                  # natural column layout

    # single column->row relayout: reused for the pairwise compare AND the
    # lane-dense L store
    z_row = z_col.reshape(TB, 1, S)                  # (TB, 1, S)

    # ---- sparsemax over S (sort-free; XLU lane reductions, no MXU pushes) ----
    ge = (z_row >= z_col).astype(f32)                # (TB,S,S); ge[b,j,i]=[z_i>=z_j]
    k_col = jnp.sum(ge, axis=-1, keepdims=True)      # |{i: z_i >= z_j}|   (TB,S,1)
    s_col = jnp.sum(ge * z_row, axis=-1, keepdims=True)   # sum_{z_i>=z_j} z_i
    supp = (1.0 + k_col * z_col > s_col).astype(f32)       # (TB, S, 1)
    n_supp = jnp.sum(supp, axis=1, keepdims=True)           # (TB, 1, 1)
    z_supp = jnp.sum(supp * z_col, axis=1, keepdims=True)   # (TB, 1, 1)
    tau = (z_supp - 1.0) / n_supp                    # exact divide (rows sum to 1)
    l_ref[...] = jnp.maximum(z_row - tau, 0.0).astype(l_ref.dtype)   # (TB,1,S)

    a_ref[...] = A2.astype(a_ref.dtype)              # (M, F), f32


# -----------------------------------------------------------------------------
# Generation-aware tiling
# -----------------------------------------------------------------------------
def _chip_config():
    """(num_tensorcores, vmem_tile_budget_bytes, vmem_limit_bytes)."""
    kind = ""
    try:
        kind = jax.devices()[0].device_kind.lower()
    except Exception:
        pass
    if "v7" in kind:
        # v7x: 2 TensorCores/chip but only 64 MiB VMEM per TC -> keep >=2 grid
        # steps so both cores are fed, leave DMA / double-buffer headroom.
        return 2, 24 * 1024 * 1024, 48 * 1024 * 1024
    if any(t in kind for t in ("v5e", "v5 lite", "v6e", "v6 lite", "trillium")):
        # single TensorCore, 128 MiB physical VMEM: grid=1 with the biggest tile
        # that fits is strictly better (no parallelism to win, only per-step
        # overhead to pay).
        return 1, 48 * 1024 * 1024, 64 * 1024 * 1024
    # unknown / megacore (v4, v5p): conservative budget, assume 2 cores.
    return 2, 16 * 1024 * 1024, 32 * 1024 * 1024


def _pick_batch_tile(B, S, H, F, layer_i, num_cores, vmem_budget_bytes):
    # rough per-batch-element f32 footprint: double-buffered IO blocks plus the
    # kernel intermediates (fused CA, stacked w2, e1/e2, the (S,S) compare).
    per_b = 4 * (2 * S * H
                 + (12 + (2 if layer_i else 0)) * S * F
                 + 2 * S * S + 24 * S + 8 * F)
    cap = max(1, vmem_budget_bytes // max(per_b, 1))
    divisors = [d for d in range(1, B + 1) if B % d == 0]
    if num_cores > 1:
        # keep >= num_cores grid steps so every TensorCore gets work
        preferred = [d for d in divisors if d <= cap and B // d >= num_cores]
        if preferred:
            return max(preferred)
    fitting = [d for d in divisors if d <= cap]
    return max(fitting) if fitting else 1


# -----------------------------------------------------------------------------
# Wrapper (parameter plumbing, mask construction, pallas_call)
# -----------------------------------------------------------------------------
def tracenet_layer(layer_i, attention_mask, xlnet_output, item_weights,
                   proactive_masking, params, A_hat=None,
                   seq_select_prob=0.5, rng=None, batch_tile=None):
    if layer_i not in (0, 1, 2):
        raise ValueError("layer_i must be 0, 1 or 2")

    B, S, H = xlnet_output.shape
    F = params["C_w"].shape[0]
    f32 = jnp.float32
    in_dtype = xlnet_output.dtype            # bf16 activations feed the MXU directly

    # ----- attentd_to_real_token: (B,S) 0/1 mask -> additive (B,S,1) column -----
    if attention_mask is None:
        attention_mask = jnp.ones((B, S), dtype=f32)
    mask_col = ((1.0 - attention_mask.astype(f32)) * -10000.0)[:, :, None]

    # ----- stacked per-token aux operand: [mask | item_weights | pm_C | pm_A] ---
    aux_cols = [mask_col, item_weights.astype(f32)]
    if proactive_masking:
        if rng is None:
            raise ValueError("rng is required when proactive_masking=True")
        keys = jax.random.split(rng, 4)
        for kp, kb in ((keys[0], keys[1]), (keys[2], keys[3])):   # C draw, A draw
            prob = jax.random.bernoulli(kp, p=seq_select_prob,
                                        shape=(B, 1, 1)).astype(f32)
            drop = jax.random.bernoulli(kb, p=item_weights.astype(f32) * prob)
            aux_cols.append(1.0 - drop.astype(f32))
    aux = jnp.concatenate(aux_cols, axis=-1)                     # (B, S, 2 or 4)
    naux = aux.shape[-1]

    # ----- layer-dependent scalar gate sigmoid(w3^2 - ...) -----
    w1p, w2p, w3p = params["w_1"], params["w_2"], params["w_3"]
    if layer_i == 0:
        xg = w3p ** 2 - w2p ** 2 - w1p ** 2
    elif layer_i == 1:
        xg = w3p ** 2 - w2p ** 2
    else:
        xg = w3p ** 2
    gate = jax.nn.sigmoid(xg).astype(f32).reshape((1,))          # (1,) SMEM scalar

    # ----- attention params stay f32; projection weights follow the activations -
    aw1 = params["att_w1"].T.astype(f32)              # (F, F)
    aw2 = params["att_w2"].T.astype(f32)              # (F, F)
    abias = params["att_bias"].reshape(1, F).astype(f32)
    wv = params["att_v"].reshape(F, 1).astype(f32)    # column vector

    num_cores, vmem_budget, vmem_limit = _chip_config()
    TB = batch_tile if batch_tile is not None else _pick_batch_tile(
        B, S, H, F, layer_i, num_cores, vmem_budget)
    if B % TB != 0:
        raise ValueError("batch_tile must divide the batch size")
    grid = (B // TB,)
    M = TB * S

    # Flat (B*S, .) slabs: the grid only tiles the batch, so this row-major
    # reshape is free and the kernel needs no stream reshapes at all.
    x2 = xlnet_output.reshape(B * S, H)

    row2 = lambda shape: pl.BlockSpec(shape, lambda b: (b, 0))       # batch-tiled 2D
    row3 = lambda shape: pl.BlockSpec(shape, lambda b: (b, 0, 0))    # batch-tiled 3D
    cst2 = lambda shape: pl.BlockSpec(shape, lambda b: (0, 0))       # grid-constant
    smem_spec = pl.BlockSpec(memory_space=pltpu.MemorySpace.SMEM)
    # NOTE: constant-index blocks are only DMA'd once by the pipeline; with F=32
    # the weights are a few KiB, so pl.Buffered(1) on them buys nothing here.

    if layer_i == 0:
        # fused C|A projection: one (H, 2F) weight, one MXU push per grid step
        wca = jnp.concatenate([params["C_w"].T, params["A_w"].T],
                              axis=1).astype(in_dtype)               # (H, 2F)
        bca = jnp.concatenate([params["C_b"], params["A_b"]]
                              ).reshape(1, 2 * F).astype(f32)
        operands = (x2, aux, wca, bca, aw1, aw2, abias, wv, gate)
        in_specs = [row2((M, H)), row3((TB, S, naux)),
                    cst2((H, 2 * F)), cst2((1, 2 * F)),
                    cst2((F, F)), cst2((F, F)), cst2((1, F)), cst2((F, 1)),
                    smem_spec]
    else:
        if A_hat is None:
            raise ValueError("A_hat is required when layer_i != 0")
        wa = params["A_w"].T.astype(in_dtype)                        # (H, F)
        ba = params["A_b"].reshape(1, F).astype(f32)
        ahat2 = A_hat.reshape(B * S, F)
        operands = (x2, aux, ahat2, wa, ba, aw1, aw2, abias, wv, gate)
        in_specs = [row2((M, H)), row3((TB, S, naux)), row2((M, F)),
                    cst2((H, F)), cst2((1, F)),
                    cst2((F, F)), cst2((F, F)), cst2((1, F)), cst2((F, 1)),
                    smem_spec]

    # advisory cost estimate for XLA scheduling around the custom call
    in_bytes = jnp.dtype(in_dtype).itemsize
    mm_flops = 2 * B * S * H * (2 * F if layer_i == 0 else F)   # fused projection(s)
    mm_flops += 2 * (2 * B * S) * F * F                          # stacked [C;A] @ w2
    mm_flops += 2 * B * F * F * 2                                # q@w1, h@w1
    mm_flops += 2 * B * S * F * 2                                # e1@v, e2@v
    mm_flops += 4 * B * S * F                                    # q / h reductions
    mm_flops += 4 * B * S * S                                    # sparsemax
    trans = B * (2 * S * F + S)                                  # tanh x2 + exp
    bytes_acc = (B * S * H * in_bytes + B * S * naux * 4
                 + (B * S * F * in_bytes if layer_i else 0)
                 + (H * (2 * F if layer_i == 0 else F) + 2 * F * F + 6 * F) * 4
                 + (B * F + B * S + B * S * F) * 4)
    cost = pl.CostEstimate(flops=int(mm_flops), transcendentals=int(trans),
                           bytes_accessed=int(bytes_acc))

    kernel = functools.partial(_tracenet_kernel, layer_i,
                               bool(proactive_masking), (TB, S, H, F))

    h_row, l_row, a_flat = pl.pallas_call(
        kernel,
        grid=grid,
        in_specs=in_specs,
        out_specs=[row3((TB, 1, F)),          # h  (lane-dense)
                   row3((TB, 1, S)),          # L  (lane-dense)
                   row2((M, F))],             # A  (flat slab)
        out_shape=[jax.ShapeDtypeStruct((B, 1, F), f32),
                   jax.ShapeDtypeStruct((B, 1, S), f32),
                   # A stays f32 even for bf16 activations: it is re-read as C by
                   # the next layer and bf16 would compound rounding.
                   jax.ShapeDtypeStruct((B * S, F), f32)],
        compiler_params=pltpu.CompilerParams(
            dimension_semantics=("parallel",),
            vmem_limit_bytes=vmem_limit),
        cost_estimate=cost,
    )(*operands)

    # back to the PyTorch output layout
    h = jnp.swapaxes(h_row, 1, 2)       # (B, F, 1)
    L = jnp.swapaxes(l_row, 1, 2)       # (B, S, 1)
    A = a_flat.reshape(B, S, F)         # (B, S, F)
    return h, L, A


# -----------------------------------------------------------------------------
# Pure-JAX reference (for correctness check)
# -----------------------------------------------------------------------------
def _sparsemax_ref(z, axis=1):
    z_sorted = -jnp.sort(-z, axis=axis)
    S = z.shape[axis]
    shape = [1] * z.ndim
    shape[axis] = S
    k = jnp.arange(1, S + 1, dtype=z.dtype).reshape(shape)
    cumsum = jnp.cumsum(z_sorted, axis=axis)
    cond = (1.0 + k * z_sorted > cumsum).astype(z.dtype)
    k_z = jnp.sum(cond, axis=axis, keepdims=True)
    tau = (jnp.sum(z_sorted * cond, axis=axis, keepdims=True) - 1.0) / k_z
    return jnp.maximum(z - tau, 0.0)


def _ref_forward(layer_i, attention_mask, x, item_weights, params, A_hat=None):
    B, S, H = x.shape
    F = params["C_w"].shape[0]
    ext = ((1.0 - attention_mask) * -10000.0)[..., None]

    if layer_i == 0:
        C = x @ params["C_w"].T + params["C_b"]
    else:
        C = A_hat
    A = x @ params["A_w"].T + params["A_b"]
    C = jax.nn.relu(C)
    A = jax.nn.relu(A)

    L = item_weights
    q = jnp.swapaxes(C, -2, -1) @ L                          # (B, F, 1)

    def addatt(query, values):
        qT = jnp.swapaxes(query, -2, -1)                     # (B, 1, F)
        t1 = qT @ params["att_w1"].T + values @ params["att_w2"].T
        energy = jnp.tanh(t1 + params["att_bias"].reshape(1, 1, F))
        return energy @ params["att_v"].T                    # (B, S, 1)

    alpha = addatt(q, C) + ext
    alpha = jax.nn.softmax(alpha, axis=1)
    h = jnp.swapaxes(C, -2, -1) @ alpha                      # (B, F, 1)

    L2 = addatt(h, A)
    w1p, w2p, w3p = params["w_1"], params["w_2"], params["w_3"]
    if layer_i == 0:
        xg = w3p ** 2 - w2p ** 2 - w1p ** 2
    elif layer_i == 1:
        xg = w3p ** 2 - w2p ** 2
    else:
        xg = w3p ** 2
    L2 = L2 * jax.nn.sigmoid(xg)
    L2 = L2 + ext
    Lout = _sparsemax_ref(L2, axis=1)
    return h, Lout, A


# -----------------------------------------------------------------------------
# Demo
# -----------------------------------------------------------------------------
if __name__ == "__main__":
    B, S, H, F = 8, 16, 32, 32   # batch, seq, hidden_size, output_feature
    key = jax.random.PRNGKey(0)
    ks = jax.random.split(key, 10)

    params = {
        "C_w": jax.random.normal(ks[0], (F, H), jnp.float32) * 0.05,
        "C_b": jax.random.normal(ks[1], (F,), jnp.float32) * 0.05,
        "A_w": jax.random.normal(ks[2], (F, H), jnp.float32) * 0.05,
        "A_b": jax.random.normal(ks[3], (F,), jnp.float32) * 0.05,
        "att_w1": jax.random.normal(ks[4], (F, F), jnp.float32) * 0.05,
        "att_w2": jax.random.normal(ks[5], (F, F), jnp.float32) * 0.05,
        "att_bias": jnp.zeros((1, 1, F), jnp.float32),
        "att_v": jax.random.normal(ks[6], (1, F), jnp.float32) * 0.05,
        "w_1": jnp.ones((1,), jnp.float32),
        "w_2": jnp.ones((1,), jnp.float32),
        "w_3": jnp.ones((1,), jnp.float32),
    }

    xlnet_output = jax.random.normal(ks[7], (B, S, H), jnp.float32)
    item_weights = jax.random.uniform(ks[8], (B, S, 1), jnp.float32)
    attention_mask = jnp.ones((B, S), jnp.float32)
    attention_mask = attention_mask.at[1, S - 3:].set(0.0)
    attention_mask = attention_mask.at[5, S - 6:].set(0.0)

    # layer 0 (fused C|A projection weights, no A_hat stream)
    h0, L0, A0 = tracenet_layer(0, attention_mask, xlnet_output, item_weights,
                                proactive_masking=False, params=params)
    # layer 1 chained on A0 (streams A_hat, skips C's weights)
    h1, L1, A1 = tracenet_layer(1, attention_mask, xlnet_output, item_weights,
                                proactive_masking=False, params=params, A_hat=A0)
    jax.block_until_ready((h0, L0, A0, h1, L1, A1))

    h0r, L0r, A0r = _ref_forward(0, attention_mask, xlnet_output, item_weights, params)
    h1r, L1r, A1r = _ref_forward(1, attention_mask, xlnet_output, item_weights, params,
                                 A_hat=A0r)

    assert h0.shape == (B, F, 1) and L0.shape == (B, S, 1) and A0.shape == (B, S, F)
    assert h1.shape == (B, F, 1) and L1.shape == (B, S, 1) and A1.shape == (B, S, F)

    tol = dict(atol=2e-3, rtol=2e-3)   # headroom for the EUP approx softmax denom
    assert jnp.allclose(h0, h0r, **tol)
    assert jnp.allclose(L0, L0r, **tol)
    assert jnp.allclose(A0, A0r, **tol)
    assert jnp.allclose(h1, h1r, **tol)
    assert jnp.allclose(L1, L1r, **tol)
    assert jnp.allclose(A1, A1r, **tol)

    print("KERNEL_OK")
</pallas_src>

<mosaic_0001>
module attributes {stable_mosaic.version = 11 : i64} {
  func.func @_tracenet_kernel(%arg0: i32, %arg1: memref<64x32xf32, #tpu.memory_space<vmem>>, %arg2: memref<4x16x2xf32, #tpu.memory_space<vmem>>, %arg3: memref<32x64xf32, #tpu.memory_space<vmem>>, %arg4: memref<1x64xf32, #tpu.memory_space<vmem>>, %arg5: memref<32x32xf32, #tpu.memory_space<vmem>>, %arg6: memref<32x32xf32, #tpu.memory_space<vmem>>, %arg7: memref<1x32xf32, #tpu.memory_space<vmem>>, %arg8: memref<32x1xf32, #tpu.memory_space<vmem>>, %arg9: memref<1xf32, #tpu.memory_space<smem>>, %arg10: memref<4x1x32xf32, #tpu.memory_space<vmem>>, %arg11: memref<4x1x16xf32, #tpu.memory_space<vmem>>, %arg12: memref<64x32xf32, #tpu.memory_space<vmem>>) attributes {dimension_semantics = [#tpu.dimension_semantics<parallel>], iteration_bounds = array<i64: 2>, scalar_prefetch = 0 : i64, scratch_operands = 0 : i64, tpu.core_type = #tpu.core_type<tc>, window_params = [{transform_indices = @transform_0, window_bounds = array<i64: 64, 32>}, {transform_indices = @transform_1, window_bounds = array<i64: 4, 16, 2>}, {pipeline_mode = #tpu.pipeline_mode<synchronous>, transform_indices = @transform_2, window_bounds = array<i64: 32, 64>}, {pipeline_mode = #tpu.pipeline_mode<synchronous>, transform_indices = @transform_3, window_bounds = array<i64: 1, 64>}, {pipeline_mode = #tpu.pipeline_mode<synchronous>, transform_indices = @transform_4, window_bounds = array<i64: 32, 32>}, {pipeline_mode = #tpu.pipeline_mode<synchronous>, transform_indices = @transform_5, window_bounds = array<i64: 32, 32>}, {pipeline_mode = #tpu.pipeline_mode<synchronous>, transform_indices = @transform_6, window_bounds = array<i64: 1, 32>}, {pipeline_mode = #tpu.pipeline_mode<synchronous>, transform_indices = @transform_7, window_bounds = array<i64: 32, 1>}, {transform_indices = @transform_8, window_bounds = array<i64: 1>}, {transform_indices = @transform_9, window_bounds = array<i64: 4, 1, 32>}, {transform_indices = @transform_10, window_bounds = array<i64: 4, 1, 16>}, {transform_indices = @transform_11, window_bounds = array<i64: 64, 32>}]} {
    %c0 = arith.constant 0 : index
    %c0_0 = arith.constant 0 : index
    %c0_1 = arith.constant 0 : index
    %0 = vector.load %arg2[%c0, %c0_0, %c0_1] : memref<4x16x2xf32, #tpu.memory_space<vmem>>, vector<4x16x2xf32>
    %1 = vector.extract_strided_slice %0 {offsets = [0, 0, 0], sizes = [4, 16, 1], strides = [1, 1, 1]} : vector<4x16x2xf32> to vector<4x16x1xf32>
    %2 = vector.extract_strided_slice %0 {offsets = [0, 0, 1], sizes = [4, 16, 1], strides = [1, 1, 1]} : vector<4x16x2xf32> to vector<4x16x1xf32>
    %c0_2 = arith.constant 0 : index
    %c0_3 = arith.constant 0 : index
    %3 = vector.load %arg5[%c0_2, %c0_3] : memref<32x32xf32, #tpu.memory_space<vmem>>, vector<32x32xf32>
    %c0_4 = arith.constant 0 : index
    %c0_5 = arith.constant 0 : index
    %4 = vector.load %arg6[%c0_4, %c0_5] : memref<32x32xf32, #tpu.memory_space<vmem>>, vector<32x32xf32>
    %c0_6 = arith.constant 0 : index
    %c0_7 = arith.constant 0 : index
    %5 = vector.load %arg7[%c0_6, %c0_7] : memref<1x32xf32, #tpu.memory_space<vmem>>, vector<1x32xf32>
    %c0_8 = arith.constant 0 : index
    %c0_9 = arith.constant 0 : index
    %6 = vector.load %arg8[%c0_8, %c0_9] : memref<32x1xf32, #tpu.memory_space<vmem>>, vector<32x1xf32>
    %c0_10 = arith.constant 0 : index
    %7 = memref.load %arg9[%c0_10] : memref<1xf32, #tpu.memory_space<smem>>
    %c0_11 = arith.constant 0 : index
    %c0_12 = arith.constant 0 : index
    %8 = vector.load %arg1[%c0_11, %c0_12] : memref<64x32xf32, #tpu.memory_space<vmem>>, vector<64x32xf32>
    %c0_13 = arith.constant 0 : index
    %c0_14 = arith.constant 0 : index
    %9 = vector.load %arg3[%c0_13, %c0_14] : memref<32x64xf32, #tpu.memory_space<vmem>>, vector<32x64xf32>
    %cst = arith.constant dense<0.000000e+00> : vector<64x64xf32>
    %10 = tpu.matmul %8, %9, %cst {dimension_numbers = #tpu.dot_dimension_numbers<[1], [0], [0], [1], [0, 0, 1, 1], [], []>} : vector<64x32xf32>, vector<32x64xf32>, vector<64x64xf32> -> vector<64x64xf32>
    %c0_15 = arith.constant 0 : index
    %c0_16 = arith.constant 0 : index
    %11 = vector.load %arg4[%c0_15, %c0_16] : memref<1x64xf32, #tpu.memory_space<vmem>>, vector<1x64xf32>
    %12 = vector.broadcast %11 : vector<1x64xf32> to vector<64x64xf32>
    %13 = arith.addf %10, %12 : vector<64x64xf32>
    %cst_17 = arith.constant 0.000000e+00 : f32
    %14 = vector.broadcast %cst_17 : f32 to vector<64x64xf32>
    %15 = arith.maximumf %13, %14 : vector<64x64xf32>
    %16 = vector.extract_strided_slice %15 {offsets = [0, 0], sizes = [64, 32], strides = [1, 1]} : vector<64x64xf32> to vector<64x32xf32>
    %17 = vector.extract_strided_slice %15 {offsets = [0, 32], sizes = [64, 32], strides = [1, 1]} : vector<64x64xf32> to vector<64x32xf32>
    %18 = vector.shape_cast %16 : vector<64x32xf32> to vector<4x16x32xf32>
    %19 = vector.broadcast %2 : vector<4x16x1xf32> to vector<4x16x32xf32>
    %20 = arith.mulf %19, %18 : vector<4x16x32xf32>
    %cst_18 = arith.constant dense<0.000000e+00> : vector<4x32xf32>
    %21 = vector.multi_reduction <add>, %20, %cst_18 [1] : vector<4x16x32xf32> to vector<4x32xf32>
    %22 = tpu.concatenate %16, %17 in 0 : vector<64x32xf32>, vector<64x32xf32> -> vector<128x32xf32>
    %cst_19 = arith.constant dense<0.000000e+00> : vector<128x32xf32>
    %23 = tpu.matmul %22, %4, %cst_19 {dimension_numbers = #tpu.dot_dimension_numbers<[1], [0], [0], [1], [0, 0, 1, 1], [], []>} : vector<128x32xf32>, vector<32x32xf32>, vector<128x32xf32> -> vector<128x32xf32>
    %24 = vector.extract_strided_slice %23 {offsets = [0, 0], sizes = [64, 32], strides = [1, 1]} : vector<128x32xf32> to vector<64x32xf32>
    %25 = vector.shape_cast %24 : vector<64x32xf32> to vector<4x16x32xf32>
    %26 = vector.extract_strided_slice %23 {offsets = [64, 0], sizes = [64, 32], strides = [1, 1]} : vector<128x32xf32> to vector<64x32xf32>
    %27 = vector.shape_cast %26 : vector<64x32xf32> to vector<4x16x32xf32>
    %cst_20 = arith.constant dense<0.000000e+00> : vector<4x32xf32>
    %28 = tpu.matmul %21, %3, %cst_20 {dimension_numbers = #tpu.dot_dimension_numbers<[1], [0], [0], [1], [0, 0, 1, 1], [], []>} : vector<4x32xf32>, vector<32x32xf32>, vector<4x32xf32> -> vector<4x32xf32>
    %29 = vector.shape_cast %28 : vector<4x32xf32> to vector<4x1x32xf32>
    %30 = vector.broadcast %29 : vector<4x1x32xf32> to vector<4x16x32xf32>
    %31 = arith.addf %30, %25 : vector<4x16x32xf32>
    %32 = vector.shape_cast %5 : vector<1x32xf32> to vector<1x1x32xf32>
    %33 = vector.broadcast %32 : vector<1x1x32xf32> to vector<4x16x32xf32>
    %34 = arith.addf %31, %33 : vector<4x16x32xf32>
    %35 = math.tanh %34 : vector<4x16x32xf32>
    %36 = vector.shape_cast %35 : vector<4x16x32xf32> to vector<64x32xf32>
    %cst_21 = arith.constant dense<0.000000e+00> : vector<64x1xf32>
    %37 = tpu.matmul %36, %6, %cst_21 {dimension_numbers = #tpu.dot_dimension_numbers<[1], [0], [0], [1], [0, 0, 1, 1], [], []>} : vector<64x32xf32>, vector<32x1xf32>, vector<64x1xf32> -> vector<64x1xf32>
    %38 = vector.shape_cast %37 : vector<64x1xf32> to vector<4x16x1xf32>
    %39 = arith.addf %38, %1 : vector<4x16x1xf32>
    %cst_22 = arith.constant dense<0xFF800000> : vector<4x1xf32>
    %40 = vector.multi_reduction <maximumf>, %39, %cst_22 [1] : vector<4x16x1xf32> to vector<4x1xf32>
    %41 = vector.shape_cast %40 : vector<4x1xf32> to vector<4x1x1xf32>
    %42 = vector.broadcast %41 : vector<4x1x1xf32> to vector<4x16x1xf32>
    %43 = arith.subf %39, %42 : vector<4x16x1xf32>
    %44 = math.exp %43 : vector<4x16x1xf32>
    %cst_23 = arith.constant dense<0.000000e+00> : vector<4x1xf32>
    %45 = vector.multi_reduction <add>, %44, %cst_23 [1] : vector<4x16x1xf32> to vector<4x1xf32>
    %46 = vector.shape_cast %45 : vector<4x1xf32> to vector<4x1x1xf32>
    %47 = tpu.reciprocal %46 {approx = true} : vector<4x1x1xf32> -> vector<4x1x1xf32>
    %48 = vector.broadcast %47 : vector<4x1x1xf32> to vector<4x16x1xf32>
    %49 = arith.mulf %44, %48 : vector<4x16x1xf32>
    %50 = vector.broadcast %49 : vector<4x16x1xf32> to vector<4x16x32xf32>
    %51 = arith.mulf %50, %18 : vector<4x16x32xf32>
    %cst_24 = arith.constant dense<0.000000e+00> : vector<4x32xf32>
    %52 = vector.multi_reduction <add>, %51, %cst_24 [1] : vector<4x16x32xf32> to vector<4x32xf32>
    %53 = vector.shape_cast %52 : vector<4x32xf32> to vector<4x1x32xf32>
    %c0_25 = arith.constant 0 : index
    %c0_26 = arith.constant 0 : index
    %c0_27 = arith.constant 0 : index
    %54 = vector.load %arg10[%c0_25, %c0_26, %c0_27] : memref<4x1x32xf32, #tpu.memory_space<vmem>>, vector<4x1x32xf32>
    tpu.vector_store %arg10[%c0_25, %c0_26, %c0_27], %53 {strides = array<i32>} : memref<4x1x32xf32, #tpu.memory_space<vmem>>, vector<4x1x32xf32>,
    %cst_28 = arith.constant dense<0.000000e+00> : vector<4x32xf32>
    %55 = tpu.matmul %52, %3, %cst_28 {dimension_numbers = #tpu.dot_dimension_numbers<[1], [0], [0], [1], [0, 0, 1, 1], [], []>} : vector<4x32xf32>, vector<32x32xf32>, vector<4x32xf32> -> vector<4x32xf32>
    %56 = vector.shape_cast %55 : vector<4x32xf32> to vector<4x1x32xf32>
    %57 = vector.broadcast %56 : vector<4x1x32xf32> to vector<4x16x32xf32>
    %58 = arith.addf %57, %27 : vector<4x16x32xf32>
    %59 = vector.shape_cast %5 : vector<1x32xf32> to vector<1x1x32xf32>
    %60 = vector.broadcast %59 : vector<1x1x32xf32> to vector<4x16x32xf32>
    %61 = arith.addf %58, %60 : vector<4x16x32xf32>
    %62 = math.tanh %61 : vector<4x16x32xf32>
    %63 = vector.shape_cast %62 : vector<4x16x32xf32> to vector<64x32xf32>
    %cst_29 = arith.constant dense<0.000000e+00> : vector<64x1xf32>
    %64 = tpu.matmul %63, %6, %cst_29 {dimension_numbers = #tpu.dot_dimension_numbers<[1], [0], [0], [1], [0, 0, 1, 1], [], []>} : vector<64x32xf32>, vector<32x1xf32>, vector<64x1xf32> -> vector<64x1xf32>
    %65 = vector.shape_cast %64 : vector<64x1xf32> to vector<4x16x1xf32>
    %66 = vector.broadcast %7 : f32 to vector<4x16x1xf32>
    %67 = arith.mulf %65, %66 : vector<4x16x1xf32>
    %68 = arith.addf %67, %1 : vector<4x16x1xf32>
    %69 = vector.shape_cast %68 : vector<4x16x1xf32> to vector<4x1x16xf32>
    %70 = vector.broadcast %69 : vector<4x1x16xf32> to vector<4x16x16xf32>
    %71 = vector.broadcast %68 : vector<4x16x1xf32> to vector<4x16x16xf32>
    %72 = arith.cmpf oge, %70, %71 : vector<4x16x16xf32>
    %73 = arith.extui %72 : vector<4x16x16xi1> to vector<4x16x16xi32>
    %74 = arith.sitofp %73 : vector<4x16x16xi32> to vector<4x16x16xf32>
    %cst_30 = arith.constant dense<0.000000e+00> : vector<4x16xf32>
    %75 = vector.multi_reduction <add>, %74, %cst_30 [2] : vector<4x16x16xf32> to vector<4x16xf32>
    %76 = vector.shape_cast %75 : vector<4x16xf32> to vector<4x16x1xf32>
    %77 = vector.broadcast %69 : vector<4x1x16xf32> to vector<4x16x16xf32>
    %78 = arith.mulf %74, %77 : vector<4x16x16xf32>
    %cst_31 = arith.constant dense<0.000000e+00> : vector<4x16xf32>
    %79 = vector.multi_reduction <add>, %78, %cst_31 [2] : vector<4x16x16xf32> to vector<4x16xf32>
    %80 = vector.shape_cast %79 : vector<4x16xf32> to vector<4x16x1xf32>
    %81 = arith.mulf %76, %68 : vector<4x16x1xf32>
    %cst_32 = arith.constant 1.000000e+00 : f32
    %82 = vector.broadcast %cst_32 : f32 to vector<4x16x1xf32>
    %83 = arith.addf %82, %81 : vector<4x16x1xf32>
    %84 = arith.cmpf ogt, %83, %80 : vector<4x16x1xf32>
    %85 = arith.extui %84 : vector<4x16x1xi1> to vector<4x16x1xi32>
    %86 = arith.sitofp %85 : vector<4x16x1xi32> to vector<4x16x1xf32>
    %cst_33 = arith.constant dense<0.000000e+00> : vector<4x1xf32>
    %87 = vector.multi_reduction <add>, %86, %cst_33 [1] : vector<4x16x1xf32> to vector<4x1xf32>
    %88 = vector.shape_cast %87 : vector<4x1xf32> to vector<4x1x1xf32>
    %89 = arith.mulf %86, %68 : vector<4x16x1xf32>
    %cst_34 = arith.constant dense<0.000000e+00> : vector<4x1xf32>
    %90 = vector.multi_reduction <add>, %89, %cst_34 [1] : vector<4x16x1xf32> to vector<4x1xf32>
    %91 = vector.shape_cast %90 : vector<4x1xf32> to vector<4x1x1xf32>
    %cst_35 = arith.constant 1.000000e+00 : f32
    %92 = vector.broadcast %cst_35 : f32 to vector<4x1x1xf32>
    %93 = arith.subf %91, %92 : vector<4x1x1xf32>
    %94 = arith.divf %93, %88 : vector<4x1x1xf32>
    %95 = vector.broadcast %94 : vector<4x1x1xf32> to vector<4x1x16xf32>
    %96 = arith.subf %69, %95 : vector<4x1x16xf32>
    %cst_36 = arith.constant 0.000000e+00 : f32
    %97 = vector.broadcast %cst_36 : f32 to vector<4x1x16xf32>
    %98 = arith.maximumf %96, %97 : vector<4x1x16xf32>
    %c0_37 = arith.constant 0 : index
    %c0_38 = arith.constant 0 : index
    %c0_39 = arith.constant 0 : index
    %99 = vector.load %arg11[%c0_37, %c0_38, %c0_39] : memref<4x1x16xf32, #tpu.memory_space<vmem>>, vector<4x1x16xf32>
    tpu.vector_store %arg11[%c0_37, %c0_38, %c0_39], %98 {strides = array<i32>} : memref<4x1x16xf32, #tpu.memory_space<vmem>>, vector<4x1x16xf32>,
    %c0_40 = arith.constant 0 : index
    %c0_41 = arith.constant 0 : index
    %100 = vector.load %arg12[%c0_40, %c0_41] : memref<64x32xf32, #tpu.memory_space<vmem>>, vector<64x32xf32>
    tpu.vector_store %arg12[%c0_40, %c0_41], %17 {strides = array<i32>} : memref<64x32xf32, #tpu.memory_space<vmem>>, vector<64x32xf32>,
    return
  }
  func.func @transform_0(%arg0: i32) -> (i32, i32) {
    %c0_i32 = arith.constant 0 : i32
    %c0_i32_0 = arith.constant 0 : i32
    return %arg0, %c0_i32 : i32, i32
  }
  func.func @transform_1(%arg0: i32) -> (i32, i32, i32) {
    %c0_i32 = arith.constant 0 : i32
    %c0_i32_0 = arith.constant 0 : i32
    %c0_i32_1 = arith.constant 0 : i32
    return %arg0, %c0_i32, %c0_i32_0 : i32, i32, i32
  }
  func.func @transform_2(%arg0: i32) -> (i32, i32) {
    %c0_i32 = arith.constant 0 : i32
    %c0_i32_0 = arith.constant 0 : i32
    %c0_i32_1 = arith.constant 0 : i32
    return %c0_i32, %c0_i32_0 : i32, i32
  }
  func.func @transform_3(%arg0: i32) -> (i32, i32) {
    %c0_i32 = arith.constant 0 : i32
    %c0_i32_0 = arith.constant 0 : i32
    %c0_i32_1 = arith.constant 0 : i32
    return %c0_i32, %c0_i32_0 : i32, i32
  }
  func.func @transform_4(%arg0: i32) -> (i32, i32) {
    %c0_i32 = arith.constant 0 : i32
    %c0_i32_0 = arith.constant 0 : i32
    %c0_i32_1 = arith.constant 0 : i32
    return %c0_i32, %c0_i32_0 : i32, i32
  }
  func.func @transform_5(%arg0: i32) -> (i32, i32) {
    %c0_i32 = arith.constant 0 : i32
    %c0_i32_0 = arith.constant 0 : i32
    %c0_i32_1 = arith.constant 0 : i32
    return %c0_i32, %c0_i32_0 : i32, i32
  }
  func.func @transform_6(%arg0: i32) -> (i32, i32) {
    %c0_i32 = arith.constant 0 : i32
    %c0_i32_0 = arith.constant 0 : i32
    %c0_i32_1 = arith.constant 0 : i32
    return %c0_i32, %c0_i32_0 : i32, i32
  }
  func.func @transform_7(%arg0: i32) -> (i32, i32) {
    %c0_i32 = arith.constant 0 : i32
    %c0_i32_0 = arith.constant 0 : i32
    %c0_i32_1 = arith.constant 0 : i32
    return %c0_i32, %c0_i32_0 : i32, i32
  }
  func.func @transform_8(%arg0: i32) -> i32 {
    %c0_i32 = arith.constant 0 : i32
    %c0_i32_0 = arith.constant 0 : i32
    return %c0_i32 : i32
  }
  func.func @transform_9(%arg0: i32) -> (i32, i32, i32) {
    %c0_i32 = arith.constant 0 : i32
    %c0_i32_0 = arith.constant 0 : i32
    %c0_i32_1 = arith.constant 0 : i32
    return %arg0, %c0_i32, %c0_i32_0 : i32, i32, i32
  }
  func.func @transform_10(%arg0: i32) -> (i32, i32, i32) {
    %c0_i32 = arith.constant 0 : i32
    %c0_i32_0 = arith.constant 0 : i32
    %c0_i32_1 = arith.constant 0 : i32
    return %arg0, %c0_i32, %c0_i32_0 : i32, i32, i32
  }
  func.func @transform_11(%arg0: i32) -> (i32, i32) {
    %c0_i32 = arith.constant 0 : i32
    %c0_i32_0 = arith.constant 0 : i32
    return %arg0, %c0_i32 : i32, i32
  }
}

</mosaic_0001>

<llo_original>
// kernel: tpu_custom_call.1
$region0: #{tpu_custom_call.1}
  #allocation0 [shape = 'u32[]', space=smem, size = 0x4, offset = 0x4, fixed_abs, tag = 'smem constant byte address 0x4 - core index']
  #allocation1 [shape = 'u32[144,128]{1,0:T(1,128)}', space=vmem, size = 0x12000, scoped, tag = 'internal scratch']
  #allocation2 [shape = 'f32[1]{0:T(128)S(6)}', space=smem, size = 0x200, scoped, tag = 'scoped memory for tpu_custom_call.1']
  %s0 = inlined_call_operand.vmem [shape: f32[128,32], index: 0, kind: input, shape index: {}]
  %s1 = inlined_call_operand.vmem [shape: f32[8,16,2], index: 1, kind: input, shape index: {}]
  %s2 = inlined_call_operand.vmem [shape: f32[32,64], index: 2, kind: input, shape index: {}]
  %s3 = inlined_call_operand.vmem [shape: f32[1,64], index: 3, kind: input, shape index: {}]
  %s4 = inlined_call_operand.vmem [shape: f32[32,32], index: 4, kind: input, shape index: {}]
  %s5 = inlined_call_operand.vmem [shape: f32[32,32], index: 5, kind: input, shape index: {}]
  %s6 = inlined_call_operand.vmem [shape: f32[1,32], index: 6, kind: input, shape index: {}]
  %s7 = inlined_call_operand.vmem [shape: f32[32,1], index: 7, kind: input, shape index: {}]
  %s8 = inlined_call_operand.<no memory space> [shape: f32[1], index: 8, kind: input, shape index: {}]
  %s9 = inlined_call_operand.hbm [shape: f32[8,1,32], index: 9, kind: output, shape index: {0}]
  %s10 = inlined_call_operand.hbm [shape: f32[8,1,16], index: 10, kind: output, shape index: {1}]
  %s11 = inlined_call_operand.vmem [shape: f32[128,32], index: 11, kind: output, shape index: {2}]
  %12 = xla_tuple %s9, %s10, %s11
  %s13 = sld [smem:[#allocation0]]
  $region85: #{tpu_custom_call.1} parent=0
    _
  %s15 = ssub.s32 1, %s13
  %s16 = scalar_select 0, %s15, %s13
  %17 = sst [smem:[#allocation2]] %s8
  $region1: #{tpu_custom_call.1} parent=0
    #allocation3 [shape = 'u8[4096]{0}', space=vmem, size = 0x1000, scoped, tag = 'output window, operand 0']
    #allocation4 [shape = 's32[2]{0}', space=sflag, size = 0x8, scoped, tag = 'scoped memory for tpu_custom_call.1']
    #allocation5 [shape = 'u8[4096]{0}', space=vmem, size = 0x1000, scoped, tag = 'output window, operand 1']
    #allocation6 [shape = 's32[2]{0}', space=sflag, size = 0x8, scoped, tag = 'scoped memory for tpu_custom_call.1']
    %18 = vsyncpa [#allocation4], 0
    %s19 = scalar_lea.sflag [#allocation4], 1
    %20 = vsyncpa %s19, 0
    %21 = vsyncpa [#allocation6], 0
    %s22 = scalar_lea.sflag [#allocation6], 1
    %23 = vsyncpa %s22, 0
    loop: start=0, step=1, limit=4
    $region2: #{tpu_custom_call.1} parent=1 // loop_pre_header
      _
    $region3: #{tpu_custom_call.1} parent=1 // loop_header
      %s25 = sphi 0, %s29
      %p26 = scmp.ge.s32.totalorder %s25, 4
      %s35 = sphi 0, %s37
      %s38 = sphi 0, %s35
      %s39 = sphi 0, %s38
      %s55 = sphi 0, %s39
      %s61 = sphi 0, %s63
      %s64 = sphi 0, %s61
      %s65 = sphi 0, %s64
      %s81 = sphi 0, %s65
      %s85 = sphi 0, %s85
      %s87 = sphi 0, %s85
      %s88 = sphi 0, %s87
      %s102 = sphi 0, %s88
      %s106 = sphi 0, %s106
      %s108 = sphi 0, %s106
      %s109 = sphi 0, %s108
      %s123 = sphi 0, %s109
      %s127 = sphi 0, %s127
      %s129 = sphi 0, %s127
      %s130 = sphi 0, %s129
      %s144 = sphi 0, %s130
      %s148 = sphi 0, %s148
      %s150 = sphi 0, %s148
      %s151 = sphi 0, %s150
      %s165 = sphi 0, %s151
      %s169 = sphi 0, %s169
      %s171 = sphi 0, %s169
      %s172 = sphi 0, %s171
      %s186 = sphi 0, %s172
      %s190 = sphi 0, %s190
      %s192 = sphi 0, %s190
      %s193 = sphi 0, %s192
      %s207 = sphi 0, %s193
      %s211 = sphi 0, %s211
      %s213 = sphi 0, %s211
      %s214 = sphi 0, %s213
      %s228 = sphi 0, %s214
      %s234 = sphi 0, %s236
      %s237 = sphi 0, %s234
      %s238 = sphi 0, %s237
      %s254 = sphi 0, %s238
      %s260 = sphi 0, %s262
      %s263 = sphi 0, %s260
      %s264 = sphi 0, %s263
      %s280 = sphi 0, %s264
      %s286 = sphi 0, %s288
      %s289 = sphi 0, %s286
      %s290 = sphi 0, %s289
      %s306 = sphi 0, %s290
    $region4: #{tpu_custom_call.1} parent=1 // loop_header_branch
      %28 = sbr.rel (%p26) target = $region8
    $region5: #{tpu_custom_call.1} parent=1 // loop_body
      %s30 = ssub.s32 %s25, 1
      %s31 = ssub.s32 %s25, 2
      %s32 = sadd.s32 %s25, 1
      %s33 = ssub.s32 %s25, %s32
      %p34 = scmp.eq.s32.totalorder %s33, 0
      %s36 = sadd.s32 %s35, 1
      %s37 = scalar_select %p34, %s35, %s36
      %p40 = pneg %p34
      %p41 = scmp.eq.s32.totalorder %s25, 1
      %p42 = por %p40, %p41
      %p43 = scmp.ne.s32.totalorder %s35, %s38
      %p44 = scmp.eq.s32.totalorder %s25, 0
      %p45 = por %p43, %p44
      %p46 = scmp.ne.s32.totalorder %s35, %s38
      %p47 = scmp.eq.s32.totalorder %s30, 1
      %p48 = por %p46, %p47
      %p49 = scmp.ne.s32.totalorder %s38, %s39
      %p50 = scmp.eq.s32.totalorder %s30, 0
      %p51 = por %p49, %p50
      %p52 = scmp.ne.s32.totalorder %s38, %s39
      %p53 = scmp.eq.s32.totalorder %s31, 1
      %p54 = por %p52, %p53
      %p56 = scmp.ne.s32.totalorder %s39, %s55
      %p57 = scmp.eq.s32.totalorder %s31, 0
      %p58 = por %p56, %p57
      %s59 = ssub.s32 %s25, %s32
      %p60 = scmp.eq.s32.totalorder %s59, 0
      %s62 = sadd.s32 %s61, 1
      %s63 = scalar_select %p60, %s61, %s62
      %p66 = pneg %p60
      %p67 = scmp.eq.s32.totalorder %s25, 1
      %p68 = por %p66, %p67
      %p69 = scmp.ne.s32.totalorder %s61, %s64
      %p70 = scmp.eq.s32.totalorder %s25, 0
      %p71 = por %p69, %p70
      %p72 = scmp.ne.s32.totalorder %s61, %s64
      %p73 = scmp.eq.s32.totalorder %s30, 1
      %p74 = por %p72, %p73
      %p75 = scmp.ne.s32.totalorder %s64, %s65
      %p76 = scmp.eq.s32.totalorder %s30, 0
      %p77 = por %p75, %p76
      %p78 = scmp.ne.s32.totalorder %s64, %s65
      %p79 = scmp.eq.s32.totalorder %s31, 1
      %p80 = por %p78, %p79
      %p82 = scmp.ne.s32.totalorder %s65, %s81
      %p83 = scmp.eq.s32.totalorder %s31, 0
      %p84 = por %p82, %p83
      %s86 = sadd.s32 %s85, 1
      %p89 = scmp.eq.s32.totalorder %s25, 1
      %p90 = scmp.ne.s32.totalorder %s85, %s87
      %p91 = scmp.eq.s32.totalorder %s25, 0
      %p92 = por %p90, %p91
      %p93 = scmp.ne.s32.totalorder %s85, %s87
      %p94 = scmp.eq.s32.totalorder %s30, 1
      %p95 = por %p93, %p94
      %p96 = scmp.ne.s32.totalorder %s87, %s88
      %p97 = scmp.eq.s32.totalorder %s30, 0
      %p98 = por %p96, %p97
      %p99 = scmp.ne.s32.totalorder %s87, %s88
      %p100 = scmp.eq.s32.totalorder %s31, 1
      %p101 = por %p99, %p100
      %p103 = scmp.ne.s32.totalorder %s88, %s102
      %p104 = scmp.eq.s32.totalorder %s31, 0
      %p105 = por %p103, %p104
      %s107 = sadd.s32 %s106, 1
      %p110 = scmp.eq.s32.totalorder %s25, 1
      %p111 = scmp.ne.s32.totalorder %s106, %s108
      %p112 = scmp.eq.s32.totalorder %s25, 0
      %p113 = por %p111, %p112
      %p114 = scmp.ne.s32.totalorder %s106, %s108
      %p115 = scmp.eq.s32.totalorder %s30, 1
      %p116 = por %p114, %p115
      %p117 = scmp.ne.s32.totalorder %s108, %s109
      %p118 = scmp.eq.s32.totalorder %s30, 0
      %p119 = por %p117, %p118
      %p120 = scmp.ne.s32.totalorder %s108, %s109
      %p121 = scmp.eq.s32.totalorder %s31, 1
      %p122 = por %p120, %p121
      %p124 = scmp.ne.s32.totalorder %s109, %s123
      %p125 = scmp.eq.s32.totalorder %s31, 0
      %p126 = por %p124, %p125
      %s128 = sadd.s32 %s127, 1
      %p131 = scmp.eq.s32.totalorder %s25, 1
      %p132 = scmp.ne.s32.totalorder %s127, %s129
      %p133 = scmp.eq.s32.totalorder %s25, 0
      %p134 = por %p132, %p133
      %p135 = scmp.ne.s32.totalorder %s127, %s129
      %p136 = scmp.eq.s32.totalorder %s30, 1
      %p137 = por %p135, %p136
      %p138 = scmp.ne.s32.totalorder %s129, %s130
      %p139 = scmp.eq.s32.totalorder %s30, 0
      %p140 = por %p138, %p139
      %p141 = scmp.ne.s32.totalorder %s129, %s130
      %p142 = scmp.eq.s32.totalorder %s31, 1
      %p143 = por %p141, %p142
      %p145 = scmp.ne.s32.totalorder %s130, %s144
      %p146 = scmp.eq.s32.totalorder %s31, 0
      %p147 = por %p145, %p146
      %s149 = sadd.s32 %s148, 1
      %p152 = scmp.eq.s32.totalorder %s25, 1
      %p153 = scmp.ne.s32.totalorder %s148, %s150
      %p154 = scmp.eq.s32.totalorder %s25, 0
      %p155 = por %p153, %p154
      %p156 = scmp.ne.s32.totalorder %s148, %s150
      %p157 = scmp.eq.s32.totalorder %s30, 1
      %p158 = por %p156, %p157
      %p159 = scmp.ne.s32.totalorder %s150, %s151
      %p160 = scmp.eq.s32.totalorder %s30, 0
      %p161 = por %p159, %p160
      %p162 = scmp.ne.s32.totalorder %s150, %s151
      %p163 = scmp.eq.s32.totalorder %s31, 1
      %p164 = por %p162, %p163
      %p166 = scmp.ne.s32.totalorder %s151, %s165
      %p167 = scmp.eq.s32.totalorder %s31, 0
      %p168 = por %p166, %p167
      %s170 = sadd.s32 %s169, 1
      %p173 = scmp.eq.s32.totalorder %s25, 1
      %p174 = scmp.ne.s32.totalorder %s169, %s171
      %p175 = scmp.eq.s32.totalorder %s25, 0
      %p176 = por %p174, %p175
      %p177 = scmp.ne.s32.totalorder %s169, %s171
      %p178 = scmp.eq.s32.totalorder %s30, 1
      %p179 = por %p177, %p178
      %p180 = scmp.ne.s32.totalorder %s171, %s172
      %p181 = scmp.eq.s32.totalorder %s30, 0
      %p182 = por %p180, %p181
      %p183 = scmp.ne.s32.totalorder %s171, %s172
      %p184 = scmp.eq.s32.totalorder %s31, 1
      %p185 = por %p183, %p184
      %p187 = scmp.ne.s32.totalorder %s172, %s186
      %p188 = scmp.eq.s32.totalorder %s31, 0
      %p189 = por %p187, %p188
      %s191 = sadd.s32 %s190, 1
      %p194 = scmp.eq.s32.totalorder %s25, 1
      %p195 = scmp.ne.s32.totalorder %s190, %s192
      %p196 = scmp.eq.s32.totalorder %s25, 0
      %p197 = por %p195, %p196
      %p198 = scmp.ne.s32.totalorder %s190, %s192
      %p199 = scmp.eq.s32.totalorder %s30, 1
      %p200 = por %p198, %p199
      %p201 = scmp.ne.s32.totalorder %s192, %s193
      %p202 = scmp.eq.s32.totalorder %s30, 0
      %p203 = por %p201, %p202
      %p204 = scmp.ne.s32.totalorder %s192, %s193
      %p205 = scmp.eq.s32.totalorder %s31, 1
      %p206 = por %p204, %p205
      %p208 = scmp.ne.s32.totalorder %s193, %s207
      %p209 = scmp.eq.s32.totalorder %s31, 0
      %p210 = por %p208, %p209
      %s212 = sadd.s32 %s211, 1
      %p215 = scmp.eq.s32.totalorder %s25, 1
      %p216 = scmp.ne.s32.totalorder %s211, %s213
      %p217 = scmp.eq.s32.totalorder %s25, 0
      %p218 = por %p216, %p217
      %p219 = scmp.ne.s32.totalorder %s211, %s213
      %p220 = scmp.eq.s32.totalorder %s30, 1
      %p221 = por %p219, %p220
      %p222 = scmp.ne.s32.totalorder %s213, %s214
      %p223 = scmp.eq.s32.totalorder %s30, 0
      %p224 = por %p222, %p223
      %p225 = scmp.ne.s32.totalorder %s213, %s214
      %p226 = scmp.eq.s32.totalorder %s31, 1
      %p227 = por %p225, %p226
      %p229 = scmp.ne.s32.totalorder %s214, %s228
      %p230 = scmp.eq.s32.totalorder %s31, 0
      %p231 = por %p229, %p230
      %s232 = ssub.s32 %s25, %s32
      %p233 = scmp.eq.s32.totalorder %s232, 0
      %s235 = sadd.s32 %s234, 1
      %s236 = scalar_select %p233, %s234, %s235
      %p239 = pneg %p233
      %p240 = scmp.eq.s32.totalorder %s25, 1
      %p241 = por %p239, %p240
      %p242 = scmp.ne.s32.totalorder %s234, %s237
      %p243 = scmp.eq.s32.totalorder %s25, 0
      %p244 = por %p242, %p243
      %p245 = scmp.ne.s32.totalorder %s234, %s237
      %p246 = scmp.eq.s32.totalorder %s30, 1
      %p247 = por %p245, %p246
      %p248 = scmp.ne.s32.totalorder %s237, %s238
      %p249 = scmp.eq.s32.totalorder %s30, 0
      %p250 = por %p248, %p249
      %p251 = scmp.ne.s32.totalorder %s237, %s238
      %p252 = scmp.eq.s32.totalorder %s31, 1
      %p253 = por %p251, %p252
      %p255 = scmp.ne.s32.totalorder %s238, %s254
      %p256 = scmp.eq.s32.totalorder %s31, 0
      %p257 = por %p255, %p256
      %s258 = ssub.s32 %s25, %s32
      %p259 = scmp.eq.s32.totalorder %s258, 0
      %s261 = sadd.s32 %s260, 1
      %s262 = scalar_select %p259, %s260, %s261
      %p265 = pneg %p259
      %p266 = scmp.eq.s32.totalorder %s25, 1
      %p267 = por %p265, %p266
      %p268 = scmp.ne.s32.totalorder %s260, %s263
      %p269 = scmp.eq.s32.totalorder %s25, 0
      %p270 = por %p268, %p269
      %p271 = scmp.ne.s32.totalorder %s260, %s263
      %p272 = scmp.eq.s32.totalorder %s30, 1
      %p273 = por %p271, %p272
      %p274 = scmp.ne.s32.totalorder %s263, %s264
      %p275 = scmp.eq.s32.totalorder %s30, 0
      %p276 = por %p274, %p275
      %p277 = scmp.ne.s32.totalorder %s263, %s264
      %p278 = scmp.eq.s32.totalorder %s31, 1
      %p279 = por %p277, %p278
      %p281 = scmp.ne.s32.totalorder %s264, %s280
      %p282 = scmp.eq.s32.totalorder %s31, 0
      %p283 = por %p281, %p282
      %s284 = ssub.s32 %s25, %s32
      %p285 = scmp.eq.s32.totalorder %s284, 0
      %s287 = sadd.s32 %s286, 1
      %s288 = scalar_select %p285, %s286, %s287
      %p291 = pneg %p285
      %p292 = scmp.eq.s32.totalorder %s25, 1
      %p293 = por %p291, %p292
      %p294 = scmp.ne.s32.totalorder %s286, %s289
      %p295 = scmp.eq.s32.totalorder %s25, 0
      %p296 = por %p294, %p295
      %p297 = scmp.ne.s32.totalorder %s286, %s289
      %p298 = scmp.eq.s32.totalorder %s30, 1
      %p299 = por %p297, %p298
      %p300 = scmp.ne.s32.totalorder %s289, %s290
      %p301 = scmp.eq.s32.totalorder %s30, 0
      %p302 = por %p300, %p301
      %p303 = scmp.ne.s32.totalorder %s289, %s290
      %p304 = scmp.eq.s32.totalorder %s31, 1
      %p305 = por %p303, %p304
      %p307 = scmp.ne.s32.totalorder %s290, %s306
      %p308 = scmp.eq.s32.totalorder %s31, 0
      %p309 = por %p307, %p308
      %p310 = scmp.le.s32.totalorder 1, %s25
      %p311 = scmp.lt.s32.totalorder %s25, 3
      %p312 = pnand %p310, %p311
      %p313 = pneg %p312
      // Predicated region
      $region9: #{tpu_custom_call.1} parent=5 // pred_check
        _
      $region10: #{tpu_custom_call.1} parent=5 // pred_check_branch
        %315 = sbr.rel (%p312) target = $region12
      $region11: #{tpu_custom_call.1} parent=5 // pred_region
        %s316 = ssub.s32 %s25, 1
        // Predicated region
        $region13: #{tpu_custom_call.1} parent=11 // pred_check
          %p317 = pneg %p98
        $region14: #{tpu_custom_call.1} parent=11 // pred_check_branch
          %319 = sbr.rel (%p317) target = $region16
        $region15: #{tpu_custom_call.1} parent=11 // pred_region
          _
        $region16: #{tpu_custom_call.1} parent=11 // pred_fallthru
          _
        // Predicated region
        $region17: #{tpu_custom_call.1} parent=11 // pred_check
          %p320 = pneg %p119
        $region18: #{tpu_custom_call.1} parent=11 // pred_check_branch
          %322 = sbr.rel (%p320) target = $region20
        $region19: #{tpu_custom_call.1} parent=11 // pred_region
          _
        $region20: #{tpu_custom_call.1} parent=11 // pred_fallthru
          _
        // Predicated region
        $region21: #{tpu_custom_call.1} parent=11 // pred_check
          %p323 = pneg %p140
        $region22: #{tpu_custom_call.1} parent=11 // pred_check_branch
          %325 = sbr.rel (%p323) target = $region24
        $region23: #{tpu_custom_call.1} parent=11 // pred_region
          _
        $region24: #{tpu_custom_call.1} parent=11 // pred_fallthru
          _
        // Predicated region
        $region25: #{tpu_custom_call.1} parent=11 // pred_check
          %p326 = pneg %p161
        $region26: #{tpu_custom_call.1} parent=11 // pred_check_branch
          %328 = sbr.rel (%p326) target = $region28
        $region27: #{tpu_custom_call.1} parent=11 // pred_region
          _
        $region28: #{tpu_custom_call.1} parent=11 // pred_fallthru
          _
        // Predicated region
        $region29: #{tpu_custom_call.1} parent=11 // pred_check
          %p329 = pneg %p182
        $region30: #{tpu_custom_call.1} parent=11 // pred_check_branch
          %331 = sbr.rel (%p329) target = $region32
        $region31: #{tpu_custom_call.1} parent=11 // pred_region
          _
        $region32: #{tpu_custom_call.1} parent=11 // pred_fallthru
          _
        // Predicated region
        $region33: #{tpu_custom_call.1} parent=11 // pred_check
          %p332 = pneg %p203
        $region34: #{tpu_custom_call.1} parent=11 // pred_check_branch
          %334 = sbr.rel (%p332) target = $region36
        $region35: #{tpu_custom_call.1} parent=11 // pred_region
          _
        $region36: #{tpu_custom_call.1} parent=11 // pred_fallthru
          _
        // Predicated region
        $region37: #{tpu_custom_call.1} parent=11 // pred_check
          %p335 = pneg %p224
        $region38: #{tpu_custom_call.1} parent=11 // pred_check_branch
          %337 = sbr.rel (%p335) target = $region40
        $region39: #{tpu_custom_call.1} parent=11 // pred_region
          _
        $region40: #{tpu_custom_call.1} parent=11 // pred_fallthru
          _
      $region12: #{tpu_custom_call.1} parent=5 // pred_fallthru
        _
      %p338 = scmp.lt.s32.totalorder %s25, 2
      // Predicated region
      $region41: #{tpu_custom_call.1} parent=5 // pred_check
        %p339 = pneg %p338
      $region42: #{tpu_custom_call.1} parent=5 // pred_check_branch
        %341 = sbr.rel (%p339) target = $region44
      $region43: #{tpu_custom_call.1} parent=5 // pred_region
        // Predicated region
        $region45: #{tpu_custom_call.1} parent=43 // pred_check
          %p342 = pneg %p45
        $region46: #{tpu_custom_call.1} parent=43 // pred_check_branch
          %344 = sbr.rel (%p342) target = $region48
        $region47: #{tpu_custom_call.1} parent=43 // pred_region
          %s345 = smul.u32 8, %s25
          %p346 = scmp.lt.s32.totalorder %s345, 15
          %s347 = scalar_select %p346, %s345, 15
          %s348 = smul.addr %s347, 8
          %s349 = scalar_lea.vmem %s0, %s348
          %s350 = smul.u32 8, %s25
        $region48: #{tpu_custom_call.1} parent=43 // pred_fallthru
          _
        // Predicated region
        $region49: #{tpu_custom_call.1} parent=43 // pred_check
          %p351 = pneg %p71
        $region50: #{tpu_custom_call.1} parent=43 // pred_check_branch
          %353 = sbr.rel (%p351) target = $region52
        $region51: #{tpu_custom_call.1} parent=43 // pred_region
          %s354 = smul.u32 4, %s25
          %p355 = scmp.lt.s32.totalorder %s354, 7
          %s356 = scalar_select %p355, %s354, 7
          %s357 = smul.addr %s356, 2
          %s358 = smul.addr %s357, 8
          %s359 = scalar_lea.vmem %s1, %s358
          %s360 = smul.u32 4, %s25
        $region52: #{tpu_custom_call.1} parent=43 // pred_fallthru
          _
      $region44: #{tpu_custom_call.1} parent=5 // pred_fallthru
        _
      %p361 = scmp.le.s32.totalorder 1, %s25
      %p362 = scmp.lt.s32.totalorder %s25, 3
      %p363 = pnand %p361, %p362
      %p364 = pneg %p363
      // Predicated region
      $region53: #{tpu_custom_call.1} parent=5 // pred_check
        _
      $region54: #{tpu_custom_call.1} parent=5 // pred_check_branch
        %366 = sbr.rel (%p363) target = $region56
      $region55: #{tpu_custom_call.1} parent=5 // pred_region
        %s367 = ssub.s32 %s25, 1
        %s368 = smul.u32 8, %s30
        %p369 = scmp.lt.s32.totalorder %s368, 15
        %s370 = scalar_select %p369, %s368, 15
        %s371 = smul.addr %s370, 8
        %s372 = scalar_lea.vmem %s0, %s371
        %p373 = pneg %p51
        %p374 = pneg %p48
        %s375 = smul.u32 4, %s30
        %p376 = scmp.lt.s32.totalorder %s375, 7
        %s377 = scalar_select %p376, %s375, 7
        %s378 = smul.addr %s377, 2
        %s379 = smul.addr %s378, 8
        %s380 = scalar_lea.vmem %s1, %s379
        %p381 = pneg %p77
        %p382 = pneg %p74
        %p383 = pneg %p98
        %p384 = pneg %p95
        %p385 = pneg %p119
        %p386 = pneg %p116
        %p387 = pneg %p140
        %p388 = pneg %p137
        %p389 = pneg %p161
        %p390 = pneg %p158
        %p391 = pneg %p182
        %p392 = pneg %p179
        %p393 = pneg %p203
        %p394 = pneg %p200
        %p395 = pneg %p224
        %p396 = pneg %p221
        %p397 = pneg %p250
        %p398 = pneg %p247
        %s399 = sand.u32 %s237, 1
        %s400 = scalar_lea.sflag [#allocation4], %s399
        %s401 = sand.u32 %s237, 1
        %s402 = smul.addr %s401, 4
        %s403 = scalar_lea.vmem [#allocation3], %s402
        %p404 = pneg %p276
        %p405 = pneg %p273
        %s406 = sand.u32 %s263, 1
        %s407 = scalar_lea.sflag [#allocation6], %s406
        %s408 = sand.u32 %s263, 1
        %s409 = smul.addr %s408, 4
        %s410 = scalar_lea.vmem [#allocation5], %s409
        %p411 = pneg %p302
        %p412 = pneg %p299
        %s413 = smul.u32 8, %s30
        %p414 = scmp.lt.s32.totalorder %s413, 15
        %s415 = scalar_select %p414, %s413, 15
        %s416 = smul.addr %s415, 8
        %s417 = scalar_lea.vmem %s11, %s416
        %s418 = smul.u32 8, %s30
        %p419 = scmp.lt.s32.totalorder %s418, 15
        %s420 = scalar_select %p419, %s418, 15
        %s421 = smul.addr %s420, 8
        %s422 = scalar_lea.vmem %s0, %s421
        %s423 = smul.u32 8, %s30
        %s424 = smul.u32 4, %s30
        %p425 = scmp.lt.s32.totalorder %s424, 7
        %s426 = scalar_select %p425, %s424, 7
        %s427 = smul.addr %s426, 2
        %s428 = smul.addr %s427, 8
        %s429 = scalar_lea.vmem %s1, %s428
        %s430 = smul.u32 4, %s30
        %s431 = smul.u32 4, %s30
        %s432 = smul.u32 4, %s30
        %s433 = smul.u32 8, %s30
        %p434 = scmp.lt.s32.totalorder %s433, 15
        %s435 = scalar_select %p434, %s433, 15
        %s436 = smul.addr %s435, 8
        %s437 = scalar_lea.vmem %s11, %s436
        %s438 = smul.u32 8, %s30
        %v439 = vld [vmem:[%s429] sm:$0xff]
        %v440 = vld [vmem:[%s429 + $0x8] sm:$0xff]
        %v441 = vld [vmem:[%s429 + $0x10] sm:$0xff]
        %v442 = vld [vmem:[%s429 + $0x18] sm:$0xff]
        %v443 = vld [vmem:[%s429 + $0x20] sm:$0xff]
        %v444 = vld [vmem:[%s429 + $0x28] sm:$0xff]
        %v445 = vld [vmem:[%s429 + $0x30] sm:$0xff]
        %v446 = vld [vmem:[%s429 + $0x38] sm:$0xff]
        %v447 = vld [vmem:[%s4] sm:$0xff]
        %v448 = vld [vmem:[%s4 + $0x8] sm:$0xff]
        %v449 = vld [vmem:[%s4 + $0x10] sm:$0xff]
        %v450 = vld [vmem:[%s4 + $0x18] sm:$0xff]
        %v451 = vld [vmem:[%s5] sm:$0xff]
        %v452 = vld [vmem:[%s5 + $0x8] sm:$0xff]
        %v453 = vld [vmem:[%s5 + $0x10] sm:$0xff]
        %v454 = vld [vmem:[%s5 + $0x18] sm:$0xff]
        %v455 = vld [vmem:[%s6] sm:$0x1]
        %v456 = vld [vmem:[%s7] sm:$0xff]
        %v457 = vld [vmem:[%s7 + $0x8] sm:$0xff]
        %v458 = vld [vmem:[%s7 + $0x10] sm:$0xff]
        %v459 = vld [vmem:[%s7 + $0x18] sm:$0xff]
        %s460 = sld [smem:[#allocation2]]
        %v461 = vld [vmem:[%s422] sm:$0xff]
        %v462 = vld [vmem:[%s422 + $0x8] sm:$0xff]
        %v463 = vld [vmem:[%s422 + $0x10] sm:$0xff]
        %v464 = vld [vmem:[%s422 + $0x18] sm:$0xff]
        %v465 = vld [vmem:[%s422 + $0x20] sm:$0xff]
        %v466 = vld [vmem:[%s422 + $0x28] sm:$0xff]
        %v467 = vld [vmem:[%s422 + $0x30] sm:$0xff]
        %v468 = vld [vmem:[%s422 + $0x38] sm:$0xff]
        %v469 = vld [vmem:[%s2] sm:$0xff]
        %v470 = vld [vmem:[%s2 + $0x8] sm:$0xff]
        %v471 = vld [vmem:[%s2 + $0x10] sm:$0xff]
        %v472 = vld [vmem:[%s2 + $0x18] sm:$0xff]
        %v473 = vld [vmem:[%s3] sm:$0x1]
        %v475 = vlaneseq
        %v476 = vshrl.u32 %v475, 7
        %v477 = vsub.s32 0, %v476
        %v478 = vrot.slane %v473, %v477
        %vm480 = vcmask 261120
        %v482 = vsel %vm480, %v461, 0
        %v485 = vsel %vm480, %v462, 0
        %v488 = vsel %vm480, %v463, 0
        %v491 = vsel %vm480, %v464, 0
        %v494 = vsel %vm480, %v465, 0
        %v497 = vsel %vm480, %v466, 0
        %v500 = vsel %vm480, %v467, 0
        %v503 = vsel %vm480, %v468, 0
        %505 = vmatprep.subr.mxu0 0.0
        %506 = vmatpush1.msra.mxu0 0.0
        %507 = vmatprep.subr.mxu0 0.0
        %508 = vmatpush1.msra.mxu0 0.0
        %509 = vmatprep.subr.mxu0 0.0
        %510 = vmatpush1.msra.mxu0 0.0
        %511 = vmatprep.subr.mxu0 0.0
        %512 = vmatpush1.msra.mxu0 0.0
        %513 = vmatprep.subr.mxu0 0.0
        %514 = vmatpush1.msra.mxu0 0.0
        %515 = vmatprep.subr.mxu0 0.0
        %516 = vmatpush1.msra.mxu0 0.0
        %517 = vmatprep.subr.mxu0 0.0
        %518 = vmatpush1.msra.mxu0 0.0
        %519 = vmatprep.subr.mxu0 0.0
        %520 = vmatpush1.msra.mxu0 0.0
        %521 = vmatprep.subr.mxu0 0.0
        %522 = vmatpush1.msra.mxu0 0.0
        %523 = vmatprep.subr.mxu0 0.0
        %524 = vmatpush1.msra.mxu0 0.0
        %525 = vmatprep.subr.mxu0 0.0
        %526 = vmatpush1.msra.mxu0 0.0
        %527 = vmatprep.subr.mxu0 0.0
        %528 = vmatpush1.msra.mxu0 0.0
        %529 = vmatprep.subr.mxu0 0.0
        %530 = vmatpush1.msra.mxu0 %v472
        %531 = vmatprep.subr.mxu0 0.0
        %532 = vmatpush1.msra.mxu0 %v471
        %533 = vmatprep.subr.mxu0 0.0
        %534 = vmatpush1.msra.mxu0 %v470
        %535 = vmatprep.subr.mxu0 0.0
        %536 = vmatpush1.msra.mxu0 %v469
        %537 = vmatprep.subr.mxu0 0.0
        %538 = vmatpush2.msra.mxu0 0.0
        %539 = vmatprep.subr.mxu0 0.0
        %540 = vmatpush2.msra.mxu0 0.0
        %541 = vmatprep.subr.mxu0 0.0
        %542 = vmatpush2.msra.mxu0 0.0
        %543 = vmatprep.subr.mxu0 0.0
        %544 = vmatpush2.msra.mxu0 0.0
        %545 = vmatprep.subr.mxu0 0.0
        %546 = vmatpush2.msra.mxu0 0.0
        %547 = vmatprep.subr.mxu0 0.0
        %548 = vmatpush2.msra.mxu0 0.0
        %549 = vmatprep.subr.mxu0 0.0
        %550 = vmatpush2.msra.mxu0 0.0
        %551 = vmatprep.subr.mxu0 0.0
        %552 = vmatpush2.msra.mxu0 0.0
        %553 = vmatprep.subr.mxu0 0.0
        %554 = vmatpush2.msra.mxu0 0.0
        %555 = vmatprep.subr.mxu0 0.0
        %556 = vmatpush2.msra.mxu0 0.0
        %557 = vmatprep.subr.mxu0 0.0
        %558 = vmatpush2.msra.mxu0 0.0
        %559 = vmatprep.subr.mxu0 0.0
        %560 = vmatpush2.msra.mxu0 0.0
        %561 = vmatprep.subr.mxu0 0.0
        %562 = vmatpush2.msra.mxu0 0.0
        %563 = vmatprep.subr.mxu0 0.0
        %564 = vmatpush2.msra.mxu0 0.0
        %565 = vmatprep.subr.mxu0 0.0
        %566 = vmatpush2.msra.mxu0 0.0
        %567 = vmatprep.subr.mxu0 0.0
        %568 = vmatpush2.msra.mxu0 0.0
        %569 = vmatprep.mubr.f32.mxu0 0.0
        %570 = vmatmul.mubr.f32.gmra.mxu0 %v482
        %v571 = vpop.f32.mrf.mxu0
        %v572 = vadd.f32 %v478, %v571
        %v573 = vpop.f32.mrf.mxu0
        %574 = vmatprep.mubr.f32.mxu0 0.0
        %575 = vmatmul.mubr.f32.gmra.mxu0 %v485
        %v576 = vpop.f32.mrf.mxu0
        %v577 = vadd.f32 %v478, %v576
        %v578 = vpop.f32.mrf.mxu0
        %579 = vmatprep.mubr.f32.mxu0 0.0
        %580 = vmatmul.mubr.f32.gmra.mxu0 %v488
        %v581 = vpop.f32.mrf.mxu0
        %v582 = vadd.f32 %v478, %v581
        %v583 = vpop.f32.mrf.mxu0
        %584 = vmatprep.mubr.f32.mxu0 0.0
        %585 = vmatmul.mubr.f32.gmra.mxu0 %v491
        %v586 = vpop.f32.mrf.mxu0
        %v587 = vadd.f32 %v478, %v586
        %v588 = vpop.f32.mrf.mxu0
        %589 = vmatprep.mubr.f32.mxu0 0.0
        %590 = vmatmul.mubr.f32.gmra.mxu0 %v494
        %v591 = vpop.f32.mrf.mxu0
        %v592 = vadd.f32 %v478, %v591
        %v593 = vpop.f32.mrf.mxu0
        %594 = vmatprep.mubr.f32.mxu0 0.0
        %595 = vmatmul.mubr.f32.gmra.mxu0 %v497
        %v596 = vpop.f32.mrf.mxu0
        %v597 = vadd.f32 %v478, %v596
        %v598 = vpop.f32.mrf.mxu0
        %599 = vmatprep.mubr.f32.mxu0 0.0
        %600 = vmatmul.mubr.f32.gmra.mxu0 %v500
        %v601 = vpop.f32.mrf.mxu0
        %v602 = vadd.f32 %v478, %v601
        %v603 = vpop.f32.mrf.mxu0
        %604 = vmatprep.mubr.f32.mxu0 0.0
        %605 = vmatmul.mubr.f32.gmra.mxu0 %v503
        %v606 = vpop.f32.mrf.mxu0
        %v607 = vadd.f32 %v478, %v606
        %v608 = vpop.f32.mrf.mxu0
        %609 = vdwg.mxu0
        %v610 = vmax.f32 %v572, 0.0
        %v611 = vmax.f32 %v577, 0.0
        %v612 = vmax.f32 %v582, 0.0
        %v613 = vmax.f32 %v587, 0.0
        %v614 = vmax.f32 %v592, 0.0
        %v615 = vmax.f32 %v597, 0.0
        %v616 = vmax.f32 %v602, 0.0
        %v617 = vmax.f32 %v607, 0.0
        %619 = vset.pattern.permute.xlu0 1
        %620 = vperm.xlu0 %619, %v439
        %v621 = vpop.permute.xlu0 %620
        %624 = vset.pattern.permute.xlu0 1
        %625 = vperm.xlu0 %624, %v440
        %v626 = vpop.permute.xlu0 %625
        %629 = vset.pattern.permute.xlu0 1
        %630 = vperm.xlu0 %629, %v441
        %v631 = vpop.permute.xlu0 %630
        %634 = vset.pattern.permute.xlu0 1
        %635 = vperm.xlu0 %634, %v442
        %v636 = vpop.permute.xlu0 %635
        %639 = vset.pattern.permute.xlu0 1
        %640 = vperm.xlu0 %639, %v443
        %v641 = vpop.permute.xlu0 %640
        %644 = vset.pattern.permute.xlu0 1
        %645 = vperm.xlu0 %644, %v444
        %v646 = vpop.permute.xlu0 %645
        %649 = vset.pattern.permute.xlu0 1
        %650 = vperm.xlu0 %649, %v445
        %v651 = vpop.permute.xlu0 %650
        %654 = vset.pattern.permute.xlu0 1
        %655 = vperm.xlu0 %654, %v446
        %v656 = vpop.permute.xlu0 %655
        %v658 = vmul.f32 %v621, %v610
        %v659 = vmul.f32 %v626, %v611
        %v660 = vmul.f32 %v631, %v612
        %v661 = vmul.f32 %v636, %v613
        %v662 = vmul.f32 %v641, %v614
        %v663 = vmul.f32 %v646, %v615
        %v664 = vmul.f32 %v651, %v616
        %v665 = vmul.f32 %v656, %v617
        %v666 = vsel %vm480, %v658, 0.0
        %v667 = vsel %vm480, %v659, 0.0
        %v668 = vadd.f32 %v666, %v667
        %v669 = vrot.slane %v668, 4
        %v670 = vadd.f32 %v668, %v669
        %v671 = vrot.slane %v670, 2
        %v672 = vadd.f32 %v670, %v671
        %v673 = vrot.slane %v672, 1
        %v674 = vadd.f32 %v672, %v673
        %v675 = vsel %vm480, %v660, 0.0
        %v676 = vsel %vm480, %v661, 0.0
        %v677 = vadd.f32 %v675, %v676
        %v678 = vrot.slane %v677, 4
        %v679 = vadd.f32 %v677, %v678
        %v680 = vrot.slane %v679, 2
        %v681 = vadd.f32 %v679, %v680
        %v682 = vrot.slane %v681, 1
        %v683 = vadd.f32 %v681, %v682
        %v684 = vsel %vm480, %v662, 0.0
        %v685 = vsel %vm480, %v663, 0.0
        %v686 = vadd.f32 %v684, %v685
        %v687 = vrot.slane %v686, 4
        %v688 = vadd.f32 %v686, %v687
        %v689 = vrot.slane %v688, 2
        %v690 = vadd.f32 %v688, %v689
        %v691 = vrot.slane %v690, 1
        %v692 = vadd.f32 %v690, %v691
        %v693 = vsel %vm480, %v664, 0.0
        %v694 = vsel %vm480, %v665, 0.0
        %v695 = vadd.f32 %v693, %v694
        %v696 = vrot.slane %v695, 4
        %v697 = vadd.f32 %v695, %v696
        %v698 = vrot.slane %v697, 2
        %v699 = vadd.f32 %v697, %v698
        %v700 = vrot.slane %v699, 1
        %v701 = vadd.f32 %v699, %v700
        %710 = vrot.lane.b32.xlu0 %v610, 96
        %v711 = vpop.permute.xlu0 %710
        %712 = vrot.lane.b32.xlu0 %v611, 96
        %v713 = vpop.permute.xlu0 %712
        %714 = vrot.lane.b32.xlu0 %v612, 96
        %v715 = vpop.permute.xlu0 %714
        %716 = vrot.lane.b32.xlu0 %v613, 96
        %v717 = vpop.permute.xlu0 %716
        %718 = vrot.lane.b32.xlu0 %v614, 96
        %v719 = vpop.permute.xlu0 %718
        %720 = vrot.lane.b32.xlu0 %v615, 96
        %v721 = vpop.permute.xlu0 %720
        %722 = vrot.lane.b32.xlu0 %v616, 96
        %v723 = vpop.permute.xlu0 %722
        %724 = vrot.lane.b32.xlu0 %v617, 96
        %v725 = vpop.permute.xlu0 %724
        %v726 = vsel %vm480, %v610, 0
        %v728 = vsel %vm480, %v611, 0
        %v730 = vsel %vm480, %v612, 0
        %v732 = vsel %vm480, %v613, 0
        %v734 = vsel %vm480, %v614, 0
        %v736 = vsel %vm480, %v615, 0
        %v738 = vsel %vm480, %v616, 0
        %v740 = vsel %vm480, %v617, 0
        %v742 = vsel %vm480, %v711, 0
        %v744 = vsel %vm480, %v713, 0
        %v746 = vsel %vm480, %v715, 0
        %v748 = vsel %vm480, %v717, 0
        %v750 = vsel %vm480, %v719, 0
        %v752 = vsel %vm480, %v721, 0
        %v754 = vsel %vm480, %v723, 0
        %v756 = vsel %vm480, %v725, 0
        %758 = vmatprep.subr.mxu0 0.0
        %759 = vmatpush1.msra.mxu0 0.0
        %760 = vmatprep.subr.mxu0 0.0
        %761 = vmatpush1.msra.mxu0 0.0
        %762 = vmatprep.subr.mxu0 0.0
        %763 = vmatpush1.msra.mxu0 0.0
        %764 = vmatprep.subr.mxu0 0.0
        %765 = vmatpush1.msra.mxu0 0.0
        %766 = vmatprep.subr.mxu0 0.0
        %767 = vmatpush1.msra.mxu0 0.0
        %768 = vmatprep.subr.mxu0 0.0
        %769 = vmatpush1.msra.mxu0 0.0
        %770 = vmatprep.subr.mxu0 0.0
        %771 = vmatpush1.msra.mxu0 0.0
        %772 = vmatprep.subr.mxu0 0.0
        %773 = vmatpush1.msra.mxu0 0.0
        %774 = vmatprep.subr.mxu0 0.0
        %775 = vmatpush1.msra.mxu0 0.0
        %776 = vmatprep.subr.mxu0 0.0
        %777 = vmatpush1.msra.mxu0 0.0
        %778 = vmatprep.subr.mxu0 0.0
        %779 = vmatpush1.msra.mxu0 0.0
        %780 = vmatprep.subr.mxu0 0.0
        %781 = vmatpush1.msra.mxu0 0.0
        %782 = vmatprep.subr.mxu0 0.0
        %783 = vmatpush1.msra.mxu0 %v454
        %784 = vmatprep.subr.mxu0 0.0
        %785 = vmatpush1.msra.mxu0 %v453
        %786 = vmatprep.subr.mxu0 0.0
        %787 = vmatpush1.msra.mxu0 %v452
        %788 = vmatprep.subr.mxu0 0.0
        %789 = vmatpush1.msra.mxu0 %v451
        %790 = vmatprep.subr.mxu0 0.0
        %791 = vmatpush2.msra.mxu0 0.0
        %792 = vmatprep.subr.mxu0 0.0
        %793 = vmatpush2.msra.mxu0 0.0
        %794 = vmatprep.subr.mxu0 0.0
        %795 = vmatpush2.msra.mxu0 0.0
        %796 = vmatprep.subr.mxu0 0.0
        %797 = vmatpush2.msra.mxu0 0.0
        %798 = vmatprep.subr.mxu0 0.0
        %799 = vmatpush2.msra.mxu0 0.0
        %800 = vmatprep.subr.mxu0 0.0
        %801 = vmatpush2.msra.mxu0 0.0
        %802 = vmatprep.subr.mxu0 0.0
        %803 = vmatpush2.msra.mxu0 0.0
        %804 = vmatprep.subr.mxu0 0.0
        %805 = vmatpush2.msra.mxu0 0.0
        %806 = vmatprep.subr.mxu0 0.0
        %807 = vmatpush2.msra.mxu0 0.0
        %808 = vmatprep.subr.mxu0 0.0
        %809 = vmatpush2.msra.mxu0 0.0
        %810 = vmatprep.subr.mxu0 0.0
        %811 = vmatpush2.msra.mxu0 0.0
        %812 = vmatprep.subr.mxu0 0.0
        %813 = vmatpush2.msra.mxu0 0.0
        %814 = vmatprep.subr.mxu0 0.0
        %815 = vmatpush2.msra.mxu0 0.0
        %816 = vmatprep.subr.mxu0 0.0
        %817 = vmatpush2.msra.mxu0 0.0
        %818 = vmatprep.subr.mxu0 0.0
        %819 = vmatpush2.msra.mxu0 0.0
        %820 = vmatprep.subr.mxu0 0.0
        %821 = vmatpush2.msra.mxu0 0.0
        %822 = vmatprep.mubr.f32.mxu0 0.0
        %823 = vmatmul.mubr.f32.gmra.mxu0 %v726
        %v824 = vpop.f32.mrf.mxu0
        %v825 = vadd.f32 0.0, %v824
        %v826 = vpop.f32.mrf.mxu0
        %827 = vmatprep.mubr.f32.mxu0 0.0
        %828 = vmatmul.mubr.f32.gmra.mxu0 %v728
        %v829 = vpop.f32.mrf.mxu0
        %v830 = vadd.f32 0.0, %v829
        %v831 = vpop.f32.mrf.mxu0
        %832 = vmatprep.mubr.f32.mxu0 0.0
        %833 = vmatmul.mubr.f32.gmra.mxu0 %v730
        %v834 = vpop.f32.mrf.mxu0
        %v835 = vadd.f32 0.0, %v834
        %v836 = vpop.f32.mrf.mxu0
        %837 = vmatprep.mubr.f32.mxu0 0.0
        %838 = vmatmul.mubr.f32.gmra.mxu0 %v732
        %v839 = vpop.f32.mrf.mxu0
        %v840 = vadd.f32 0.0, %v839
        %v841 = vpop.f32.mrf.mxu0
        %842 = vmatprep.mubr.f32.mxu0 0.0
        %843 = vmatmul.mubr.f32.gmra.mxu0 %v734
        %v844 = vpop.f32.mrf.mxu0
        %v845 = vadd.f32 0.0, %v844
        %v846 = vpop.f32.mrf.mxu0
        %847 = vmatprep.mubr.f32.mxu0 0.0
        %848 = vmatmul.mubr.f32.gmra.mxu0 %v736
        %v849 = vpop.f32.mrf.mxu0
        %v850 = vadd.f32 0.0, %v849
        %v851 = vpop.f32.mrf.mxu0
        %852 = vmatprep.mubr.f32.mxu0 0.0
        %853 = vmatmul.mubr.f32.gmra.mxu0 %v738
        %v854 = vpop.f32.mrf.mxu0
        %v855 = vadd.f32 0.0, %v854
        %v856 = vpop.f32.mrf.mxu0
        %857 = vmatprep.mubr.f32.mxu0 0.0
        %858 = vmatmul.mubr.f32.gmra.mxu0 %v740
        %v859 = vpop.f32.mrf.mxu0
        %v860 = vadd.f32 0.0, %v859
        %v861 = vpop.f32.mrf.mxu0
        %862 = vmatprep.mubr.f32.mxu0 0.0
        %863 = vmatmul.mubr.f32.gmra.mxu0 %v742
        %v864 = vpop.f32.mrf.mxu0
        %v865 = vadd.f32 0.0, %v864
        %v866 = vpop.f32.mrf.mxu0
        %867 = vmatprep.mubr.f32.mxu0 0.0
        %868 = vmatmul.mubr.f32.gmra.mxu0 %v744
        %v869 = vpop.f32.mrf.mxu0
        %v870 = vadd.f32 0.0, %v869
        %v871 = vpop.f32.mrf.mxu0
        %872 = vmatprep.mubr.f32.mxu0 0.0
        %873 = vmatmul.mubr.f32.gmra.mxu0 %v746
        %v874 = vpop.f32.mrf.mxu0
        %v875 = vadd.f32 0.0, %v874
        %v876 = vpop.f32.mrf.mxu0
        %877 = vmatprep.mubr.f32.mxu0 0.0
        %878 = vmatmul.mubr.f32.gmra.mxu0 %v748
        %v879 = vpop.f32.mrf.mxu0
        %v880 = vadd.f32 0.0, %v879
        %v881 = vpop.f32.mrf.mxu0
        %882 = vmatprep.mubr.f32.mxu0 0.0
        %883 = vmatmul.mubr.f32.gmra.mxu0 %v750
        %v884 = vpop.f32.mrf.mxu0
        %v885 = vadd.f32 0.0, %v884
        %v886 = vpop.f32.mrf.mxu0
        %887 = vmatprep.mubr.f32.mxu0 0.0
        %888 = vmatmul.mubr.f32.gmra.mxu0 %v752
        %v889 = vpop.f32.mrf.mxu0
        %v890 = vadd.f32 0.0, %v889
        %v891 = vpop.f32.mrf.mxu0
        %892 = vmatprep.mubr.f32.mxu0 0.0
        %893 = vmatmul.mubr.f32.gmra.mxu0 %v754
        %v894 = vpop.f32.mrf.mxu0
        %v895 = vadd.f32 0.0, %v894
        %v896 = vpop.f32.mrf.mxu0
        %897 = vmatprep.mubr.f32.mxu0 0.0
        %898 = vmatmul.mubr.f32.gmra.mxu0 %v756
        %v899 = vpop.f32.mrf.mxu0
        %v900 = vadd.f32 0.0, %v899
        %v901 = vpop.f32.mrf.mxu0
        %902 = vdwg.mxu0
        %vm907 = vcmask 1041409
        %v908 = vsel %vm907, %v683, %v674
        %vm909 = vcmask 1042434
        %v910 = vsel %vm909, %v692, %v908
        %vm911 = vcmask 1043459
        %v912 = vsel %vm911, %v701, %v910
        %v913 = vsel %vm480, %v912, 0
        %915 = vmatprep.subr.mxu0 0.0
        %916 = vmatpush1.msra.mxu0 0.0
        %917 = vmatprep.subr.mxu0 0.0
        %918 = vmatpush1.msra.mxu0 0.0
        %919 = vmatprep.subr.mxu0 0.0
        %920 = vmatpush1.msra.mxu0 0.0
        %921 = vmatprep.subr.mxu0 0.0
        %922 = vmatpush1.msra.mxu0 0.0
        %923 = vmatprep.subr.mxu0 0.0
        %924 = vmatpush1.msra.mxu0 0.0
        %925 = vmatprep.subr.mxu0 0.0
        %926 = vmatpush1.msra.mxu0 0.0
        %927 = vmatprep.subr.mxu0 0.0
        %928 = vmatpush1.msra.mxu0 0.0
        %929 = vmatprep.subr.mxu0 0.0
        %930 = vmatpush1.msra.mxu0 0.0
        %931 = vmatprep.subr.mxu0 0.0
        %932 = vmatpush1.msra.mxu0 0.0
        %933 = vmatprep.subr.mxu0 0.0
        %934 = vmatpush1.msra.mxu0 0.0
        %935 = vmatprep.subr.mxu0 0.0
        %936 = vmatpush1.msra.mxu0 0.0
        %937 = vmatprep.subr.mxu0 0.0
        %938 = vmatpush1.msra.mxu0 0.0
        %939 = vmatprep.subr.mxu0 0.0
        %940 = vmatpush1.msra.mxu0 %v450
        %941 = vmatprep.subr.mxu0 0.0
        %942 = vmatpush1.msra.mxu0 %v449
        %943 = vmatprep.subr.mxu0 0.0
        %944 = vmatpush1.msra.mxu0 %v448
        %945 = vmatprep.subr.mxu0 0.0
        %946 = vmatpush1.msra.mxu0 %v447
        %947 = vmatprep.subr.mxu0 0.0
        %948 = vmatpush2.msra.mxu0 0.0
        %949 = vmatprep.subr.mxu0 0.0
        %950 = vmatpush2.msra.mxu0 0.0
        %951 = vmatprep.subr.mxu0 0.0
        %952 = vmatpush2.msra.mxu0 0.0
        %953 = vmatprep.subr.mxu0 0.0
        %954 = vmatpush2.msra.mxu0 0.0
        %955 = vmatprep.subr.mxu0 0.0
        %956 = vmatpush2.msra.mxu0 0.0
        %957 = vmatprep.subr.mxu0 0.0
        %958 = vmatpush2.msra.mxu0 0.0
        %959 = vmatprep.subr.mxu0 0.0
        %960 = vmatpush2.msra.mxu0 0.0
        %961 = vmatprep.subr.mxu0 0.0
        %962 = vmatpush2.msra.mxu0 0.0
        %963 = vmatprep.subr.mxu0 0.0
        %964 = vmatpush2.msra.mxu0 0.0
        %965 = vmatprep.subr.mxu0 0.0
        %966 = vmatpush2.msra.mxu0 0.0
        %967 = vmatprep.subr.mxu0 0.0
        %968 = vmatpush2.msra.mxu0 0.0
        %969 = vmatprep.subr.mxu0 0.0
        %970 = vmatpush2.msra.mxu0 0.0
        %971 = vmatprep.subr.mxu0 0.0
        %972 = vmatpush2.msra.mxu0 0.0
        %973 = vmatprep.subr.mxu0 0.0
        %974 = vmatpush2.msra.mxu0 0.0
        %975 = vmatprep.subr.mxu0 0.0
        %976 = vmatpush2.msra.mxu0 0.0
        %977 = vmatprep.subr.mxu0 0.0
        %978 = vmatpush2.msra.mxu0 0.0
        %979 = vmatprep.mubr.f32.mxu0 0.0
        %980 = vmatmul.mubr.f32.gmra.mxu0 %v913
        %v981 = vpop.f32.mrf.mxu0
        %v982 = vadd.f32 0.0, %v981
        %v983 = vpop.f32.mrf.mxu0
        %984 = vdwg.mxu0
        %v987 = vunpack.c.l.s4 1966171168
        %v988 = vunpack.c.0.s8 %v987
        %v989 = vlaneseq
        %v990 = vshrl.u32 %v989, 7
        %v991 = vsub.s32 %v988, %v990
        %v992 = vrot.slane %v982, %v991
        %v993 = vcombine.high %v992, %v992
        %v995 = vunpack.c.l.s4 1966171168
        %v996 = vunpack.c.0.s8 %v995
        %v997 = vlaneseq
        %v998 = vshrl.u32 %v997, 7
        %v999 = vsub.s32 %v996, %v998
        %v1000 = vrot.slane %v992, %v999
        %v1002 = vunpack.c.l.s4 1966171168
        %v1003 = vunpack.c.0.s8 %v1002
        %v1004 = vlaneseq
        %v1005 = vshrl.u32 %v1004, 7
        %v1006 = vsub.s32 %v1003, %v1005
        %v1007 = vrot.slane %v993, %v1006
        %v1008 = vcombine.high %v1000, %v1000
        %v1009 = vcombine.high %v1007, %v1007
        %v1010 = vlaneseq
        %v1011 = vshrl.u32 %v1010, 7
        %v1012 = vsub.s32 0, %v1011
        %v1013 = vrot.slane %v1000, %v1012
        %v1014 = vlaneseq
        %v1015 = vshrl.u32 %v1014, 7
        %v1016 = vsub.s32 0, %v1015
        %v1017 = vrot.slane %v1007, %v1016
        %v1018 = vlaneseq
        %v1019 = vshrl.u32 %v1018, 7
        %v1020 = vsub.s32 0, %v1019
        %v1021 = vrot.slane %v1008, %v1020
        %v1022 = vlaneseq
        %v1023 = vshrl.u32 %v1022, 7
        %v1024 = vsub.s32 0, %v1023
        %v1025 = vrot.slane %v1009, %v1024
        %v1030 = vadd.f32 %v1013, %v825
        %v1031 = vadd.f32 %v1013, %v830
        %v1032 = vadd.f32 %v1017, %v835
        %v1033 = vadd.f32 %v1017, %v840
        %v1034 = vadd.f32 %v1021, %v845
        %v1035 = vadd.f32 %v1021, %v850
        %v1036 = vadd.f32 %v1025, %v855
        %v1037 = vadd.f32 %v1025, %v860
        %v1039 = vlaneseq
        %v1040 = vshrl.u32 %v1039, 7
        %v1041 = vsub.s32 0, %v1040
        %v1042 = vrot.slane %v455, %v1041
        %v1044 = vadd.f32 %v1030, %v1042
        %v1045 = vadd.f32 %v1031, %v1042
        %v1046 = vadd.f32 %v1032, %v1042
        %v1047 = vadd.f32 %v1033, %v1042
        %v1048 = vadd.f32 %v1034, %v1042
        %v1049 = vadd.f32 %v1035, %v1042
        %v1050 = vadd.f32 %v1036, %v1042
        %v1051 = vadd.f32 %v1037, %v1042
        %v1052 = vtanh.pop %v1044
        %v1053 = vtanh.pop %v1045
        %v1054 = vtanh.pop %v1046
        %v1055 = vtanh.pop %v1047
        %v1056 = vtanh.pop %v1048
        %v1057 = vtanh.pop %v1049
        %v1058 = vtanh.pop %v1050
        %v1059 = vtanh.pop %v1051
        %v1061 = vsel %vm480, %v1052, 0
        %v1064 = vsel %vm480, %v1053, 0
        %v1067 = vsel %vm480, %v1054, 0
        %v1070 = vsel %vm480, %v1055, 0
        %v1073 = vsel %vm480, %v1056, 0
        %v1076 = vsel %vm480, %v1057, 0
        %v1079 = vsel %vm480, %v1058, 0
        %v1082 = vsel %vm480, %v1059, 0
        %1084 = vmatprep.subr.mxu0 0.0
        %1085 = vmatpush1.msra.mxu0 0.0
        %1086 = vmatprep.subr.mxu0 0.0
        %1087 = vmatpush1.msra.mxu0 0.0
        %1088 = vmatprep.subr.mxu0 0.0
        %1089 = vmatpush1.msra.mxu0 0.0
        %1090 = vmatprep.subr.mxu0 0.0
        %1091 = vmatpush1.msra.mxu0 0.0
        %1092 = vmatprep.subr.mxu0 0.0
        %1093 = vmatpush1.msra.mxu0 0.0
        %1094 = vmatprep.subr.mxu0 0.0
        %1095 = vmatpush1.msra.mxu0 0.0
        %1096 = vmatprep.subr.mxu0 0.0
        %1097 = vmatpush1.msra.mxu0 0.0
        %1098 = vmatprep.subr.mxu0 0.0
        %1099 = vmatpush1.msra.mxu0 0.0
        %1100 = vmatprep.subr.mxu0 0.0
        %1101 = vmatpush1.msra.mxu0 0.0
        %1102 = vmatprep.subr.mxu0 0.0
        %1103 = vmatpush1.msra.mxu0 0.0
        %1104 = vmatprep.subr.mxu0 0.0
        %1105 = vmatpush1.msra.mxu0 0.0
        %1106 = vmatprep.subr.mxu0 0.0
        %1107 = vmatpush1.msra.mxu0 0.0
        %1108 = vmatprep.subr.mxu0 0.0
        %1109 = vmatpush1.msra.mxu0 %v459
        %1110 = vmatprep.subr.mxu0 0.0
        %1111 = vmatpush1.msra.mxu0 %v458
        %1112 = vmatprep.subr.mxu0 0.0
        %1113 = vmatpush1.msra.mxu0 %v457
        %1114 = vmatprep.subr.mxu0 0.0
        %1115 = vmatpush1.msra.mxu0 %v456
        %1116 = vmatprep.subr.mxu0 0.0
        %1117 = vmatpush2.msra.mxu0 0.0
        %1118 = vmatprep.subr.mxu0 0.0
        %1119 = vmatpush2.msra.mxu0 0.0
        %1120 = vmatprep.subr.mxu0 0.0
        %1121 = vmatpush2.msra.mxu0 0.0
        %1122 = vmatprep.subr.mxu0 0.0
        %1123 = vmatpush2.msra.mxu0 0.0
        %1124 = vmatprep.subr.mxu0 0.0
        %1125 = vmatpush2.msra.mxu0 0.0
        %1126 = vmatprep.subr.mxu0 0.0
        %1127 = vmatpush2.msra.mxu0 0.0
        %1128 = vmatprep.subr.mxu0 0.0
        %1129 = vmatpush2.msra.mxu0 0.0
        %1130 = vmatprep.subr.mxu0 0.0
        %1131 = vmatpush2.msra.mxu0 0.0
        %1132 = vmatprep.subr.mxu0 0.0
        %1133 = vmatpush2.msra.mxu0 0.0
        %1134 = vmatprep.subr.mxu0 0.0
        %1135 = vmatpush2.msra.mxu0 0.0
        %1136 = vmatprep.subr.mxu0 0.0
        %1137 = vmatpush2.msra.mxu0 0.0
        %1138 = vmatprep.subr.mxu0 0.0
        %1139 = vmatpush2.msra.mxu0 0.0
        %1140 = vmatprep.subr.mxu0 0.0
        %1141 = vmatpush2.msra.mxu0 0.0
        %1142 = vmatprep.subr.mxu0 0.0
        %1143 = vmatpush2.msra.mxu0 0.0
        %1144 = vmatprep.subr.mxu0 0.0
        %1145 = vmatpush2.msra.mxu0 0.0
        %1146 = vmatprep.subr.mxu0 0.0
        %1147 = vmatpush2.msra.mxu0 0.0
        %1148 = vmatprep.mubr.f32.mxu0 0.0
        %1149 = vmatmul.mubr.f32.gmra.mxu0 %v1061
        %v1150 = vpop.f32.mrf.mxu0
        %v1151 = vadd.f32 0.0, %v1150
        %v1152 = vpop.f32.mrf.mxu0
        %1153 = vmatprep.mubr.f32.mxu0 0.0
        %1154 = vmatmul.mubr.f32.gmra.mxu0 %v1064
        %v1155 = vpop.f32.mrf.mxu0
        %v1156 = vadd.f32 0.0, %v1155
        %v1157 = vpop.f32.mrf.mxu0
        %1158 = vmatprep.mubr.f32.mxu0 0.0
        %1159 = vmatmul.mubr.f32.gmra.mxu0 %v1067
        %v1160 = vpop.f32.mrf.mxu0
        %v1161 = vadd.f32 0.0, %v1160
        %v1162 = vpop.f32.mrf.mxu0
        %1163 = vmatprep.mubr.f32.mxu0 0.0
        %1164 = vmatmul.mubr.f32.gmra.mxu0 %v1070
        %v1165 = vpop.f32.mrf.mxu0
        %v1166 = vadd.f32 0.0, %v1165
        %v1167 = vpop.f32.mrf.mxu0
        %1168 = vmatprep.mubr.f32.mxu0 0.0
        %1169 = vmatmul.mubr.f32.gmra.mxu0 %v1073
        %v1170 = vpop.f32.mrf.mxu0
        %v1171 = vadd.f32 0.0, %v1170
        %v1172 = vpop.f32.mrf.mxu0
        %1173 = vmatprep.mubr.f32.mxu0 0.0
        %1174 = vmatmul.mubr.f32.gmra.mxu0 %v1076
        %v1175 = vpop.f32.mrf.mxu0
        %v1176 = vadd.f32 0.0, %v1175
        %v1177 = vpop.f32.mrf.mxu0
        %1178 = vmatprep.mubr.f32.mxu0 0.0
        %1179 = vmatmul.mubr.f32.gmra.mxu0 %v1079
        %v1180 = vpop.f32.mrf.mxu0
        %v1181 = vadd.f32 0.0, %v1180
        %v1182 = vpop.f32.mrf.mxu0
        %1183 = vmatprep.mubr.f32.mxu0 0.0
        %1184 = vmatmul.mubr.f32.gmra.mxu0 %v1082
        %v1185 = vpop.f32.mrf.mxu0
        %v1186 = vadd.f32 0.0, %v1185
        %v1187 = vpop.f32.mrf.mxu0
        %1188 = vdwg.mxu0
        %v1189 = vadd.f32 %v1151, %v439
        %v1190 = vadd.f32 %v1156, %v440
        %v1191 = vadd.f32 %v1161, %v441
        %v1192 = vadd.f32 %v1166, %v442
        %v1193 = vadd.f32 %v1171, %v443
        %v1194 = vadd.f32 %v1176, %v444
        %v1195 = vadd.f32 %v1181, %v445
        %v1196 = vadd.f32 %v1186, %v446
        %vm1197 = vcmask 7168
        %v1198 = vsel %vm1197, %v1189, -inf
        %v1199 = vsel %vm1197, %v1190, -inf
        %v1200 = vmax.f32 %v1198, %v1199
        %v1201 = vrot.slane %v1200, 4
        %v1202 = vmax.f32 %v1200, %v1201
        %v1203 = vrot.slane %v1202, 2
        %v1204 = vmax.f32 %v1202, %v1203
        %v1205 = vrot.slane %v1204, 1
        %v1206 = vmax.f32 %v1204, %v1205
        %v1207 = vsel %vm1197, %v1191, -inf
        %v1208 = vsel %vm1197, %v1192, -inf
        %v1209 = vmax.f32 %v1207, %v1208
        %v1210 = vrot.slane %v1209, 4
        %v1211 = vmax.f32 %v1209, %v1210
        %v1212 = vrot.slane %v1211, 2
        %v1213 = vmax.f32 %v1211, %v1212
        %v1214 = vrot.slane %v1213, 1
        %v1215 = vmax.f32 %v1213, %v1214
        %v1216 = vsel %vm1197, %v1193, -inf
        %v1217 = vsel %vm1197, %v1194, -inf
        %v1218 = vmax.f32 %v1216, %v1217
        %v1219 = vrot.slane %v1218, 4
        %v1220 = vmax.f32 %v1218, %v1219
        %v1221 = vrot.slane %v1220, 2
        %v1222 = vmax.f32 %v1220, %v1221
        %v1223 = vrot.slane %v1222, 1
        %v1224 = vmax.f32 %v1222, %v1223
        %v1225 = vsel %vm1197, %v1195, -inf
        %v1226 = vsel %vm1197, %v1196, -inf
        %v1227 = vmax.f32 %v1225, %v1226
        %v1228 = vrot.slane %v1227, 4
        %v1229 = vmax.f32 %v1227, %v1228
        %v1230 = vrot.slane %v1229, 2
        %v1231 = vmax.f32 %v1229, %v1230
        %v1232 = vrot.slane %v1231, 1
        %v1233 = vmax.f32 %v1231, %v1232
        %v1234 = vsub.f32 %v1189, %v1206
        %v1235 = vsub.f32 %v1190, %v1206
        %v1236 = vsub.f32 %v1191, %v1215
        %v1237 = vsub.f32 %v1192, %v1215
        %v1238 = vsub.f32 %v1193, %v1224
        %v1239 = vsub.f32 %v1194, %v1224
        %v1240 = vsub.f32 %v1195, %v1233
        %v1241 = vsub.f32 %v1196, %v1233
        %v1242 = vmul.f32 %v1234, 1.442695
        %v1243 = vpow.pop %v1242
        %v1244 = vmul.f32 %v1235, 1.442695
        %v1245 = vpow.pop %v1244
        %v1246 = vmul.f32 %v1236, 1.442695
        %v1247 = vpow.pop %v1246
        %v1248 = vmul.f32 %v1237, 1.442695
        %v1249 = vpow.pop %v1248
        %v1250 = vmul.f32 %v1238, 1.442695
        %v1251 = vpow.pop %v1250
        %v1252 = vmul.f32 %v1239, 1.442695
        %v1253 = vpow.pop %v1252
        %v1254 = vmul.f32 %v1240, 1.442695
        %v1255 = vpow.pop %v1254
        %v1256 = vmul.f32 %v1241, 1.442695
        %v1257 = vpow.pop %v1256
        %v1258 = vsel %vm1197, %v1243, 0.0
        %v1259 = vsel %vm1197, %v1245, 0.0
        %v1260 = vadd.f32 %v1258, %v1259
        %v1261 = vrot.slane %v1260, 4
        %v1262 = vadd.f32 %v1260, %v1261
        %v1263 = vrot.slane %v1262, 2
        %v1264 = vadd.f32 %v1262, %v1263
        %v1265 = vrot.slane %v1264, 1
        %v1266 = vadd.f32 %v1264, %v1265
        %v1267 = vsel %vm1197, %v1247, 0.0
        %v1268 = vsel %vm1197, %v1249, 0.0
        %v1269 = vadd.f32 %v1267, %v1268
        %v1270 = vrot.slane %v1269, 4
        %v1271 = vadd.f32 %v1269, %v1270
        %v1272 = vrot.slane %v1271, 2
        %v1273 = vadd.f32 %v1271, %v1272
        %v1274 = vrot.slane %v1273, 1
        %v1275 = vadd.f32 %v1273, %v1274
        %v1276 = vsel %vm1197, %v1251, 0.0
        %v1277 = vsel %vm1197, %v1253, 0.0
        %v1278 = vadd.f32 %v1276, %v1277
        %v1279 = vrot.slane %v1278, 4
        %v1280 = vadd.f32 %v1278, %v1279
        %v1281 = vrot.slane %v1280, 2
        %v1282 = vadd.f32 %v1280, %v1281
        %v1283 = vrot.slane %v1282, 1
        %v1284 = vadd.f32 %v1282, %v1283
        %v1285 = vsel %vm1197, %v1255, 0.0
        %v1286 = vsel %vm1197, %v1257, 0.0
        %v1287 = vadd.f32 %v1285, %v1286
        %v1288 = vrot.slane %v1287, 4
        %v1289 = vadd.f32 %v1287, %v1288
        %v1290 = vrot.slane %v1289, 2
        %v1291 = vadd.f32 %v1289, %v1290
        %v1292 = vrot.slane %v1291, 1
        %v1293 = vadd.f32 %v1291, %v1292
        %v1294 = vrcp.pop %v1266
        %v1295 = vrcp.pop %v1275
        %v1296 = vrcp.pop %v1284
        %v1297 = vrcp.pop %v1293
        %v1298 = vmul.f32 %v1243, %v1294
        %v1299 = vmul.f32 %v1245, %v1294
        %v1300 = vmul.f32 %v1247, %v1295
        %v1301 = vmul.f32 %v1249, %v1295
        %v1302 = vmul.f32 %v1251, %v1296
        %v1303 = vmul.f32 %v1253, %v1296
        %v1304 = vmul.f32 %v1255, %v1297
        %v1305 = vmul.f32 %v1257, %v1297
        %1307 = vset.pattern.permute.xlu0 0
        %1308 = vperm.xlu0 %1307, %v1298
        %v1309 = vpop.permute.xlu0 %1308
        %1312 = vset.pattern.permute.xlu0 0
        %1313 = vperm.xlu0 %1312, %v1299
        %v1314 = vpop.permute.xlu0 %1313
        %1317 = vset.pattern.permute.xlu0 0
        %1318 = vperm.xlu0 %1317, %v1300
        %v1319 = vpop.permute.xlu0 %1318
        %1322 = vset.pattern.permute.xlu0 0
        %1323 = vperm.xlu0 %1322, %v1301
        %v1324 = vpop.permute.xlu0 %1323
        %1327 = vset.pattern.permute.xlu0 0
        %1328 = vperm.xlu0 %1327, %v1302
        %v1329 = vpop.permute.xlu0 %1328
        %1332 = vset.pattern.permute.xlu0 0
        %1333 = vperm.xlu0 %1332, %v1303
        %v1334 = vpop.permute.xlu0 %1333
        %1337 = vset.pattern.permute.xlu0 0
        %1338 = vperm.xlu0 %1337, %v1304
        %v1339 = vpop.permute.xlu0 %1338
        %1342 = vset.pattern.permute.xlu0 0
        %1343 = vperm.xlu0 %1342, %v1305
        %v1344 = vpop.permute.xlu0 %1343
        %v1346 = vmul.f32 %v1309, %v610
        %v1347 = vmul.f32 %v1314, %v611
        %v1348 = vmul.f32 %v1319, %v612
        %v1349 = vmul.f32 %v1324, %v613
        %v1350 = vmul.f32 %v1329, %v614
        %v1351 = vmul.f32 %v1334, %v615
        %v1352 = vmul.f32 %v1339, %v616
        %v1353 = vmul.f32 %v1344, %v617
        %v1354 = vsel %vm480, %v1346, 0.0
        %v1355 = vsel %vm480, %v1347, 0.0
        %v1356 = vadd.f32 %v1354, %v1355
        %v1357 = vrot.slane %v1356, 4
        %v1358 = vadd.f32 %v1356, %v1357
        %v1359 = vrot.slane %v1358, 2
        %v1360 = vadd.f32 %v1358, %v1359
        %v1361 = vrot.slane %v1360, 1
        %v1362 = vadd.f32 %v1360, %v1361
        %v1363 = vsel %vm480, %v1348, 0.0
        %v1364 = vsel %vm480, %v1349, 0.0
        %v1365 = vadd.f32 %v1363, %v1364
        %v1366 = vrot.slane %v1365, 4
        %v1367 = vadd.f32 %v1365, %v1366
        %v1368 = vrot.slane %v1367, 2
        %v1369 = vadd.f32 %v1367, %v1368
        %v1370 = vrot.slane %v1369, 1
        %v1371 = vadd.f32 %v1369, %v1370
        %v1372 = vsel %vm480, %v1350, 0.0
        %v1373 = vsel %vm480, %v1351, 0.0
        %v1374 = vadd.f32 %v1372, %v1373
        %v1375 = vrot.slane %v1374, 4
        %v1376 = vadd.f32 %v1374, %v1375
        %v1377 = vrot.slane %v1376, 2
        %v1378 = vadd.f32 %v1376, %v1377
        %v1379 = vrot.slane %v1378, 1
        %v1380 = vadd.f32 %v1378, %v1379
        %v1381 = vsel %vm480, %v1352, 0.0
        %v1382 = vsel %vm480, %v1353, 0.0
        %v1383 = vadd.f32 %v1381, %v1382
        %v1384 = vrot.slane %v1383, 4
        %v1385 = vadd.f32 %v1383, %v1384
        %v1386 = vrot.slane %v1385, 2
        %v1387 = vadd.f32 %v1385, %v1386
        %v1388 = vrot.slane %v1387, 1
        %v1389 = vadd.f32 %v1387, %v1388
        %vm1390 = vcmask 253952
        %1391 = vst.msk [vmem:[%s403] sm:$0x1] %vm1390, %v1362
        %1392 = vst.msk [vmem:[%s403 + $0x1] sm:$0x1] %vm1390, %v1371
        %1393 = vst.msk [vmem:[%s403 + $0x2] sm:$0x1] %vm1390, %v1380
        %1394 = vst.msk [vmem:[%s403 + $0x3] sm:$0x1] %vm1390, %v1389
        %v1399 = vsel %vm907, %v1371, %v1362
        %v1400 = vsel %vm909, %v1380, %v1399
        %v1401 = vsel %vm911, %v1389, %v1400
        %v1402 = vsel %vm480, %v1401, 0
        %1404 = vmatprep.subr.mxu0 0.0
        %1405 = vmatpush1.msra.mxu0 0.0
        %1406 = vmatprep.subr.mxu0 0.0
        %1407 = vmatpush1.msra.mxu0 0.0
        %1408 = vmatprep.subr.mxu0 0.0
        %1409 = vmatpush1.msra.mxu0 0.0
        %1410 = vmatprep.subr.mxu0 0.0
        %1411 = vmatpush1.msra.mxu0 0.0
        %1412 = vmatprep.subr.mxu0 0.0
        %1413 = vmatpush1.msra.mxu0 0.0
        %1414 = vmatprep.subr.mxu0 0.0
        %1415 = vmatpush1.msra.mxu0 0.0
        %1416 = vmatprep.subr.mxu0 0.0
        %1417 = vmatpush1.msra.mxu0 0.0
        %1418 = vmatprep.subr.mxu0 0.0
        %1419 = vmatpush1.msra.mxu0 0.0
        %1420 = vmatprep.subr.mxu0 0.0
        %1421 = vmatpush1.msra.mxu0 0.0
        %1422 = vmatprep.subr.mxu0 0.0
        %1423 = vmatpush1.msra.mxu0 0.0
        %1424 = vmatprep.subr.mxu0 0.0
        %1425 = vmatpush1.msra.mxu0 0.0
        %1426 = vmatprep.subr.mxu0 0.0
        %1427 = vmatpush1.msra.mxu0 0.0
        %1428 = vmatprep.subr.mxu0 0.0
        %1429 = vmatpush1.msra.mxu0 %v450
        %1430 = vmatprep.subr.mxu0 0.0
        %1431 = vmatpush1.msra.mxu0 %v449
        %1432 = vmatprep.subr.mxu0 0.0
        %1433 = vmatpush1.msra.mxu0 %v448
        %1434 = vmatprep.subr.mxu0 0.0
        %1435 = vmatpush1.msra.mxu0 %v447
        %1436 = vmatprep.subr.mxu0 0.0
        %1437 = vmatpush2.msra.mxu0 0.0
        %1438 = vmatprep.subr.mxu0 0.0
        %1439 = vmatpush2.msra.mxu0 0.0
        %1440 = vmatprep.subr.mxu0 0.0
        %1441 = vmatpush2.msra.mxu0 0.0
        %1442 = vmatprep.subr.mxu0 0.0
        %1443 = vmatpush2.msra.mxu0 0.0
        %1444 = vmatprep.subr.mxu0 0.0
        %1445 = vmatpush2.msra.mxu0 0.0
        %1446 = vmatprep.subr.mxu0 0.0
        %1447 = vmatpush2.msra.mxu0 0.0
        %1448 = vmatprep.subr.mxu0 0.0
        %1449 = vmatpush2.msra.mxu0 0.0
        %1450 = vmatprep.subr.mxu0 0.0
        %1451 = vmatpush2.msra.mxu0 0.0
        %1452 = vmatprep.subr.mxu0 0.0
        %1453 = vmatpush2.msra.mxu0 0.0
        %1454 = vmatprep.subr.mxu0 0.0
        %1455 = vmatpush2.msra.mxu0 0.0
        %1456 = vmatprep.subr.mxu0 0.0
        %1457 = vmatpush2.msra.mxu0 0.0
        %1458 = vmatprep.subr.mxu0 0.0
        %1459 = vmatpush2.msra.mxu0 0.0
        %1460 = vmatprep.subr.mxu0 0.0
        %1461 = vmatpush2.msra.mxu0 0.0
        %1462 = vmatprep.subr.mxu0 0.0
        %1463 = vmatpush2.msra.mxu0 0.0
        %1464 = vmatprep.subr.mxu0 0.0
        %1465 = vmatpush2.msra.mxu0 0.0
        %1466 = vmatprep.subr.mxu0 0.0
        %1467 = vmatpush2.msra.mxu0 0.0
        %1468 = vmatprep.mubr.f32.mxu0 0.0
        %1469 = vmatmul.mubr.f32.gmra.mxu0 %v1402
        %v1470 = vpop.f32.mrf.mxu0
        %v1471 = vadd.f32 0.0, %v1470
        %v1472 = vpop.f32.mrf.mxu0
        %1473 = vdwg.mxu0
        %v1476 = vunpack.c.l.s4 1966171168
        %v1477 = vunpack.c.0.s8 %v1476
        %v1478 = vlaneseq
        %v1479 = vshrl.u32 %v1478, 7
        %v1480 = vsub.s32 %v1477, %v1479
        %v1481 = vrot.slane %v1471, %v1480
        %v1482 = vcombine.high %v1481, %v1481
        %v1484 = vunpack.c.l.s4 1966171168
        %v1485 = vunpack.c.0.s8 %v1484
        %v1486 = vlaneseq
        %v1487 = vshrl.u32 %v1486, 7
        %v1488 = vsub.s32 %v1485, %v1487
        %v1489 = vrot.slane %v1481, %v1488
        %v1491 = vunpack.c.l.s4 1966171168
        %v1492 = vunpack.c.0.s8 %v1491
        %v1493 = vlaneseq
        %v1494 = vshrl.u32 %v1493, 7
        %v1495 = vsub.s32 %v1492, %v1494
        %v1496 = vrot.slane %v1482, %v1495
        %v1497 = vcombine.high %v1489, %v1489
        %v1498 = vcombine.high %v1496, %v1496
        %v1499 = vlaneseq
        %v1500 = vshrl.u32 %v1499, 7
        %v1501 = vsub.s32 0, %v1500
        %v1502 = vrot.slane %v1489, %v1501
        %v1503 = vlaneseq
        %v1504 = vshrl.u32 %v1503, 7
        %v1505 = vsub.s32 0, %v1504
        %v1506 = vrot.slane %v1496, %v1505
        %v1507 = vlaneseq
        %v1508 = vshrl.u32 %v1507, 7
        %v1509 = vsub.s32 0, %v1508
        %v1510 = vrot.slane %v1497, %v1509
        %v1511 = vlaneseq
        %v1512 = vshrl.u32 %v1511, 7
        %v1513 = vsub.s32 0, %v1512
        %v1514 = vrot.slane %v1498, %v1513
        %v1519 = vadd.f32 %v1502, %v865
        %v1520 = vadd.f32 %v1502, %v870
        %v1521 = vadd.f32 %v1506, %v875
        %v1522 = vadd.f32 %v1506, %v880
        %v1523 = vadd.f32 %v1510, %v885
        %v1524 = vadd.f32 %v1510, %v890
        %v1525 = vadd.f32 %v1514, %v895
        %v1526 = vadd.f32 %v1514, %v900
        %v1527 = vadd.f32 %v1519, %v1042
        %v1528 = vadd.f32 %v1520, %v1042
        %v1529 = vadd.f32 %v1521, %v1042
        %v1530 = vadd.f32 %v1522, %v1042
        %v1531 = vadd.f32 %v1523, %v1042
        %v1532 = vadd.f32 %v1524, %v1042
        %v1533 = vadd.f32 %v1525, %v1042
        %v1534 = vadd.f32 %v1526, %v1042
        %v1535 = vtanh.pop %v1527
        %v1536 = vtanh.pop %v1528
        %v1537 = vtanh.pop %v1529
        %v1538 = vtanh.pop %v1530
        %v1539 = vtanh.pop %v1531
        %v1540 = vtanh.pop %v1532
        %v1541 = vtanh.pop %v1533
        %v1542 = vtanh.pop %v1534
        %v1544 = vsel %vm480, %v1535, 0
        %v1547 = vsel %vm480, %v1536, 0
        %v1550 = vsel %vm480, %v1537, 0
        %v1553 = vsel %vm480, %v1538, 0
        %v1556 = vsel %vm480, %v1539, 0
        %v1559 = vsel %vm480, %v1540, 0
        %v1562 = vsel %vm480, %v1541, 0
        %v1565 = vsel %vm480, %v1542, 0
        %1567 = vmatprep.subr.mxu0 0.0
        %1568 = vmatpush1.msra.mxu0 0.0
        %1569 = vmatprep.subr.mxu0 0.0
        %1570 = vmatpush1.msra.mxu0 0.0
        %1571 = vmatprep.subr.mxu0 0.0
        %1572 = vmatpush1.msra.mxu0 0.0
        %1573 = vmatprep.subr.mxu0 0.0
        %1574 = vmatpush1.msra.mxu0 0.0
        %1575 = vmatprep.subr.mxu0 0.0
        %1576 = vmatpush1.msra.mxu0 0.0
        %1577 = vmatprep.subr.mxu0 0.0
        %1578 = vmatpush1.msra.mxu0 0.0
        %1579 = vmatprep.subr.mxu0 0.0
        %1580 = vmatpush1.msra.mxu0 0.0
        %1581 = vmatprep.subr.mxu0 0.0
        %1582 = vmatpush1.msra.mxu0 0.0
        %1583 = vmatprep.subr.mxu0 0.0
        %1584 = vmatpush1.msra.mxu0 0.0
        %1585 = vmatprep.subr.mxu0 0.0
        %1586 = vmatpush1.msra.mxu0 0.0
        %1587 = vmatprep.subr.mxu0 0.0
        %1588 = vmatpush1.msra.mxu0 0.0
        %1589 = vmatprep.subr.mxu0 0.0
        %1590 = vmatpush1.msra.mxu0 0.0
        %1591 = vmatprep.subr.mxu0 0.0
        %1592 = vmatpush1.msra.mxu0 %v459
        %1593 = vmatprep.subr.mxu0 0.0
        %1594 = vmatpush1.msra.mxu0 %v458
        %1595 = vmatprep.subr.mxu0 0.0
        %1596 = vmatpush1.msra.mxu0 %v457
        %1597 = vmatprep.subr.mxu0 0.0
        %1598 = vmatpush1.msra.mxu0 %v456
        %1599 = vmatprep.subr.mxu0 0.0
        %1600 = vmatpush2.msra.mxu0 0.0
        %1601 = vmatprep.subr.mxu0 0.0
        %1602 = vmatpush2.msra.mxu0 0.0
        %1603 = vmatprep.subr.mxu0 0.0
        %1604 = vmatpush2.msra.mxu0 0.0
        %1605 = vmatprep.subr.mxu0 0.0
        %1606 = vmatpush2.msra.mxu0 0.0
        %1607 = vmatprep.subr.mxu0 0.0
        %1608 = vmatpush2.msra.mxu0 0.0
        %1609 = vmatprep.subr.mxu0 0.0
        %1610 = vmatpush2.msra.mxu0 0.0
        %1611 = vmatprep.subr.mxu0 0.0
        %1612 = vmatpush2.msra.mxu0 0.0
        %1613 = vmatprep.subr.mxu0 0.0
        %1614 = vmatpush2.msra.mxu0 0.0
        %1615 = vmatprep.subr.mxu0 0.0
        %1616 = vmatpush2.msra.mxu0 0.0
        %1617 = vmatprep.subr.mxu0 0.0
        %1618 = vmatpush2.msra.mxu0 0.0
        %1619 = vmatprep.subr.mxu0 0.0
        %1620 = vmatpush2.msra.mxu0 0.0
        %1621 = vmatprep.subr.mxu0 0.0
        %1622 = vmatpush2.msra.mxu0 0.0
        %1623 = vmatprep.subr.mxu0 0.0
        %1624 = vmatpush2.msra.mxu0 0.0
        %1625 = vmatprep.subr.mxu0 0.0
        %1626 = vmatpush2.msra.mxu0 0.0
        %1627 = vmatprep.subr.mxu0 0.0
        %1628 = vmatpush2.msra.mxu0 0.0
        %1629 = vmatprep.subr.mxu0 0.0
        %1630 = vmatpush2.msra.mxu0 0.0
        %1631 = vmatprep.mubr.f32.mxu0 0.0
        %1632 = vmatmul.mubr.f32.gmra.mxu0 %v1544
        %v1633 = vpop.f32.mrf.mxu0
        %v1634 = vadd.f32 0.0, %v1633
        %v1635 = vpop.f32.mrf.mxu0
        %1636 = vmatprep.mubr.f32.mxu0 0.0
        %1637 = vmatmul.mubr.f32.gmra.mxu0 %v1547
        %v1638 = vpop.f32.mrf.mxu0
        %v1639 = vadd.f32 0.0, %v1638
        %v1640 = vpop.f32.mrf.mxu0
        %1641 = vmatprep.mubr.f32.mxu0 0.0
        %1642 = vmatmul.mubr.f32.gmra.mxu0 %v1550
        %v1643 = vpop.f32.mrf.mxu0
        %v1644 = vadd.f32 0.0, %v1643
        %v1645 = vpop.f32.mrf.mxu0
        %1646 = vmatprep.mubr.f32.mxu0 0.0
        %1647 = vmatmul.mubr.f32.gmra.mxu0 %v1553
        %v1648 = vpop.f32.mrf.mxu0
        %v1649 = vadd.f32 0.0, %v1648
        %v1650 = vpop.f32.mrf.mxu0
        %1651 = vmatprep.mubr.f32.mxu0 0.0
        %1652 = vmatmul.mubr.f32.gmra.mxu0 %v1556
        %v1653 = vpop.f32.mrf.mxu0
        %v1654 = vadd.f32 0.0, %v1653
        %v1655 = vpop.f32.mrf.mxu0
        %1656 = vmatprep.mubr.f32.mxu0 0.0
        %1657 = vmatmul.mubr.f32.gmra.mxu0 %v1559
        %v1658 = vpop.f32.mrf.mxu0
        %v1659 = vadd.f32 0.0, %v1658
        %v1660 = vpop.f32.mrf.mxu0
        %1661 = vmatprep.mubr.f32.mxu0 0.0
        %1662 = vmatmul.mubr.f32.gmra.mxu0 %v1562
        %v1663 = vpop.f32.mrf.mxu0
        %v1664 = vadd.f32 0.0, %v1663
        %v1665 = vpop.f32.mrf.mxu0
        %1666 = vmatprep.mubr.f32.mxu0 0.0
        %1667 = vmatmul.mubr.f32.gmra.mxu0 %v1565
        %v1668 = vpop.f32.mrf.mxu0
        %v1669 = vadd.f32 0.0, %v1668
        %v1670 = vpop.f32.mrf.mxu0
        %1671 = vdwg.mxu0
        %v1672 = vstv %s460
        %v1673 = vmul.f32 %v1634, %v1672
        %v1674 = vmul.f32 %v1639, %v1672
        %v1675 = vmul.f32 %v1644, %v1672
        %v1676 = vmul.f32 %v1649, %v1672
        %v1677 = vmul.f32 %v1654, %v1672
        %v1678 = vmul.f32 %v1659, %v1672
        %v1679 = vmul.f32 %v1664, %v1672
        %v1680 = vmul.f32 %v1669, %v1672
        %v1681 = vadd.f32 %v1673, %v439
        %v1682 = vadd.f32 %v1674, %v440
        %v1683 = vadd.f32 %v1675, %v441
        %v1684 = vadd.f32 %v1676, %v442
        %v1685 = vadd.f32 %v1677, %v443
        %v1686 = vadd.f32 %v1678, %v444
        %v1687 = vadd.f32 %v1679, %v445
        %v1688 = vadd.f32 %v1680, %v446
        %1690 = vset.pattern.permute.xlu0 0
        %1691 = vperm.xlu0 %1690, %v1681
        %v1692 = vpop.permute.xlu0 %1691
        %1694 = vset.pattern.permute.xlu0 0
        %1695 = vperm.xlu0 %1694, %v1682
        %v1696 = vpop.permute.xlu0 %1695
        %1698 = vset.pattern.permute.xlu0 0
        %1699 = vperm.xlu0 %1698, %v1683
        %v1700 = vpop.permute.xlu0 %1699
        %1702 = vset.pattern.permute.xlu0 0
        %1703 = vperm.xlu0 %1702, %v1684
        %v1704 = vpop.permute.xlu0 %1703
        %1706 = vset.pattern.permute.xlu0 0
        %1707 = vperm.xlu0 %1706, %v1685
        %v1708 = vpop.permute.xlu0 %1707
        %1710 = vset.pattern.permute.xlu0 0
        %1711 = vperm.xlu0 %1710, %v1686
        %v1712 = vpop.permute.xlu0 %1711
        %1714 = vset.pattern.permute.xlu0 0
        %1715 = vperm.xlu0 %1714, %v1687
        %v1716 = vpop.permute.xlu0 %1715
        %1718 = vset.pattern.permute.xlu0 0
        %1719 = vperm.xlu0 %1718, %v1688
        %v1720 = vpop.permute.xlu0 %1719
        %v1721 = vlaneseq
        %v1722 = vshrl.u32 %v1721, 7
        %v1723 = vsub.s32 0, %v1722
        %v1724 = vrot.slane %v1692, %v1723
        %v1725 = vlaneseq
        %v1726 = vshrl.u32 %v1725, 7
        %v1727 = vsub.s32 1, %v1726
        %v1728 = vrot.slane %v1692, %v1727
        %v1729 = vlaneseq
        %v1730 = vshrl.u32 %v1729, 7
        %v1731 = vsub.s32 2, %v1730
        %v1732 = vrot.slane %v1692, %v1731
        %v1733 = vlaneseq
        %v1734 = vshrl.u32 %v1733, 7
        %v1735 = vsub.s32 3, %v1734
        %v1736 = vrot.slane %v1692, %v1735
        %v1737 = vlaneseq
        %v1738 = vshrl.u32 %v1737, 7
        %v1739 = vsub.s32 4, %v1738
        %v1740 = vrot.slane %v1692, %v1739
        %v1741 = vlaneseq
        %v1742 = vshrl.u32 %v1741, 7
        %v1743 = vsub.s32 5, %v1742
        %v1744 = vrot.slane %v1692, %v1743
        %v1745 = vlaneseq
        %v1746 = vshrl.u32 %v1745, 7
        %v1747 = vsub.s32 6, %v1746
        %v1748 = vrot.slane %v1692, %v1747
        %v1749 = vlaneseq
        %v1750 = vshrl.u32 %v1749, 7
        %v1751 = vsub.s32 7, %v1750
        %v1752 = vrot.slane %v1692, %v1751
        %v1753 = vlaneseq
        %v1754 = vshrl.u32 %v1753, 7
        %v1755 = vsub.s32 0, %v1754
        %v1756 = vrot.slane %v1696, %v1755
        %v1757 = vlaneseq
        %v1758 = vshrl.u32 %v1757, 7
        %v1759 = vsub.s32 1, %v1758
        %v1760 = vrot.slane %v1696, %v1759
        %v1761 = vlaneseq
        %v1762 = vshrl.u32 %v1761, 7
        %v1763 = vsub.s32 2, %v1762
        %v1764 = vrot.slane %v1696, %v1763
        %v1765 = vlaneseq
        %v1766 = vshrl.u32 %v1765, 7
        %v1767 = vsub.s32 3, %v1766
        %v1768 = vrot.slane %v1696, %v1767
        %v1769 = vlaneseq
        %v1770 = vshrl.u32 %v1769, 7
        %v1771 = vsub.s32 4, %v1770
        %v1772 = vrot.slane %v1696, %v1771
        %v1773 = vlaneseq
        %v1774 = vshrl.u32 %v1773, 7
        %v1775 = vsub.s32 5, %v1774
        %v1776 = vrot.slane %v1696, %v1775
        %v1777 = vlaneseq
        %v1778 = vshrl.u32 %v1777, 7
        %v1779 = vsub.s32 6, %v1778
        %v1780 = vrot.slane %v1696, %v1779
        %v1781 = vlaneseq
        %v1782 = vshrl.u32 %v1781, 7
        %v1783 = vsub.s32 7, %v1782
        %v1784 = vrot.slane %v1696, %v1783
        %v1785 = vlaneseq
        %v1786 = vshrl.u32 %v1785, 7
        %v1787 = vsub.s32 0, %v1786
        %v1788 = vrot.slane %v1700, %v1787
        %v1789 = vlaneseq
        %v1790 = vshrl.u32 %v1789, 7
        %v1791 = vsub.s32 1, %v1790
        %v1792 = vrot.slane %v1700, %v1791
        %v1793 = vlaneseq
        %v1794 = vshrl.u32 %v1793, 7
        %v1795 = vsub.s32 2, %v1794
        %v1796 = vrot.slane %v1700, %v1795
        %v1797 = vlaneseq
        %v1798 = vshrl.u32 %v1797, 7
        %v1799 = vsub.s32 3, %v1798
        %v1800 = vrot.slane %v1700, %v1799
        %v1801 = vlaneseq
        %v1802 = vshrl.u32 %v1801, 7
        %v1803 = vsub.s32 4, %v1802
        %v1804 = vrot.slane %v1700, %v1803
        %v1805 = vlaneseq
        %v1806 = vshrl.u32 %v1805, 7
        %v1807 = vsub.s32 5, %v1806
        %v1808 = vrot.slane %v1700, %v1807
        %v1809 = vlaneseq
        %v1810 = vshrl.u32 %v1809, 7
        %v1811 = vsub.s32 6, %v1810
        %v1812 = vrot.slane %v1700, %v1811
        %v1813 = vlaneseq
        %v1814 = vshrl.u32 %v1813, 7
        %v1815 = vsub.s32 7, %v1814
        %v1816 = vrot.slane %v1700, %v1815
        %v1817 = vlaneseq
        %v1818 = vshrl.u32 %v1817, 7
        %v1819 = vsub.s32 0, %v1818
        %v1820 = vrot.slane %v1704, %v1819
        %v1821 = vlaneseq
        %v1822 = vshrl.u32 %v1821, 7
        %v1823 = vsub.s32 1, %v1822
        %v1824 = vrot.slane %v1704, %v1823
        %v1825 = vlaneseq
        %v1826 = vshrl.u32 %v1825, 7
        %v1827 = vsub.s32 2, %v1826
        %v1828 = vrot.slane %v1704, %v1827
        %v1829 = vlaneseq
        %v1830 = vshrl.u32 %v1829, 7
        %v1831 = vsub.s32 3, %v1830
        %v1832 = vrot.slane %v1704, %v1831
        %v1833 = vlaneseq
        %v1834 = vshrl.u32 %v1833, 7
        %v1835 = vsub.s32 4, %v1834
        %v1836 = vrot.slane %v1704, %v1835
        %v1837 = vlaneseq
        %v1838 = vshrl.u32 %v1837, 7
        %v1839 = vsub.s32 5, %v1838
        %v1840 = vrot.slane %v1704, %v1839
        %v1841 = vlaneseq
        %v1842 = vshrl.u32 %v1841, 7
        %v1843 = vsub.s32 6, %v1842
        %v1844 = vrot.slane %v1704, %v1843
        %v1845 = vlaneseq
        %v1846 = vshrl.u32 %v1845, 7
        %v1847 = vsub.s32 7, %v1846
        %v1848 = vrot.slane %v1704, %v1847
        %v1849 = vlaneseq
        %v1850 = vshrl.u32 %v1849, 7
        %v1851 = vsub.s32 0, %v1850
        %v1852 = vrot.slane %v1708, %v1851
        %v1853 = vlaneseq
        %v1854 = vshrl.u32 %v1853, 7
        %v1855 = vsub.s32 1, %v1854
        %v1856 = vrot.slane %v1708, %v1855
        %v1857 = vlaneseq
        %v1858 = vshrl.u32 %v1857, 7
        %v1859 = vsub.s32 2, %v1858
        %v1860 = vrot.slane %v1708, %v1859
        %v1861 = vlaneseq
        %v1862 = vshrl.u32 %v1861, 7
        %v1863 = vsub.s32 3, %v1862
        %v1864 = vrot.slane %v1708, %v1863
        %v1865 = vlaneseq
        %v1866 = vshrl.u32 %v1865, 7
        %v1867 = vsub.s32 4, %v1866
        %v1868 = vrot.slane %v1708, %v1867
        %v1869 = vlaneseq
        %v1870 = vshrl.u32 %v1869, 7
        %v1871 = vsub.s32 5, %v1870
        %v1872 = vrot.slane %v1708, %v1871
        %v1873 = vlaneseq
        %v1874 = vshrl.u32 %v1873, 7
        %v1875 = vsub.s32 6, %v1874
        %v1876 = vrot.slane %v1708, %v1875
        %v1877 = vlaneseq
        %v1878 = vshrl.u32 %v1877, 7
        %v1879 = vsub.s32 7, %v1878
        %v1880 = vrot.slane %v1708, %v1879
        %v1881 = vlaneseq
        %v1882 = vshrl.u32 %v1881, 7
        %v1883 = vsub.s32 0, %v1882
        %v1884 = vrot.slane %v1712, %v1883
        %v1885 = vlaneseq
        %v1886 = vshrl.u32 %v1885, 7
        %v1887 = vsub.s32 1, %v1886
        %v1888 = vrot.slane %v1712, %v1887
        %v1889 = vlaneseq
        %v1890 = vshrl.u32 %v1889, 7
        %v1891 = vsub.s32 2, %v1890
        %v1892 = vrot.slane %v1712, %v1891
        %v1893 = vlaneseq
        %v1894 = vshrl.u32 %v1893, 7
        %v1895 = vsub.s32 3, %v1894
        %v1896 = vrot.slane %v1712, %v1895
        %v1897 = vlaneseq
        %v1898 = vshrl.u32 %v1897, 7
        %v1899 = vsub.s32 4, %v1898
        %v1900 = vrot.slane %v1712, %v1899
        %v1901 = vlaneseq
        %v1902 = vshrl.u32 %v1901, 7
        %v1903 = vsub.s32 5, %v1902
        %v1904 = vrot.slane %v1712, %v1903
        %v1905 = vlaneseq
        %v1906 = vshrl.u32 %v1905, 7
        %v1907 = vsub.s32 6, %v1906
        %v1908 = vrot.slane %v1712, %v1907
        %v1909 = vlaneseq
        %v1910 = vshrl.u32 %v1909, 7
        %v1911 = vsub.s32 7, %v1910
        %v1912 = vrot.slane %v1712, %v1911
        %v1913 = vlaneseq
        %v1914 = vshrl.u32 %v1913, 7
        %v1915 = vsub.s32 0, %v1914
        %v1916 = vrot.slane %v1716, %v1915
        %v1917 = vlaneseq
        %v1918 = vshrl.u32 %v1917, 7
        %v1919 = vsub.s32 1, %v1918
        %v1920 = vrot.slane %v1716, %v1919
        %v1921 = vlaneseq
        %v1922 = vshrl.u32 %v1921, 7
        %v1923 = vsub.s32 2, %v1922
        %v1924 = vrot.slane %v1716, %v1923
        %v1925 = vlaneseq
        %v1926 = vshrl.u32 %v1925, 7
        %v1927 = vsub.s32 3, %v1926
        %v1928 = vrot.slane %v1716, %v1927
        %v1929 = vlaneseq
        %v1930 = vshrl.u32 %v1929, 7
        %v1931 = vsub.s32 4, %v1930
        %v1932 = vrot.slane %v1716, %v1931
        %v1933 = vlaneseq
        %v1934 = vshrl.u32 %v1933, 7
        %v1935 = vsub.s32 5, %v1934
        %v1936 = vrot.slane %v1716, %v1935
        %v1937 = vlaneseq
        %v1938 = vshrl.u32 %v1937, 7
        %v1939 = vsub.s32 6, %v1938
        %v1940 = vrot.slane %v1716, %v1939
        %v1941 = vlaneseq
        %v1942 = vshrl.u32 %v1941, 7
        %v1943 = vsub.s32 7, %v1942
        %v1944 = vrot.slane %v1716, %v1943
        %v1945 = vlaneseq
        %v1946 = vshrl.u32 %v1945, 7
        %v1947 = vsub.s32 0, %v1946
        %v1948 = vrot.slane %v1720, %v1947
        %v1949 = vlaneseq
        %v1950 = vshrl.u32 %v1949, 7
        %v1951 = vsub.s32 1, %v1950
        %v1952 = vrot.slane %v1720, %v1951
        %v1953 = vlaneseq
        %v1954 = vshrl.u32 %v1953, 7
        %v1955 = vsub.s32 2, %v1954
        %v1956 = vrot.slane %v1720, %v1955
        %v1957 = vlaneseq
        %v1958 = vshrl.u32 %v1957, 7
        %v1959 = vsub.s32 3, %v1958
        %v1960 = vrot.slane %v1720, %v1959
        %v1961 = vlaneseq
        %v1962 = vshrl.u32 %v1961, 7
        %v1963 = vsub.s32 4, %v1962
        %v1964 = vrot.slane %v1720, %v1963
        %v1965 = vlaneseq
        %v1966 = vshrl.u32 %v1965, 7
        %v1967 = vsub.s32 5, %v1966
        %v1968 = vrot.slane %v1720, %v1967
        %v1969 = vlaneseq
        %v1970 = vshrl.u32 %v1969, 7
        %v1971 = vsub.s32 6, %v1970
        %v1972 = vrot.slane %v1720, %v1971
        %v1973 = vlaneseq
        %v1974 = vshrl.u32 %v1973, 7
        %v1975 = vsub.s32 7, %v1974
        %v1976 = vrot.slane %v1720, %v1975
        %vm2041 = vcmp.ge.f32.partialorder %v1681, %v1724
        %vm2042 = vcmp.ge.f32.partialorder %v1682, %v1724
        %vm2043 = vcmp.ge.f32.partialorder %v1681, %v1728
        %vm2044 = vcmp.ge.f32.partialorder %v1682, %v1728
        %vm2045 = vcmp.ge.f32.partialorder %v1681, %v1732
        %vm2046 = vcmp.ge.f32.partialorder %v1682, %v1732
        %vm2047 = vcmp.ge.f32.partialorder %v1681, %v1736
        %vm2048 = vcmp.ge.f32.partialorder %v1682, %v1736
        %vm2049 = vcmp.ge.f32.partialorder %v1681, %v1740
        %vm2050 = vcmp.ge.f32.partialorder %v1682, %v1740
        %vm2051 = vcmp.ge.f32.partialorder %v1681, %v1744
        %vm2052 = vcmp.ge.f32.partialorder %v1682, %v1744
        %vm2053 = vcmp.ge.f32.partialorder %v1681, %v1748
        %vm2054 = vcmp.ge.f32.partialorder %v1682, %v1748
        %vm2055 = vcmp.ge.f32.partialorder %v1681, %v1752
        %vm2056 = vcmp.ge.f32.partialorder %v1682, %v1752
        %vm2057 = vcmp.ge.f32.partialorder %v1681, %v1756
        %vm2058 = vcmp.ge.f32.partialorder %v1682, %v1756
        %vm2059 = vcmp.ge.f32.partialorder %v1681, %v1760
        %vm2060 = vcmp.ge.f32.partialorder %v1682, %v1760
        %vm2061 = vcmp.ge.f32.partialorder %v1681, %v1764
        %vm2062 = vcmp.ge.f32.partialorder %v1682, %v1764
        %vm2063 = vcmp.ge.f32.partialorder %v1681, %v1768
        %vm2064 = vcmp.ge.f32.partialorder %v1682, %v1768
        %vm2065 = vcmp.ge.f32.partialorder %v1681, %v1772
        %vm2066 = vcmp.ge.f32.partialorder %v1682, %v1772
        %vm2067 = vcmp.ge.f32.partialorder %v1681, %v1776
        %vm2068 = vcmp.ge.f32.partialorder %v1682, %v1776
        %vm2069 = vcmp.ge.f32.partialorder %v1681, %v1780
        %vm2070 = vcmp.ge.f32.partialorder %v1682, %v1780
        %vm2071 = vcmp.ge.f32.partialorder %v1681, %v1784
        %vm2072 = vcmp.ge.f32.partialorder %v1682, %v1784
        %vm2073 = vcmp.ge.f32.partialorder %v1683, %v1788
        %vm2074 = vcmp.ge.f32.partialorder %v1684, %v1788
        %vm2075 = vcmp.ge.f32.partialorder %v1683, %v1792
        %vm2076 = vcmp.ge.f32.partialorder %v1684, %v1792
        %vm2077 = vcmp.ge.f32.partialorder %v1683, %v1796
        %vm2078 = vcmp.ge.f32.partialorder %v1684, %v1796
        %vm2079 = vcmp.ge.f32.partialorder %v1683, %v1800
        %vm2080 = vcmp.ge.f32.partialorder %v1684, %v1800
        %vm2081 = vcmp.ge.f32.partialorder %v1683, %v1804
        %vm2082 = vcmp.ge.f32.partialorder %v1684, %v1804
        %vm2083 = vcmp.ge.f32.partialorder %v1683, %v1808
        %vm2084 = vcmp.ge.f32.partialorder %v1684, %v1808
        %vm2085 = vcmp.ge.f32.partialorder %v1683, %v1812
        %vm2086 = vcmp.ge.f32.partialorder %v1684, %v1812
        %vm2087 = vcmp.ge.f32.partialorder %v1683, %v1816
        %vm2088 = vcmp.ge.f32.partialorder %v1684, %v1816
        %vm2089 = vcmp.ge.f32.partialorder %v1683, %v1820
        %vm2090 = vcmp.ge.f32.partialorder %v1684, %v1820
        %vm2091 = vcmp.ge.f32.partialorder %v1683, %v1824
        %vm2092 = vcmp.ge.f32.partialorder %v1684, %v1824
        %vm2093 = vcmp.ge.f32.partialorder %v1683, %v1828
        %vm2094 = vcmp.ge.f32.partialorder %v1684, %v1828
        %vm2095 = vcmp.ge.f32.partialorder %v1683, %v1832
        %vm2096 = vcmp.ge.f32.partialorder %v1684, %v1832
        %vm2097 = vcmp.ge.f32.partialorder %v1683, %v1836
        %vm2098 = vcmp.ge.f32.partialorder %v1684, %v1836
        %vm2099 = vcmp.ge.f32.partialorder %v1683, %v1840
        %vm2100 = vcmp.ge.f32.partialorder %v1684, %v1840
        %vm2101 = vcmp.ge.f32.partialorder %v1683, %v1844
        %vm2102 = vcmp.ge.f32.partialorder %v1684, %v1844
        %vm2103 = vcmp.ge.f32.partialorder %v1683, %v1848
        %vm2104 = vcmp.ge.f32.partialorder %v1684, %v1848
        %vm2105 = vcmp.ge.f32.partialorder %v1685, %v1852
        %vm2106 = vcmp.ge.f32.partialorder %v1686, %v1852
        %vm2107 = vcmp.ge.f32.partialorder %v1685, %v1856
        %vm2108 = vcmp.ge.f32.partialorder %v1686, %v1856
        %vm2109 = vcmp.ge.f32.partialorder %v1685, %v1860
        %vm2110 = vcmp.ge.f32.partialorder %v1686, %v1860
        %vm2111 = vcmp.ge.f32.partialorder %v1685, %v1864
        %vm2112 = vcmp.ge.f32.partialorder %v1686, %v1864
        %vm2113 = vcmp.ge.f32.partialorder %v1685, %v1868
        %vm2114 = vcmp.ge.f32.partialorder %v1686, %v1868
        %vm2115 = vcmp.ge.f32.partialorder %v1685, %v1872
        %vm2116 = vcmp.ge.f32.partialorder %v1686, %v1872
        %vm2117 = vcmp.ge.f32.partialorder %v1685, %v1876
        %vm2118 = vcmp.ge.f32.partialorder %v1686, %v1876
        %vm2119 = vcmp.ge.f32.partialorder %v1685, %v1880
        %vm2120 = vcmp.ge.f32.partialorder %v1686, %v1880
        %vm2121 = vcmp.ge.f32.partialorder %v1685, %v1884
        %vm2122 = vcmp.ge.f32.partialorder %v1686, %v1884
        %vm2123 = vcmp.ge.f32.partialorder %v1685, %v1888
        %vm2124 = vcmp.ge.f32.partialorder %v1686, %v1888
        %vm2125 = vcmp.ge.f32.partialorder %v1685, %v1892
        %vm2126 = vcmp.ge.f32.partialorder %v1686, %v1892
        %vm2127 = vcmp.ge.f32.partialorder %v1685, %v1896
        %vm2128 = vcmp.ge.f32.partialorder %v1686, %v1896
        %vm2129 = vcmp.ge.f32.partialorder %v1685, %v1900
        %vm2130 = vcmp.ge.f32.partialorder %v1686, %v1900
        %vm2131 = vcmp.ge.f32.partialorder %v1685, %v1904
        %vm2132 = vcmp.ge.f32.partialorder %v1686, %v1904
        %vm2133 = vcmp.ge.f32.partialorder %v1685, %v1908
        %vm2134 = vcmp.ge.f32.partialorder %v1686, %v1908
        %vm2135 = vcmp.ge.f32.partialorder %v1685, %v1912
        %vm2136 = vcmp.ge.f32.partialorder %v1686, %v1912
        %vm2137 = vcmp.ge.f32.partialorder %v1687, %v1916
        %vm2138 = vcmp.ge.f32.partialorder %v1688, %v1916
        %vm2139 = vcmp.ge.f32.partialorder %v1687, %v1920
        %vm2140 = vcmp.ge.f32.partialorder %v1688, %v1920
        %vm2141 = vcmp.ge.f32.partialorder %v1687, %v1924
        %vm2142 = vcmp.ge.f32.partialorder %v1688, %v1924
        %vm2143 = vcmp.ge.f32.partialorder %v1687, %v1928
        %vm2144 = vcmp.ge.f32.partialorder %v1688, %v1928
        %vm2145 = vcmp.ge.f32.partialorder %v1687, %v1932
        %vm2146 = vcmp.ge.f32.partialorder %v1688, %v1932
        %vm2147 = vcmp.ge.f32.partialorder %v1687, %v1936
        %vm2148 = vcmp.ge.f32.partialorder %v1688, %v1936
        %vm2149 = vcmp.ge.f32.partialorder %v1687, %v1940
        %vm2150 = vcmp.ge.f32.partialorder %v1688, %v1940
        %vm2151 = vcmp.ge.f32.partialorder %v1687, %v1944
        %vm2152 = vcmp.ge.f32.partialorder %v1688, %v1944
        %vm2153 = vcmp.ge.f32.partialorder %v1687, %v1948
        %vm2154 = vcmp.ge.f32.partialorder %v1688, %v1948
        %vm2155 = vcmp.ge.f32.partialorder %v1687, %v1952
        %vm2156 = vcmp.ge.f32.partialorder %v1688, %v1952
        %vm2157 = vcmp.ge.f32.partialorder %v1687, %v1956
        %vm2158 = vcmp.ge.f32.partialorder %v1688, %v1956
        %vm2159 = vcmp.ge.f32.partialorder %v1687, %v1960
        %vm2160 = vcmp.ge.f32.partialorder %v1688, %v1960
        %vm2161 = vcmp.ge.f32.partialorder %v1687, %v1964
        %vm2162 = vcmp.ge.f32.partialorder %v1688, %v1964
        %vm2163 = vcmp.ge.f32.partialorder %v1687, %v1968
        %vm2164 = vcmp.ge.f32.partialorder %v1688, %v1968
        %vm2165 = vcmp.ge.f32.partialorder %v1687, %v1972
        %vm2166 = vcmp.ge.f32.partialorder %v1688, %v1972
        %vm2167 = vcmp.ge.f32.partialorder %v1687, %v1976
        %vm2168 = vcmp.ge.f32.partialorder %v1688, %v1976
        %v2169 = vsel %vm2041, 1, 0
        %v2170 = vsel %vm2042, 1, 0
        %v2171 = vsel %vm2043, 1, 0
        %v2172 = vsel %vm2044, 1, 0
        %v2173 = vsel %vm2045, 1, 0
        %v2174 = vsel %vm2046, 1, 0
        %v2175 = vsel %vm2047, 1, 0
        %v2176 = vsel %vm2048, 1, 0
        %v2177 = vsel %vm2049, 1, 0
        %v2178 = vsel %vm2050, 1, 0
        %v2179 = vsel %vm2051, 1, 0
        %v2180 = vsel %vm2052, 1, 0
        %v2181 = vsel %vm2053, 1, 0
        %v2182 = vsel %vm2054, 1, 0
        %v2183 = vsel %vm2055, 1, 0
        %v2184 = vsel %vm2056, 1, 0
        %v2185 = vsel %vm2057, 1, 0
        %v2186 = vsel %vm2058, 1, 0
        %v2187 = vsel %vm2059, 1, 0
        %v2188 = vsel %vm2060, 1, 0
        %v2189 = vsel %vm2061, 1, 0
        %v2190 = vsel %vm2062, 1, 0
        %v2191 = vsel %vm2063, 1, 0
        %v2192 = vsel %vm2064, 1, 0
        %v2193 = vsel %vm2065, 1, 0
        %v2194 = vsel %vm2066, 1, 0
        %v2195 = vsel %vm2067, 1, 0
        %v2196 = vsel %vm2068, 1, 0
        %v2197 = vsel %vm2069, 1, 0
        %v2198 = vsel %vm2070, 1, 0
        %v2199 = vsel %vm2071, 1, 0
        %v2200 = vsel %vm2072, 1, 0
        %v2201 = vsel %vm2073, 1, 0
        %v2202 = vsel %vm2074, 1, 0
        %v2203 = vsel %vm2075, 1, 0
        %v2204 = vsel %vm2076, 1, 0
        %v2205 = vsel %vm2077, 1, 0
        %v2206 = vsel %vm2078, 1, 0
        %v2207 = vsel %vm2079, 1, 0
        %v2208 = vsel %vm2080, 1, 0
        %v2209 = vsel %vm2081, 1, 0
        %v2210 = vsel %vm2082, 1, 0
        %v2211 = vsel %vm2083, 1, 0
        %v2212 = vsel %vm2084, 1, 0
        %v2213 = vsel %vm2085, 1, 0
        %v2214 = vsel %vm2086, 1, 0
        %v2215 = vsel %vm2087, 1, 0
        %v2216 = vsel %vm2088, 1, 0
        %v2217 = vsel %vm2089, 1, 0
        %v2218 = vsel %vm2090, 1, 0
        %v2219 = vsel %vm2091, 1, 0
        %v2220 = vsel %vm2092, 1, 0
        %v2221 = vsel %vm2093, 1, 0
        %v2222 = vsel %vm2094, 1, 0
        %v2223 = vsel %vm2095, 1, 0
        %v2224 = vsel %vm2096, 1, 0
        %v2225 = vsel %vm2097, 1, 0
        %v2226 = vsel %vm2098, 1, 0
        %v2227 = vsel %vm2099, 1, 0
        %v2228 = vsel %vm2100, 1, 0
        %v2229 = vsel %vm2101, 1, 0
        %v2230 = vsel %vm2102, 1, 0
        %v2231 = vsel %vm2103, 1, 0
        %v2232 = vsel %vm2104, 1, 0
        %v2233 = vsel %vm2105, 1, 0
        %v2234 = vsel %vm2106, 1, 0
        %v2235 = vsel %vm2107, 1, 0
        %v2236 = vsel %vm2108, 1, 0
        %v2237 = vsel %vm2109, 1, 0
        %v2238 = vsel %vm2110, 1, 0
        %v2239 = vsel %vm2111, 1, 0
        %v2240 = vsel %vm2112, 1, 0
        %v2241 = vsel %vm2113, 1, 0
        %v2242 = vsel %vm2114, 1, 0
        %v2243 = vsel %vm2115, 1, 0
        %v2244 = vsel %vm2116, 1, 0
        %v2245 = vsel %vm2117, 1, 0
        %v2246 = vsel %vm2118, 1, 0
        %v2247 = vsel %vm2119, 1, 0
        %v2248 = vsel %vm2120, 1, 0
        %v2249 = vsel %vm2121, 1, 0
        %v2250 = vsel %vm2122, 1, 0
        %v2251 = vsel %vm2123, 1, 0
        %v2252 = vsel %vm2124, 1, 0
        %v2253 = vsel %vm2125, 1, 0
        %v2254 = vsel %vm2126, 1, 0
        %v2255 = vsel %vm2127, 1, 0
        %v2256 = vsel %vm2128, 1, 0
        %v2257 = vsel %vm2129, 1, 0
        %v2258 = vsel %vm2130, 1, 0
        %v2259 = vsel %vm2131, 1, 0
        %v2260 = vsel %vm2132, 1, 0
        %v2261 = vsel %vm2133, 1, 0
        %v2262 = vsel %vm2134, 1, 0
        %v2263 = vsel %vm2135, 1, 0
        %v2264 = vsel %vm2136, 1, 0
        %v2265 = vsel %vm2137, 1, 0
        %v2266 = vsel %vm2138, 1, 0
        %v2267 = vsel %vm2139, 1, 0
        %v2268 = vsel %vm2140, 1, 0
        %v2269 = vsel %vm2141, 1, 0
        %v2270 = vsel %vm2142, 1, 0
        %v2271 = vsel %vm2143, 1, 0
        %v2272 = vsel %vm2144, 1, 0
        %v2273 = vsel %vm2145, 1, 0
        %v2274 = vsel %vm2146, 1, 0
        %v2275 = vsel %vm2147, 1, 0
        %v2276 = vsel %vm2148, 1, 0
        %v2277 = vsel %vm2149, 1, 0
        %v2278 = vsel %vm2150, 1, 0
        %v2279 = vsel %vm2151, 1, 0
        %v2280 = vsel %vm2152, 1, 0
        %v2281 = vsel %vm2153, 1, 0
        %v2282 = vsel %vm2154, 1, 0
        %v2283 = vsel %vm2155, 1, 0
        %v2284 = vsel %vm2156, 1, 0
        %v2285 = vsel %vm2157, 1, 0
        %v2286 = vsel %vm2158, 1, 0
        %v2287 = vsel %vm2159, 1, 0
        %v2288 = vsel %vm2160, 1, 0
        %v2289 = vsel %vm2161, 1, 0
        %v2290 = vsel %vm2162, 1, 0
        %v2291 = vsel %vm2163, 1, 0
        %v2292 = vsel %vm2164, 1, 0
        %v2293 = vsel %vm2165, 1, 0
        %v2294 = vsel %vm2166, 1, 0
        %v2295 = vsel %vm2167, 1, 0
        %v2296 = vsel %vm2168, 1, 0
        %v2297 = vcvt.s32.f32 %v2169
        %v2298 = vcvt.s32.f32 %v2170
        %v2299 = vcvt.s32.f32 %v2171
        %v2300 = vcvt.s32.f32 %v2172
        %v2301 = vcvt.s32.f32 %v2173
        %v2302 = vcvt.s32.f32 %v2174
        %v2303 = vcvt.s32.f32 %v2175
        %v2304 = vcvt.s32.f32 %v2176
        %v2305 = vcvt.s32.f32 %v2177
        %v2306 = vcvt.s32.f32 %v2178
        %v2307 = vcvt.s32.f32 %v2179
        %v2308 = vcvt.s32.f32 %v2180
        %v2309 = vcvt.s32.f32 %v2181
        %v2310 = vcvt.s32.f32 %v2182
        %v2311 = vcvt.s32.f32 %v2183
        %v2312 = vcvt.s32.f32 %v2184
        %v2313 = vcvt.s32.f32 %v2185
        %v2314 = vcvt.s32.f32 %v2186
        %v2315 = vcvt.s32.f32 %v2187
        %v2316 = vcvt.s32.f32 %v2188
        %v2317 = vcvt.s32.f32 %v2189
        %v2318 = vcvt.s32.f32 %v2190
        %v2319 = vcvt.s32.f32 %v2191
        %v2320 = vcvt.s32.f32 %v2192
        %v2321 = vcvt.s32.f32 %v2193
        %v2322 = vcvt.s32.f32 %v2194
        %v2323 = vcvt.s32.f32 %v2195
        %v2324 = vcvt.s32.f32 %v2196
        %v2325 = vcvt.s32.f32 %v2197
        %v2326 = vcvt.s32.f32 %v2198
        %v2327 = vcvt.s32.f32 %v2199
        %v2328 = vcvt.s32.f32 %v2200
        %v2329 = vcvt.s32.f32 %v2201
        %v2330 = vcvt.s32.f32 %v2202
        %v2331 = vcvt.s32.f32 %v2203
        %v2332 = vcvt.s32.f32 %v2204
        %v2333 = vcvt.s32.f32 %v2205
        %v2334 = vcvt.s32.f32 %v2206
        %v2335 = vcvt.s32.f32 %v2207
        %v2336 = vcvt.s32.f32 %v2208
        %v2337 = vcvt.s32.f32 %v2209
        %v2338 = vcvt.s32.f32 %v2210
        %v2339 = vcvt.s32.f32 %v2211
        %v2340 = vcvt.s32.f32 %v2212
        %v2341 = vcvt.s32.f32 %v2213
        %v2342 = vcvt.s32.f32 %v2214
        %v2343 = vcvt.s32.f32 %v2215
        %v2344 = vcvt.s32.f32 %v2216
        %v2345 = vcvt.s32.f32 %v2217
        %v2346 = vcvt.s32.f32 %v2218
        %v2347 = vcvt.s32.f32 %v2219
        %v2348 = vcvt.s32.f32 %v2220
        %v2349 = vcvt.s32.f32 %v2221
        %v2350 = vcvt.s32.f32 %v2222
        %v2351 = vcvt.s32.f32 %v2223
        %v2352 = vcvt.s32.f32 %v2224
        %v2353 = vcvt.s32.f32 %v2225
        %v2354 = vcvt.s32.f32 %v2226
        %v2355 = vcvt.s32.f32 %v2227
        %v2356 = vcvt.s32.f32 %v2228
        %v2357 = vcvt.s32.f32 %v2229
        %v2358 = vcvt.s32.f32 %v2230
        %v2359 = vcvt.s32.f32 %v2231
        %v2360 = vcvt.s32.f32 %v2232
        %v2361 = vcvt.s32.f32 %v2233
        %v2362 = vcvt.s32.f32 %v2234
        %v2363 = vcvt.s32.f32 %v2235
        %v2364 = vcvt.s32.f32 %v2236
        %v2365 = vcvt.s32.f32 %v2237
        %v2366 = vcvt.s32.f32 %v2238
        %v2367 = vcvt.s32.f32 %v2239
        %v2368 = vcvt.s32.f32 %v2240
        %v2369 = vcvt.s32.f32 %v2241
        %v2370 = vcvt.s32.f32 %v2242
        %v2371 = vcvt.s32.f32 %v2243
        %v2372 = vcvt.s32.f32 %v2244
        %v2373 = vcvt.s32.f32 %v2245
        %v2374 = vcvt.s32.f32 %v2246
        %v2375 = vcvt.s32.f32 %v2247
        %v2376 = vcvt.s32.f32 %v2248
        %v2377 = vcvt.s32.f32 %v2249
        %v2378 = vcvt.s32.f32 %v2250
        %v2379 = vcvt.s32.f32 %v2251
        %v2380 = vcvt.s32.f32 %v2252
        %v2381 = vcvt.s32.f32 %v2253
        %v2382 = vcvt.s32.f32 %v2254
        %v2383 = vcvt.s32.f32 %v2255
        %v2384 = vcvt.s32.f32 %v2256
        %v2385 = vcvt.s32.f32 %v2257
        %v2386 = vcvt.s32.f32 %v2258
        %v2387 = vcvt.s32.f32 %v2259
        %v2388 = vcvt.s32.f32 %v2260
        %v2389 = vcvt.s32.f32 %v2261
        %v2390 = vcvt.s32.f32 %v2262
        %v2391 = vcvt.s32.f32 %v2263
        %v2392 = vcvt.s32.f32 %v2264
        %v2393 = vcvt.s32.f32 %v2265
        %v2394 = vcvt.s32.f32 %v2266
        %v2395 = vcvt.s32.f32 %v2267
        %v2396 = vcvt.s32.f32 %v2268
        %v2397 = vcvt.s32.f32 %v2269
        %v2398 = vcvt.s32.f32 %v2270
        %v2399 = vcvt.s32.f32 %v2271
        %v2400 = vcvt.s32.f32 %v2272
        %v2401 = vcvt.s32.f32 %v2273
        %v2402 = vcvt.s32.f32 %v2274
        %v2403 = vcvt.s32.f32 %v2275
        %v2404 = vcvt.s32.f32 %v2276
        %v2405 = vcvt.s32.f32 %v2277
        %v2406 = vcvt.s32.f32 %v2278
        %v2407 = vcvt.s32.f32 %v2279
        %v2408 = vcvt.s32.f32 %v2280
        %v2409 = vcvt.s32.f32 %v2281
        %v2410 = vcvt.s32.f32 %v2282
        %v2411 = vcvt.s32.f32 %v2283
        %v2412 = vcvt.s32.f32 %v2284
        %v2413 = vcvt.s32.f32 %v2285
        %v2414 = vcvt.s32.f32 %v2286
        %v2415 = vcvt.s32.f32 %v2287
        %v2416 = vcvt.s32.f32 %v2288
        %v2417 = vcvt.s32.f32 %v2289
        %v2418 = vcvt.s32.f32 %v2290
        %v2419 = vcvt.s32.f32 %v2291
        %v2420 = vcvt.s32.f32 %v2292
        %v2421 = vcvt.s32.f32 %v2293
        %v2422 = vcvt.s32.f32 %v2294
        %v2423 = vcvt.s32.f32 %v2295
        %v2424 = vcvt.s32.f32 %v2296
        %2553 = vset.pattern.permute.xlu0 0
        %2554 = vperm.xlu0 %2553, %v2297
        %v2555 = vpop.permute.xlu0 %2554
        %2556 = vset.pattern.permute.xlu0 0
        %2557 = vperm.xlu0 %2556, %v2298
        %v2558 = vpop.permute.xlu0 %2557
        %2559 = vset.pattern.permute.xlu0 0
        %2560 = vperm.xlu0 %2559, %v2299
        %v2561 = vpop.permute.xlu0 %2560
        %2562 = vset.pattern.permute.xlu0 0
        %2563 = vperm.xlu0 %2562, %v2300
        %v2564 = vpop.permute.xlu0 %2563
        %2565 = vset.pattern.permute.xlu0 0
        %2566 = vperm.xlu0 %2565, %v2301
        %v2567 = vpop.permute.xlu0 %2566
        %2568 = vset.pattern.permute.xlu0 0
        %2569 = vperm.xlu0 %2568, %v2302
        %v2570 = vpop.permute.xlu0 %2569
        %2571 = vset.pattern.permute.xlu0 0
        %2572 = vperm.xlu0 %2571, %v2303
        %v2573 = vpop.permute.xlu0 %2572
        %2574 = vset.pattern.permute.xlu0 0
        %2575 = vperm.xlu0 %2574, %v2304
        %v2576 = vpop.permute.xlu0 %2575
        %2577 = vset.pattern.permute.xlu0 0
        %2578 = vperm.xlu0 %2577, %v2305
        %v2579 = vpop.permute.xlu0 %2578
        %2580 = vset.pattern.permute.xlu0 0
        %2581 = vperm.xlu0 %2580, %v2306
        %v2582 = vpop.permute.xlu0 %2581
        %2583 = vset.pattern.permute.xlu0 0
        %2584 = vperm.xlu0 %2583, %v2307
        %v2585 = vpop.permute.xlu0 %2584
        %2586 = vset.pattern.permute.xlu0 0
        %2587 = vperm.xlu0 %2586, %v2308
        %v2588 = vpop.permute.xlu0 %2587
        %2589 = vset.pattern.permute.xlu0 0
        %2590 = vperm.xlu0 %2589, %v2309
        %v2591 = vpop.permute.xlu0 %2590
        %2592 = vset.pattern.permute.xlu0 0
        %2593 = vperm.xlu0 %2592, %v2310
        %v2594 = vpop.permute.xlu0 %2593
        %2595 = vset.pattern.permute.xlu0 0
        %2596 = vperm.xlu0 %2595, %v2311
        %v2597 = vpop.permute.xlu0 %2596
        %2598 = vset.pattern.permute.xlu0 0
        %2599 = vperm.xlu0 %2598, %v2312
        %v2600 = vpop.permute.xlu0 %2599
        %2601 = vset.pattern.permute.xlu0 0
        %2602 = vperm.xlu0 %2601, %v2313
        %v2603 = vpop.permute.xlu0 %2602
        %2604 = vset.pattern.permute.xlu0 0
        %2605 = vperm.xlu0 %2604, %v2314
        %v2606 = vpop.permute.xlu0 %2605
        %2607 = vset.pattern.permute.xlu0 0
        %2608 = vperm.xlu0 %2607, %v2315
        %v2609 = vpop.permute.xlu0 %2608
        %2610 = vset.pattern.permute.xlu0 0
        %2611 = vperm.xlu0 %2610, %v2316
        %v2612 = vpop.permute.xlu0 %2611
        %2613 = vset.pattern.permute.xlu0 0
        %2614 = vperm.xlu0 %2613, %v2317
        %v2615 = vpop.permute.xlu0 %2614
        %2616 = vset.pattern.permute.xlu0 0
        %2617 = vperm.xlu0 %2616, %v2318
        %v2618 = vpop.permute.xlu0 %2617
        %2619 = vset.pattern.permute.xlu0 0
        %2620 = vperm.xlu0 %2619, %v2319
        %v2621 = vpop.permute.xlu0 %2620
        %2622 = vset.pattern.permute.xlu0 0
        %2623 = vperm.xlu0 %2622, %v2320
        %v2624 = vpop.permute.xlu0 %2623
        %2625 = vset.pattern.permute.xlu0 0
        %2626 = vperm.xlu0 %2625, %v2321
        %v2627 = vpop.permute.xlu0 %2626
        %2628 = vset.pattern.permute.xlu0 0
        %2629 = vperm.xlu0 %2628, %v2322
        %v2630 = vpop.permute.xlu0 %2629
        %2631 = vset.pattern.permute.xlu0 0
        %2632 = vperm.xlu0 %2631, %v2323
        %v2633 = vpop.permute.xlu0 %2632
        %2634 = vset.pattern.permute.xlu0 0
        %2635 = vperm.xlu0 %2634, %v2324
        %v2636 = vpop.permute.xlu0 %2635
        %2637 = vset.pattern.permute.xlu0 0
        %2638 = vperm.xlu0 %2637, %v2325
        %v2639 = vpop.permute.xlu0 %2638
        %2640 = vset.pattern.permute.xlu0 0
        %2641 = vperm.xlu0 %2640, %v2326
        %v2642 = vpop.permute.xlu0 %2641
        %2643 = vset.pattern.permute.xlu0 0
        %2644 = vperm.xlu0 %2643, %v2327
        %v2645 = vpop.permute.xlu0 %2644
        %2646 = vset.pattern.permute.xlu0 0
        %2647 = vperm.xlu0 %2646, %v2328
        %v2648 = vpop.permute.xlu0 %2647
        %2649 = vset.pattern.permute.xlu0 0
        %2650 = vperm.xlu0 %2649, %v2329
        %v2651 = vpop.permute.xlu0 %2650
        %2652 = vset.pattern.permute.xlu0 0
        %2653 = vperm.xlu0 %2652, %v2330
        %v2654 = vpop.permute.xlu0 %2653
        %2655 = vset.pattern.permute.xlu0 0
        %2656 = vperm.xlu0 %2655, %v2331
        %v2657 = vpop.permute.xlu0 %2656
        %2658 = vset.pattern.permute.xlu0 0
        %2659 = vperm.xlu0 %2658, %v2332
        %v2660 = vpop.permute.xlu0 %2659
        %2661 = vset.pattern.permute.xlu0 0
        %2662 = vperm.xlu0 %2661, %v2333
        %v2663 = vpop.permute.xlu0 %2662
        %2664 = vset.pattern.permute.xlu0 0
        %2665 = vperm.xlu0 %2664, %v2334
        %v2666 = vpop.permute.xlu0 %2665
        %2667 = vset.pattern.permute.xlu0 0
        %2668 = vperm.xlu0 %2667, %v2335
        %v2669 = vpop.permute.xlu0 %2668
        %2670 = vset.pattern.permute.xlu0 0
        %2671 = vperm.xlu0 %2670, %v2336
        %v2672 = vpop.permute.xlu0 %2671
        %2673 = vset.pattern.permute.xlu0 0
        %2674 = vperm.xlu0 %2673, %v2337
        %v2675 = vpop.permute.xlu0 %2674
        %2676 = vset.pattern.permute.xlu0 0
        %2677 = vperm.xlu0 %2676, %v2338
        %v2678 = vpop.permute.xlu0 %2677
        %2679 = vset.pattern.permute.xlu0 0
        %2680 = vperm.xlu0 %2679, %v2339
        %v2681 = vpop.permute.xlu0 %2680
        %2682 = vset.pattern.permute.xlu0 0
        %2683 = vperm.xlu0 %2682, %v2340
        %v2684 = vpop.permute.xlu0 %2683
        %2685 = vset.pattern.permute.xlu0 0
        %2686 = vperm.xlu0 %2685, %v2341
        %v2687 = vpop.permute.xlu0 %2686
        %2688 = vset.pattern.permute.xlu0 0
        %2689 = vperm.xlu0 %2688, %v2342
        %v2690 = vpop.permute.xlu0 %2689
        %2691 = vset.pattern.permute.xlu0 0
        %2692 = vperm.xlu0 %2691, %v2343
        %v2693 = vpop.permute.xlu0 %2692
        %2694 = vset.pattern.permute.xlu0 0
        %2695 = vperm.xlu0 %2694, %v2344
        %v2696 = vpop.permute.xlu0 %2695
        %2697 = vset.pattern.permute.xlu0 0
        %2698 = vperm.xlu0 %2697, %v2345
        %v2699 = vpop.permute.xlu0 %2698
        %2700 = vset.pattern.permute.xlu0 0
        %2701 = vperm.xlu0 %2700, %v2346
        %v2702 = vpop.permute.xlu0 %2701
        %2703 = vset.pattern.permute.xlu0 0
        %2704 = vperm.xlu0 %2703, %v2347
        %v2705 = vpop.permute.xlu0 %2704
        %2706 = vset.pattern.permute.xlu0 0
        %2707 = vperm.xlu0 %2706, %v2348
        %v2708 = vpop.permute.xlu0 %2707
        %2709 = vset.pattern.permute.xlu0 0
        %2710 = vperm.xlu0 %2709, %v2349
        %v2711 = vpop.permute.xlu0 %2710
        %2712 = vset.pattern.permute.xlu0 0
        %2713 = vperm.xlu0 %2712, %v2350
        %v2714 = vpop.permute.xlu0 %2713
        %2715 = vset.pattern.permute.xlu0 0
        %2716 = vperm.xlu0 %2715, %v2351
        %v2717 = vpop.permute.xlu0 %2716
        %2718 = vset.pattern.permute.xlu0 0
        %2719 = vperm.xlu0 %2718, %v2352
        %v2720 = vpop.permute.xlu0 %2719
        %2721 = vset.pattern.permute.xlu0 0
        %2722 = vperm.xlu0 %2721, %v2353
        %v2723 = vpop.permute.xlu0 %2722
        %2724 = vset.pattern.permute.xlu0 0
        %2725 = vperm.xlu0 %2724, %v2354
        %v2726 = vpop.permute.xlu0 %2725
        %2727 = vset.pattern.permute.xlu0 0
        %2728 = vperm.xlu0 %2727, %v2355
        %v2729 = vpop.permute.xlu0 %2728
        %2730 = vset.pattern.permute.xlu0 0
        %2731 = vperm.xlu0 %2730, %v2356
        %v2732 = vpop.permute.xlu0 %2731
        %2733 = vset.pattern.permute.xlu0 0
        %2734 = vperm.xlu0 %2733, %v2357
        %v2735 = vpop.permute.xlu0 %2734
        %2736 = vset.pattern.permute.xlu0 0
        %2737 = vperm.xlu0 %2736, %v2358
        %v2738 = vpop.permute.xlu0 %2737
        %2739 = vset.pattern.permute.xlu0 0
        %2740 = vperm.xlu0 %2739, %v2359
        %v2741 = vpop.permute.xlu0 %2740
        %2742 = vset.pattern.permute.xlu0 0
        %2743 = vperm.xlu0 %2742, %v2360
        %v2744 = vpop.permute.xlu0 %2743
        %2745 = vset.pattern.permute.xlu0 0
        %2746 = vperm.xlu0 %2745, %v2361
        %v2747 = vpop.permute.xlu0 %2746
        %2748 = vset.pattern.permute.xlu0 0
        %2749 = vperm.xlu0 %2748, %v2362
        %v2750 = vpop.permute.xlu0 %2749
        %2751 = vset.pattern.permute.xlu0 0
        %2752 = vperm.xlu0 %2751, %v2363
        %v2753 = vpop.permute.xlu0 %2752
        %2754 = vset.pattern.permute.xlu0 0
        %2755 = vperm.xlu0 %2754, %v2364
        %v2756 = vpop.permute.xlu0 %2755
        %2757 = vset.pattern.permute.xlu0 0
        %2758 = vperm.xlu0 %2757, %v2365
        %v2759 = vpop.permute.xlu0 %2758
        %2760 = vset.pattern.permute.xlu0 0
        %2761 = vperm.xlu0 %2760, %v2366
        %v2762 = vpop.permute.xlu0 %2761
        %2763 = vset.pattern.permute.xlu0 0
        %2764 = vperm.xlu0 %2763, %v2367
        %v2765 = vpop.permute.xlu0 %2764
        %2766 = vset.pattern.permute.xlu0 0
        %2767 = vperm.xlu0 %2766, %v2368
        %v2768 = vpop.permute.xlu0 %2767
        %2769 = vset.pattern.permute.xlu0 0
        %2770 = vperm.xlu0 %2769, %v2369
        %v2771 = vpop.permute.xlu0 %2770
        %2772 = vset.pattern.permute.xlu0 0
        %2773 = vperm.xlu0 %2772, %v2370
        %v2774 = vpop.permute.xlu0 %2773
        %2775 = vset.pattern.permute.xlu0 0
        %2776 = vperm.xlu0 %2775, %v2371
        %v2777 = vpop.permute.xlu0 %2776
        %2778 = vset.pattern.permute.xlu0 0
        %2779 = vperm.xlu0 %2778, %v2372
        %v2780 = vpop.permute.xlu0 %2779
        %2781 = vset.pattern.permute.xlu0 0
        %2782 = vperm.xlu0 %2781, %v2373
        %v2783 = vpop.permute.xlu0 %2782
        %2784 = vset.pattern.permute.xlu0 0
        %2785 = vperm.xlu0 %2784, %v2374
        %v2786 = vpop.permute.xlu0 %2785
        %2787 = vset.pattern.permute.xlu0 0
        %2788 = vperm.xlu0 %2787, %v2375
        %v2789 = vpop.permute.xlu0 %2788
        %2790 = vset.pattern.permute.xlu0 0
        %2791 = vperm.xlu0 %2790, %v2376
        %v2792 = vpop.permute.xlu0 %2791
        %2793 = vset.pattern.permute.xlu0 0
        %2794 = vperm.xlu0 %2793, %v2377
        %v2795 = vpop.permute.xlu0 %2794
        %2796 = vset.pattern.permute.xlu0 0
        %2797 = vperm.xlu0 %2796, %v2378
        %v2798 = vpop.permute.xlu0 %2797
        %2799 = vset.pattern.permute.xlu0 0
        %2800 = vperm.xlu0 %2799, %v2379
        %v2801 = vpop.permute.xlu0 %2800
        %2802 = vset.pattern.permute.xlu0 0
        %2803 = vperm.xlu0 %2802, %v2380
        %v2804 = vpop.permute.xlu0 %2803
        %2805 = vset.pattern.permute.xlu0 0
        %2806 = vperm.xlu0 %2805, %v2381
        %v2807 = vpop.permute.xlu0 %2806
        %2808 = vset.pattern.permute.xlu0 0
        %2809 = vperm.xlu0 %2808, %v2382
        %v2810 = vpop.permute.xlu0 %2809
        %2811 = vset.pattern.permute.xlu0 0
        %2812 = vperm.xlu0 %2811, %v2383
        %v2813 = vpop.permute.xlu0 %2812
        %2814 = vset.pattern.permute.xlu0 0
        %2815 = vperm.xlu0 %2814, %v2384
        %v2816 = vpop.permute.xlu0 %2815
        %2817 = vset.pattern.permute.xlu0 0
        %2818 = vperm.xlu0 %2817, %v2385
        %v2819 = vpop.permute.xlu0 %2818
        %2820 = vset.pattern.permute.xlu0 0
        %2821 = vperm.xlu0 %2820, %v2386
        %v2822 = vpop.permute.xlu0 %2821
        %2823 = vset.pattern.permute.xlu0 0
        %2824 = vperm.xlu0 %2823, %v2387
        %v2825 = vpop.permute.xlu0 %2824
        %2826 = vset.pattern.permute.xlu0 0
        %2827 = vperm.xlu0 %2826, %v2388
        %v2828 = vpop.permute.xlu0 %2827
        %2829 = vset.pattern.permute.xlu0 0
        %2830 = vperm.xlu0 %2829, %v2389
        %v2831 = vpop.permute.xlu0 %2830
        %2832 = vset.pattern.permute.xlu0 0
        %2833 = vperm.xlu0 %2832, %v2390
        %v2834 = vpop.permute.xlu0 %2833
        %2835 = vset.pattern.permute.xlu0 0
        %2836 = vperm.xlu0 %2835, %v2391
        %v2837 = vpop.permute.xlu0 %2836
        %2838 = vset.pattern.permute.xlu0 0
        %2839 = vperm.xlu0 %2838, %v2392
        %v2840 = vpop.permute.xlu0 %2839
        %2841 = vset.pattern.permute.xlu0 0
        %2842 = vperm.xlu0 %2841, %v2393
        %v2843 = vpop.permute.xlu0 %2842
        %2844 = vset.pattern.permute.xlu0 0
        %2845 = vperm.xlu0 %2844, %v2394
        %v2846 = vpop.permute.xlu0 %2845
        %2847 = vset.pattern.permute.xlu0 0
        %2848 = vperm.xlu0 %2847, %v2395
        %v2849 = vpop.permute.xlu0 %2848
        %2850 = vset.pattern.permute.xlu0 0
        %2851 = vperm.xlu0 %2850, %v2396
        %v2852 = vpop.permute.xlu0 %2851
        %2853 = vset.pattern.permute.xlu0 0
        %2854 = vperm.xlu0 %2853, %v2397
        %v2855 = vpop.permute.xlu0 %2854
        %2856 = vset.pattern.permute.xlu0 0
        %2857 = vperm.xlu0 %2856, %v2398
        %v2858 = vpop.permute.xlu0 %2857
        %2859 = vset.pattern.permute.xlu0 0
        %2860 = vperm.xlu0 %2859, %v2399
        %v2861 = vpop.permute.xlu0 %2860
        %2862 = vset.pattern.permute.xlu0 0
        %2863 = vperm.xlu0 %2862, %v2400
        %v2864 = vpop.permute.xlu0 %2863
        %2865 = vset.pattern.permute.xlu0 0
        %2866 = vperm.xlu0 %2865, %v2401
        %v2867 = vpop.permute.xlu0 %2866
        %2868 = vset.pattern.permute.xlu0 0
        %2869 = vperm.xlu0 %2868, %v2402
        %v2870 = vpop.permute.xlu0 %2869
        %2871 = vset.pattern.permute.xlu0 0
        %2872 = vperm.xlu0 %2871, %v2403
        %v2873 = vpop.permute.xlu0 %2872
        %2874 = vset.pattern.permute.xlu0 0
        %2875 = vperm.xlu0 %2874, %v2404
        %v2876 = vpop.permute.xlu0 %2875
        %2877 = vset.pattern.permute.xlu0 0
        %2878 = vperm.xlu0 %2877, %v2405
        %v2879 = vpop.permute.xlu0 %2878
        %2880 = vset.pattern.permute.xlu0 0
        %2881 = vperm.xlu0 %2880, %v2406
        %v2882 = vpop.permute.xlu0 %2881
        %2883 = vset.pattern.permute.xlu0 0
        %2884 = vperm.xlu0 %2883, %v2407
        %v2885 = vpop.permute.xlu0 %2884
        %2886 = vset.pattern.permute.xlu0 0
        %2887 = vperm.xlu0 %2886, %v2408
        %v2888 = vpop.permute.xlu0 %2887
        %2889 = vset.pattern.permute.xlu0 0
        %2890 = vperm.xlu0 %2889, %v2409
        %v2891 = vpop.permute.xlu0 %2890
        %2892 = vset.pattern.permute.xlu0 0
        %2893 = vperm.xlu0 %2892, %v2410
        %v2894 = vpop.permute.xlu0 %2893
        %2895 = vset.pattern.permute.xlu0 0
        %2896 = vperm.xlu0 %2895, %v2411
        %v2897 = vpop.permute.xlu0 %2896
        %2898 = vset.pattern.permute.xlu0 0
        %2899 = vperm.xlu0 %2898, %v2412
        %v2900 = vpop.permute.xlu0 %2899
        %2901 = vset.pattern.permute.xlu0 0
        %2902 = vperm.xlu0 %2901, %v2413
        %v2903 = vpop.permute.xlu0 %2902
        %2904 = vset.pattern.permute.xlu0 0
        %2905 = vperm.xlu0 %2904, %v2414
        %v2906 = vpop.permute.xlu0 %2905
        %2907 = vset.pattern.permute.xlu0 0
        %2908 = vperm.xlu0 %2907, %v2415
        %v2909 = vpop.permute.xlu0 %2908
        %2910 = vset.pattern.permute.xlu0 0
        %2911 = vperm.xlu0 %2910, %v2416
        %v2912 = vpop.permute.xlu0 %2911
        %2913 = vset.pattern.permute.xlu0 0
        %2914 = vperm.xlu0 %2913, %v2417
        %v2915 = vpop.permute.xlu0 %2914
        %2916 = vset.pattern.permute.xlu0 0
        %2917 = vperm.xlu0 %2916, %v2418
        %v2918 = vpop.permute.xlu0 %2917
        %2919 = vset.pattern.permute.xlu0 0
        %2920 = vperm.xlu0 %2919, %v2419
        %v2921 = vpop.permute.xlu0 %2920
        %2922 = vset.pattern.permute.xlu0 0
        %2923 = vperm.xlu0 %2922, %v2420
        %v2924 = vpop.permute.xlu0 %2923
        %2925 = vset.pattern.permute.xlu0 0
        %2926 = vperm.xlu0 %2925, %v2421
        %v2927 = vpop.permute.xlu0 %2926
        %2928 = vset.pattern.permute.xlu0 0
        %2929 = vperm.xlu0 %2928, %v2422
        %v2930 = vpop.permute.xlu0 %2929
        %2931 = vset.pattern.permute.xlu0 0
        %2932 = vperm.xlu0 %2931, %v2423
        %v2933 = vpop.permute.xlu0 %2932
        %2934 = vset.pattern.permute.xlu0 0
        %2935 = vperm.xlu0 %2934, %v2424
        %v2936 = vpop.permute.xlu0 %2935
        %v2937 = vlaneseq
        %v2938 = vand.u32 %v2937, 127
        %v2939 = vlaneseq
        %v2940 = vshrl.u32 %v2939, 7
        %v2941 = vsub.s32 %v2938, %v2940
        %v2942 = vrot.slane %v2555, %v2941
        %v2943 = vadd.s32 %v2938, 4294967288
        %v2944 = vlaneseq
        %v2945 = vshrl.u32 %v2944, 7
        %v2946 = vsub.s32 %v2943, %v2945
        %v2947 = vrot.slane %v2558, %v2946
        %vm2948 = vcmask 130112
        %v2949 = vsel %vm2948, %v2947, %v2942
        %v2950 = vlaneseq
        %v2951 = vshrl.u32 %v2950, 7
        %v2952 = vsub.s32 %v2938, %v2951
        %v2953 = vrot.slane %v2561, %v2952
        %v2954 = vlaneseq
        %v2955 = vshrl.u32 %v2954, 7
        %v2956 = vsub.s32 %v2943, %v2955
        %v2957 = vrot.slane %v2564, %v2956
        %v2958 = vsel %vm2948, %v2957, %v2953
        %v2959 = vlaneseq
        %v2960 = vshrl.u32 %v2959, 7
        %v2961 = vsub.s32 %v2938, %v2960
        %v2962 = vrot.slane %v2567, %v2961
        %v2963 = vlaneseq
        %v2964 = vshrl.u32 %v2963, 7
        %v2965 = vsub.s32 %v2943, %v2964
        %v2966 = vrot.slane %v2570, %v2965
        %v2967 = vsel %vm2948, %v2966, %v2962
        %v2968 = vlaneseq
        %v2969 = vshrl.u32 %v2968, 7
        %v2970 = vsub.s32 %v2938, %v2969
        %v2971 = vrot.slane %v2573, %v2970
        %v2972 = vlaneseq
        %v2973 = vshrl.u32 %v2972, 7
        %v2974 = vsub.s32 %v2943, %v2973
        %v2975 = vrot.slane %v2576, %v2974
        %v2976 = vsel %vm2948, %v2975, %v2971
        %v2977 = vlaneseq
        %v2978 = vshrl.u32 %v2977, 7
        %v2979 = vsub.s32 %v2938, %v2978
        %v2980 = vrot.slane %v2579, %v2979
        %v2981 = vlaneseq
        %v2982 = vshrl.u32 %v2981, 7
        %v2983 = vsub.s32 %v2943, %v2982
        %v2984 = vrot.slane %v2582, %v2983
        %v2985 = vsel %vm2948, %v2984, %v2980
        %v2986 = vlaneseq
        %v2987 = vshrl.u32 %v2986, 7
        %v2988 = vsub.s32 %v2938, %v2987
        %v2989 = vrot.slane %v2585, %v2988
        %v2990 = vlaneseq
        %v2991 = vshrl.u32 %v2990, 7
        %v2992 = vsub.s32 %v2943, %v2991
        %v2993 = vrot.slane %v2588, %v2992
        %v2994 = vsel %vm2948, %v2993, %v2989
        %v2995 = vlaneseq
        %v2996 = vshrl.u32 %v2995, 7
        %v2997 = vsub.s32 %v2938, %v2996
        %v2998 = vrot.slane %v2591, %v2997
        %v2999 = vlaneseq
        %v3000 = vshrl.u32 %v2999, 7
        %v3001 = vsub.s32 %v2943, %v3000
        %v3002 = vrot.slane %v2594, %v3001
        %v3003 = vsel %vm2948, %v3002, %v2998
        %v3004 = vlaneseq
        %v3005 = vshrl.u32 %v3004, 7
        %v3006 = vsub.s32 %v2938, %v3005
        %v3007 = vrot.slane %v2597, %v3006
        %v3008 = vlaneseq
        %v3009 = vshrl.u32 %v3008, 7
        %v3010 = vsub.s32 %v2943, %v3009
        %v3011 = vrot.slane %v2600, %v3010
        %v3012 = vsel %vm2948, %v3011, %v3007
        %v3013 = vlaneseq
        %v3014 = vshrl.u32 %v3013, 7
        %v3015 = vsub.s32 %v2938, %v3014
        %v3016 = vrot.slane %v2603, %v3015
        %v3017 = vlaneseq
        %v3018 = vshrl.u32 %v3017, 7
        %v3019 = vsub.s32 %v2943, %v3018
        %v3020 = vrot.slane %v2606, %v3019
        %v3021 = vsel %vm2948, %v3020, %v3016
        %v3022 = vlaneseq
        %v3023 = vshrl.u32 %v3022, 7
        %v3024 = vsub.s32 %v2938, %v3023
        %v3025 = vrot.slane %v2609, %v3024
        %v3026 = vlaneseq
        %v3027 = vshrl.u32 %v3026, 7
        %v3028 = vsub.s32 %v2943, %v3027
        %v3029 = vrot.slane %v2612, %v3028
        %v3030 = vsel %vm2948, %v3029, %v3025
        %v3031 = vlaneseq
        %v3032 = vshrl.u32 %v3031, 7
        %v3033 = vsub.s32 %v2938, %v3032
        %v3034 = vrot.slane %v2615, %v3033
        %v3035 = vlaneseq
        %v3036 = vshrl.u32 %v3035, 7
        %v3037 = vsub.s32 %v2943, %v3036
        %v3038 = vrot.slane %v2618, %v3037
        %v3039 = vsel %vm2948, %v3038, %v3034
        %v3040 = vlaneseq
        %v3041 = vshrl.u32 %v3040, 7
        %v3042 = vsub.s32 %v2938, %v3041
        %v3043 = vrot.slane %v2621, %v3042
        %v3044 = vlaneseq
        %v3045 = vshrl.u32 %v3044, 7
        %v3046 = vsub.s32 %v2943, %v3045
        %v3047 = vrot.slane %v2624, %v3046
        %v3048 = vsel %vm2948, %v3047, %v3043
        %v3049 = vlaneseq
        %v3050 = vshrl.u32 %v3049, 7
        %v3051 = vsub.s32 %v2938, %v3050
        %v3052 = vrot.slane %v2627, %v3051
        %v3053 = vlaneseq
        %v3054 = vshrl.u32 %v3053, 7
        %v3055 = vsub.s32 %v2943, %v3054
        %v3056 = vrot.slane %v2630, %v3055
        %v3057 = vsel %vm2948, %v3056, %v3052
        %v3058 = vlaneseq
        %v3059 = vshrl.u32 %v3058, 7
        %v3060 = vsub.s32 %v2938, %v3059
        %v3061 = vrot.slane %v2633, %v3060
        %v3062 = vlaneseq
        %v3063 = vshrl.u32 %v3062, 7
        %v3064 = vsub.s32 %v2943, %v3063
        %v3065 = vrot.slane %v2636, %v3064
        %v3066 = vsel %vm2948, %v3065, %v3061
        %v3067 = vlaneseq
        %v3068 = vshrl.u32 %v3067, 7
        %v3069 = vsub.s32 %v2938, %v3068
        %v3070 = vrot.slane %v2639, %v3069
        %v3071 = vlaneseq
        %v3072 = vshrl.u32 %v3071, 7
        %v3073 = vsub.s32 %v2943, %v3072
        %v3074 = vrot.slane %v2642, %v3073
        %v3075 = vsel %vm2948, %v3074, %v3070
        %v3076 = vlaneseq
        %v3077 = vshrl.u32 %v3076, 7
        %v3078 = vsub.s32 %v2938, %v3077
        %v3079 = vrot.slane %v2645, %v3078
        %v3080 = vlaneseq
        %v3081 = vshrl.u32 %v3080, 7
        %v3082 = vsub.s32 %v2943, %v3081
        %v3083 = vrot.slane %v2648, %v3082
        %v3084 = vsel %vm2948, %v3083, %v3079
        %v3085 = vlaneseq
        %v3086 = vshrl.u32 %v3085, 7
        %v3087 = vsub.s32 %v2938, %v3086
        %v3088 = vrot.slane %v2651, %v3087
        %v3089 = vlaneseq
        %v3090 = vshrl.u32 %v3089, 7
        %v3091 = vsub.s32 %v2943, %v3090
        %v3092 = vrot.slane %v2654, %v3091
        %v3093 = vsel %vm2948, %v3092, %v3088
        %v3094 = vlaneseq
        %v3095 = vshrl.u32 %v3094, 7
        %v3096 = vsub.s32 %v2938, %v3095
        %v3097 = vrot.slane %v2657, %v3096
        %v3098 = vlaneseq
        %v3099 = vshrl.u32 %v3098, 7
        %v3100 = vsub.s32 %v2943, %v3099
        %v3101 = vrot.slane %v2660, %v3100
        %v3102 = vsel %vm2948, %v3101, %v3097
        %v3103 = vlaneseq
        %v3104 = vshrl.u32 %v3103, 7
        %v3105 = vsub.s32 %v2938, %v3104
        %v3106 = vrot.slane %v2663, %v3105
        %v3107 = vlaneseq
        %v3108 = vshrl.u32 %v3107, 7
        %v3109 = vsub.s32 %v2943, %v3108
        %v3110 = vrot.slane %v2666, %v3109
        %v3111 = vsel %vm2948, %v3110, %v3106
        %v3112 = vlaneseq
        %v3113 = vshrl.u32 %v3112, 7
        %v3114 = vsub.s32 %v2938, %v3113
        %v3115 = vrot.slane %v2669, %v3114
        %v3116 = vlaneseq
        %v3117 = vshrl.u32 %v3116, 7
        %v3118 = vsub.s32 %v2943, %v3117
        %v3119 = vrot.slane %v2672, %v3118
        %v3120 = vsel %vm2948, %v3119, %v3115
        %v3121 = vlaneseq
        %v3122 = vshrl.u32 %v3121, 7
        %v3123 = vsub.s32 %v2938, %v3122
        %v3124 = vrot.slane %v2675, %v3123
        %v3125 = vlaneseq
        %v3126 = vshrl.u32 %v3125, 7
        %v3127 = vsub.s32 %v2943, %v3126
        %v3128 = vrot.slane %v2678, %v3127
        %v3129 = vsel %vm2948, %v3128, %v3124
        %v3130 = vlaneseq
        %v3131 = vshrl.u32 %v3130, 7
        %v3132 = vsub.s32 %v2938, %v3131
        %v3133 = vrot.slane %v2681, %v3132
        %v3134 = vlaneseq
        %v3135 = vshrl.u32 %v3134, 7
        %v3136 = vsub.s32 %v2943, %v3135
        %v3137 = vrot.slane %v2684, %v3136
        %v3138 = vsel %vm2948, %v3137, %v3133
        %v3139 = vlaneseq
        %v3140 = vshrl.u32 %v3139, 7
        %v3141 = vsub.s32 %v2938, %v3140
        %v3142 = vrot.slane %v2687, %v3141
        %v3143 = vlaneseq
        %v3144 = vshrl.u32 %v3143, 7
        %v3145 = vsub.s32 %v2943, %v3144
        %v3146 = vrot.slane %v2690, %v3145
        %v3147 = vsel %vm2948, %v3146, %v3142
        %v3148 = vlaneseq
        %v3149 = vshrl.u32 %v3148, 7
        %v3150 = vsub.s32 %v2938, %v3149
        %v3151 = vrot.slane %v2693, %v3150
        %v3152 = vlaneseq
        %v3153 = vshrl.u32 %v3152, 7
        %v3154 = vsub.s32 %v2943, %v3153
        %v3155 = vrot.slane %v2696, %v3154
        %v3156 = vsel %vm2948, %v3155, %v3151
        %v3157 = vlaneseq
        %v3158 = vshrl.u32 %v3157, 7
        %v3159 = vsub.s32 %v2938, %v3158
        %v3160 = vrot.slane %v2699, %v3159
        %v3161 = vlaneseq
        %v3162 = vshrl.u32 %v3161, 7
        %v3163 = vsub.s32 %v2943, %v3162
        %v3164 = vrot.slane %v2702, %v3163
        %v3165 = vsel %vm2948, %v3164, %v3160
        %v3166 = vlaneseq
        %v3167 = vshrl.u32 %v3166, 7
        %v3168 = vsub.s32 %v2938, %v3167
        %v3169 = vrot.slane %v2705, %v3168
        %v3170 = vlaneseq
        %v3171 = vshrl.u32 %v3170, 7
        %v3172 = vsub.s32 %v2943, %v3171
        %v3173 = vrot.slane %v2708, %v3172
        %v3174 = vsel %vm2948, %v3173, %v3169
        %v3175 = vlaneseq
        %v3176 = vshrl.u32 %v3175, 7
        %v3177 = vsub.s32 %v2938, %v3176
        %v3178 = vrot.slane %v2711, %v3177
        %v3179 = vlaneseq
        %v3180 = vshrl.u32 %v3179, 7
        %v3181 = vsub.s32 %v2943, %v3180
        %v3182 = vrot.slane %v2714, %v3181
        %v3183 = vsel %vm2948, %v3182, %v3178
        %v3184 = vlaneseq
        %v3185 = vshrl.u32 %v3184, 7
        %v3186 = vsub.s32 %v2938, %v3185
        %v3187 = vrot.slane %v2717, %v3186
        %v3188 = vlaneseq
        %v3189 = vshrl.u32 %v3188, 7
        %v3190 = vsub.s32 %v2943, %v3189
        %v3191 = vrot.slane %v2720, %v3190
        %v3192 = vsel %vm2948, %v3191, %v3187
        %v3193 = vlaneseq
        %v3194 = vshrl.u32 %v3193, 7
        %v3195 = vsub.s32 %v2938, %v3194
        %v3196 = vrot.slane %v2723, %v3195
        %v3197 = vlaneseq
        %v3198 = vshrl.u32 %v3197, 7
        %v3199 = vsub.s32 %v2943, %v3198
        %v3200 = vrot.slane %v2726, %v3199
        %v3201 = vsel %vm2948, %v3200, %v3196
        %v3202 = vlaneseq
        %v3203 = vshrl.u32 %v3202, 7
        %v3204 = vsub.s32 %v2938, %v3203
        %v3205 = vrot.slane %v2729, %v3204
        %v3206 = vlaneseq
        %v3207 = vshrl.u32 %v3206, 7
        %v3208 = vsub.s32 %v2943, %v3207
        %v3209 = vrot.slane %v2732, %v3208
        %v3210 = vsel %vm2948, %v3209, %v3205
        %v3211 = vlaneseq
        %v3212 = vshrl.u32 %v3211, 7
        %v3213 = vsub.s32 %v2938, %v3212
        %v3214 = vrot.slane %v2735, %v3213
        %v3215 = vlaneseq
        %v3216 = vshrl.u32 %v3215, 7
        %v3217 = vsub.s32 %v2943, %v3216
        %v3218 = vrot.slane %v2738, %v3217
        %v3219 = vsel %vm2948, %v3218, %v3214
        %v3220 = vlaneseq
        %v3221 = vshrl.u32 %v3220, 7
        %v3222 = vsub.s32 %v2938, %v3221
        %v3223 = vrot.slane %v2741, %v3222
        %v3224 = vlaneseq
        %v3225 = vshrl.u32 %v3224, 7
        %v3226 = vsub.s32 %v2943, %v3225
        %v3227 = vrot.slane %v2744, %v3226
        %v3228 = vsel %vm2948, %v3227, %v3223
        %v3229 = vlaneseq
        %v3230 = vshrl.u32 %v3229, 7
        %v3231 = vsub.s32 %v2938, %v3230
        %v3232 = vrot.slane %v2747, %v3231
        %v3233 = vlaneseq
        %v3234 = vshrl.u32 %v3233, 7
        %v3235 = vsub.s32 %v2943, %v3234
        %v3236 = vrot.slane %v2750, %v3235
        %v3237 = vsel %vm2948, %v3236, %v3232
        %v3238 = vlaneseq
        %v3239 = vshrl.u32 %v3238, 7
        %v3240 = vsub.s32 %v2938, %v3239
        %v3241 = vrot.slane %v2753, %v3240
        %v3242 = vlaneseq
        %v3243 = vshrl.u32 %v3242, 7
        %v3244 = vsub.s32 %v2943, %v3243
        %v3245 = vrot.slane %v2756, %v3244
        %v3246 = vsel %vm2948, %v3245, %v3241
        %v3247 = vlaneseq
        %v3248 = vshrl.u32 %v3247, 7
        %v3249 = vsub.s32 %v2938, %v3248
        %v3250 = vrot.slane %v2759, %v3249
        %v3251 = vlaneseq
        %v3252 = vshrl.u32 %v3251, 7
        %v3253 = vsub.s32 %v2943, %v3252
        %v3254 = vrot.slane %v2762, %v3253
        %v3255 = vsel %vm2948, %v3254, %v3250
        %v3256 = vlaneseq
        %v3257 = vshrl.u32 %v3256, 7
        %v3258 = vsub.s32 %v2938, %v3257
        %v3259 = vrot.slane %v2765, %v3258
        %v3260 = vlaneseq
        %v3261 = vshrl.u32 %v3260, 7
        %v3262 = vsub.s32 %v2943, %v3261
        %v3263 = vrot.slane %v2768, %v3262
        %v3264 = vsel %vm2948, %v3263, %v3259
        %v3265 = vlaneseq
        %v3266 = vshrl.u32 %v3265, 7
        %v3267 = vsub.s32 %v2938, %v3266
        %v3268 = vrot.slane %v2771, %v3267
        %v3269 = vlaneseq
        %v3270 = vshrl.u32 %v3269, 7
        %v3271 = vsub.s32 %v2943, %v3270
        %v3272 = vrot.slane %v2774, %v3271
        %v3273 = vsel %vm2948, %v3272, %v3268
        %v3274 = vlaneseq
        %v3275 = vshrl.u32 %v3274, 7
        %v3276 = vsub.s32 %v2938, %v3275
        %v3277 = vrot.slane %v2777, %v3276
        %v3278 = vlaneseq
        %v3279 = vshrl.u32 %v3278, 7
        %v3280 = vsub.s32 %v2943, %v3279
        %v3281 = vrot.slane %v2780, %v3280
        %v3282 = vsel %vm2948, %v3281, %v3277
        %v3283 = vlaneseq
        %v3284 = vshrl.u32 %v3283, 7
        %v3285 = vsub.s32 %v2938, %v3284
        %v3286 = vrot.slane %v2783, %v3285
        %v3287 = vlaneseq
        %v3288 = vshrl.u32 %v3287, 7
        %v3289 = vsub.s32 %v2943, %v3288
        %v3290 = vrot.slane %v2786, %v3289
        %v3291 = vsel %vm2948, %v3290, %v3286
        %v3292 = vlaneseq
        %v3293 = vshrl.u32 %v3292, 7
        %v3294 = vsub.s32 %v2938, %v3293
        %v3295 = vrot.slane %v2789, %v3294
        %v3296 = vlaneseq
        %v3297 = vshrl.u32 %v3296, 7
        %v3298 = vsub.s32 %v2943, %v3297
        %v3299 = vrot.slane %v2792, %v3298
        %v3300 = vsel %vm2948, %v3299, %v3295
        %v3301 = vlaneseq
        %v3302 = vshrl.u32 %v3301, 7
        %v3303 = vsub.s32 %v2938, %v3302
        %v3304 = vrot.slane %v2795, %v3303
        %v3305 = vlaneseq
        %v3306 = vshrl.u32 %v3305, 7
        %v3307 = vsub.s32 %v2943, %v3306
        %v3308 = vrot.slane %v2798, %v3307
        %v3309 = vsel %vm2948, %v3308, %v3304
        %v3310 = vlaneseq
        %v3311 = vshrl.u32 %v3310, 7
        %v3312 = vsub.s32 %v2938, %v3311
        %v3313 = vrot.slane %v2801, %v3312
        %v3314 = vlaneseq
        %v3315 = vshrl.u32 %v3314, 7
        %v3316 = vsub.s32 %v2943, %v3315
        %v3317 = vrot.slane %v2804, %v3316
        %v3318 = vsel %vm2948, %v3317, %v3313
        %v3319 = vlaneseq
        %v3320 = vshrl.u32 %v3319, 7
        %v3321 = vsub.s32 %v2938, %v3320
        %v3322 = vrot.slane %v2807, %v3321
        %v3323 = vlaneseq
        %v3324 = vshrl.u32 %v3323, 7
        %v3325 = vsub.s32 %v2943, %v3324
        %v3326 = vrot.slane %v2810, %v3325
        %v3327 = vsel %vm2948, %v3326, %v3322
        %v3328 = vlaneseq
        %v3329 = vshrl.u32 %v3328, 7
        %v3330 = vsub.s32 %v2938, %v3329
        %v3331 = vrot.slane %v2813, %v3330
        %v3332 = vlaneseq
        %v3333 = vshrl.u32 %v3332, 7
        %v3334 = vsub.s32 %v2943, %v3333
        %v3335 = vrot.slane %v2816, %v3334
        %v3336 = vsel %vm2948, %v3335, %v3331
        %v3337 = vlaneseq
        %v3338 = vshrl.u32 %v3337, 7
        %v3339 = vsub.s32 %v2938, %v3338
        %v3340 = vrot.slane %v2819, %v3339
        %v3341 = vlaneseq
        %v3342 = vshrl.u32 %v3341, 7
        %v3343 = vsub.s32 %v2943, %v3342
        %v3344 = vrot.slane %v2822, %v3343
        %v3345 = vsel %vm2948, %v3344, %v3340
        %v3346 = vlaneseq
        %v3347 = vshrl.u32 %v3346, 7
        %v3348 = vsub.s32 %v2938, %v3347
        %v3349 = vrot.slane %v2825, %v3348
        %v3350 = vlaneseq
        %v3351 = vshrl.u32 %v3350, 7
        %v3352 = vsub.s32 %v2943, %v3351
        %v3353 = vrot.slane %v2828, %v3352
        %v3354 = vsel %vm2948, %v3353, %v3349
        %v3355 = vlaneseq
        %v3356 = vshrl.u32 %v3355, 7
        %v3357 = vsub.s32 %v2938, %v3356
        %v3358 = vrot.slane %v2831, %v3357
        %v3359 = vlaneseq
        %v3360 = vshrl.u32 %v3359, 7
        %v3361 = vsub.s32 %v2943, %v3360
        %v3362 = vrot.slane %v2834, %v3361
        %v3363 = vsel %vm2948, %v3362, %v3358
        %v3364 = vlaneseq
        %v3365 = vshrl.u32 %v3364, 7
        %v3366 = vsub.s32 %v2938, %v3365
        %v3367 = vrot.slane %v2837, %v3366
        %v3368 = vlaneseq
        %v3369 = vshrl.u32 %v3368, 7
        %v3370 = vsub.s32 %v2943, %v3369
        %v3371 = vrot.slane %v2840, %v3370
        %v3372 = vsel %vm2948, %v3371, %v3367
        %v3373 = vlaneseq
        %v3374 = vshrl.u32 %v3373, 7
        %v3375 = vsub.s32 %v2938, %v3374
        %v3376 = vrot.slane %v2843, %v3375
        %v3377 = vlaneseq
        %v3378 = vshrl.u32 %v3377, 7
        %v3379 = vsub.s32 %v2943, %v3378
        %v3380 = vrot.slane %v2846, %v3379
        %v3381 = vsel %vm2948, %v3380, %v3376
        %v3382 = vlaneseq
        %v3383 = vshrl.u32 %v3382, 7
        %v3384 = vsub.s32 %v2938, %v3383
        %v3385 = vrot.slane %v2849, %v3384
        %v3386 = vlaneseq
        %v3387 = vshrl.u32 %v3386, 7
        %v3388 = vsub.s32 %v2943, %v3387
        %v3389 = vrot.slane %v2852, %v3388
        %v3390 = vsel %vm2948, %v3389, %v3385
        %v3391 = vlaneseq
        %v3392 = vshrl.u32 %v3391, 7
        %v3393 = vsub.s32 %v2938, %v3392
        %v3394 = vrot.slane %v2855, %v3393
        %v3395 = vlaneseq
        %v3396 = vshrl.u32 %v3395, 7
        %v3397 = vsub.s32 %v2943, %v3396
        %v3398 = vrot.slane %v2858, %v3397
        %v3399 = vsel %vm2948, %v3398, %v3394
        %v3400 = vlaneseq
        %v3401 = vshrl.u32 %v3400, 7
        %v3402 = vsub.s32 %v2938, %v3401
        %v3403 = vrot.slane %v2861, %v3402
        %v3404 = vlaneseq
        %v3405 = vshrl.u32 %v3404, 7
        %v3406 = vsub.s32 %v2943, %v3405
        %v3407 = vrot.slane %v2864, %v3406
        %v3408 = vsel %vm2948, %v3407, %v3403
        %v3409 = vlaneseq
        %v3410 = vshrl.u32 %v3409, 7
        %v3411 = vsub.s32 %v2938, %v3410
        %v3412 = vrot.slane %v2867, %v3411
        %v3413 = vlaneseq
        %v3414 = vshrl.u32 %v3413, 7
        %v3415 = vsub.s32 %v2943, %v3414
        %v3416 = vrot.slane %v2870, %v3415
        %v3417 = vsel %vm2948, %v3416, %v3412
        %v3418 = vlaneseq
        %v3419 = vshrl.u32 %v3418, 7
        %v3420 = vsub.s32 %v2938, %v3419
        %v3421 = vrot.slane %v2873, %v3420
        %v3422 = vlaneseq
        %v3423 = vshrl.u32 %v3422, 7
        %v3424 = vsub.s32 %v2943, %v3423
        %v3425 = vrot.slane %v2876, %v3424
        %v3426 = vsel %vm2948, %v3425, %v3421
        %v3427 = vlaneseq
        %v3428 = vshrl.u32 %v3427, 7
        %v3429 = vsub.s32 %v2938, %v3428
        %v3430 = vrot.slane %v2879, %v3429
        %v3431 = vlaneseq
        %v3432 = vshrl.u32 %v3431, 7
        %v3433 = vsub.s32 %v2943, %v3432
        %v3434 = vrot.slane %v2882, %v3433
        %v3435 = vsel %vm2948, %v3434, %v3430
        %v3436 = vlaneseq
        %v3437 = vshrl.u32 %v3436, 7
        %v3438 = vsub.s32 %v2938, %v3437
        %v3439 = vrot.slane %v2885, %v3438
        %v3440 = vlaneseq
        %v3441 = vshrl.u32 %v3440, 7
        %v3442 = vsub.s32 %v2943, %v3441
        %v3443 = vrot.slane %v2888, %v3442
        %v3444 = vsel %vm2948, %v3443, %v3439
        %v3445 = vlaneseq
        %v3446 = vshrl.u32 %v3445, 7
        %v3447 = vsub.s32 %v2938, %v3446
        %v3448 = vrot.slane %v2891, %v3447
        %v3449 = vlaneseq
        %v3450 = vshrl.u32 %v3449, 7
        %v3451 = vsub.s32 %v2943, %v3450
        %v3452 = vrot.slane %v2894, %v3451
        %v3453 = vsel %vm2948, %v3452, %v3448
        %v3454 = vlaneseq
        %v3455 = vshrl.u32 %v3454, 7
        %v3456 = vsub.s32 %v2938, %v3455
        %v3457 = vrot.slane %v2897, %v3456
        %v3458 = vlaneseq
        %v3459 = vshrl.u32 %v3458, 7
        %v3460 = vsub.s32 %v2943, %v3459
        %v3461 = vrot.slane %v2900, %v3460
        %v3462 = vsel %vm2948, %v3461, %v3457
        %v3463 = vlaneseq
        %v3464 = vshrl.u32 %v3463, 7
        %v3465 = vsub.s32 %v2938, %v3464
        %v3466 = vrot.slane %v2903, %v3465
        %v3467 = vlaneseq
        %v3468 = vshrl.u32 %v3467, 7
        %v3469 = vsub.s32 %v2943, %v3468
        %v3470 = vrot.slane %v2906, %v3469
        %v3471 = vsel %vm2948, %v3470, %v3466
        %v3472 = vlaneseq
        %v3473 = vshrl.u32 %v3472, 7
        %v3474 = vsub.s32 %v2938, %v3473
        %v3475 = vrot.slane %v2909, %v3474
        %v3476 = vlaneseq
        %v3477 = vshrl.u32 %v3476, 7
        %v3478 = vsub.s32 %v2943, %v3477
        %v3479 = vrot.slane %v2912, %v3478
        %v3480 = vsel %vm2948, %v3479, %v3475
        %v3481 = vlaneseq
        %v3482 = vshrl.u32 %v3481, 7
        %v3483 = vsub.s32 %v2938, %v3482
        %v3484 = vrot.slane %v2915, %v3483
        %v3485 = vlaneseq
        %v3486 = vshrl.u32 %v3485, 7
        %v3487 = vsub.s32 %v2943, %v3486
        %v3488 = vrot.slane %v2918, %v3487
        %v3489 = vsel %vm2948, %v3488, %v3484
        %v3490 = vlaneseq
        %v3491 = vshrl.u32 %v3490, 7
        %v3492 = vsub.s32 %v2938, %v3491
        %v3493 = vrot.slane %v2921, %v3492
        %v3494 = vlaneseq
        %v3495 = vshrl.u32 %v3494, 7
        %v3496 = vsub.s32 %v2943, %v3495
        %v3497 = vrot.slane %v2924, %v3496
        %v3498 = vsel %vm2948, %v3497, %v3493
        %v3499 = vlaneseq
        %v3500 = vshrl.u32 %v3499, 7
        %v3501 = vsub.s32 %v2938, %v3500
        %v3502 = vrot.slane %v2927, %v3501
        %v3503 = vlaneseq
        %v3504 = vshrl.u32 %v3503, 7
        %v3505 = vsub.s32 %v2943, %v3504
        %v3506 = vrot.slane %v2930, %v3505
        %v3507 = vsel %vm2948, %v3506, %v3502
        %v3508 = vlaneseq
        %v3509 = vshrl.u32 %v3508, 7
        %v3510 = vsub.s32 %v2938, %v3509
        %v3511 = vrot.slane %v2933, %v3510
        %v3512 = vlaneseq
        %v3513 = vshrl.u32 %v3512, 7
        %v3514 = vsub.s32 %v2943, %v3513
        %v3515 = vrot.slane %v2936, %v3514
        %v3516 = vsel %vm2948, %v3515, %v3511
        %v3517 = vsel %vm907, %v2958, %v2949
        %v3518 = vsel %vm909, %v2967, %v3517
        %v3519 = vsel %vm911, %v2976, %v3518
        %vm3520 = vcmask 1044484
        %v3521 = vsel %vm3520, %v2985, %v3519
        %vm3522 = vcmask 1045509
        %v3523 = vsel %vm3522, %v2994, %v3521
        %vm3524 = vcmask 1046534
        %v3525 = vsel %vm3524, %v3003, %v3523
        %vm3526 = vcmask 1047559
        %v3527 = vsel %vm3526, %v3012, %v3525
        %v3528 = vsel %vm907, %v3030, %v3021
        %v3529 = vsel %vm909, %v3039, %v3528
        %v3530 = vsel %vm911, %v3048, %v3529
        %v3531 = vsel %vm3520, %v3057, %v3530
        %v3532 = vsel %vm3522, %v3066, %v3531
        %v3533 = vsel %vm3524, %v3075, %v3532
        %v3534 = vsel %vm3526, %v3084, %v3533
        %v3535 = vsel %vm907, %v3102, %v3093
        %v3536 = vsel %vm909, %v3111, %v3535
        %v3537 = vsel %vm911, %v3120, %v3536
        %v3538 = vsel %vm3520, %v3129, %v3537
        %v3539 = vsel %vm3522, %v3138, %v3538
        %v3540 = vsel %vm3524, %v3147, %v3539
        %v3541 = vsel %vm3526, %v3156, %v3540
        %v3542 = vsel %vm907, %v3174, %v3165
        %v3543 = vsel %vm909, %v3183, %v3542
        %v3544 = vsel %vm911, %v3192, %v3543
        %v3545 = vsel %vm3520, %v3201, %v3544
        %v3546 = vsel %vm3522, %v3210, %v3545
        %v3547 = vsel %vm3524, %v3219, %v3546
        %v3548 = vsel %vm3526, %v3228, %v3547
        %v3549 = vsel %vm907, %v3246, %v3237
        %v3550 = vsel %vm909, %v3255, %v3549
        %v3551 = vsel %vm911, %v3264, %v3550
        %v3552 = vsel %vm3520, %v3273, %v3551
        %v3553 = vsel %vm3522, %v3282, %v3552
        %v3554 = vsel %vm3524, %v3291, %v3553
        %v3555 = vsel %vm3526, %v3300, %v3554
        %v3556 = vsel %vm907, %v3318, %v3309
        %v3557 = vsel %vm909, %v3327, %v3556
        %v3558 = vsel %vm911, %v3336, %v3557
        %v3559 = vsel %vm3520, %v3345, %v3558
        %v3560 = vsel %vm3522, %v3354, %v3559
        %v3561 = vsel %vm3524, %v3363, %v3560
        %v3562 = vsel %vm3526, %v3372, %v3561
        %v3563 = vsel %vm907, %v3390, %v3381
        %v3564 = vsel %vm909, %v3399, %v3563
        %v3565 = vsel %vm911, %v3408, %v3564
        %v3566 = vsel %vm3520, %v3417, %v3565
        %v3567 = vsel %vm3522, %v3426, %v3566
        %v3568 = vsel %vm3524, %v3435, %v3567
        %v3569 = vsel %vm3526, %v3444, %v3568
        %v3570 = vsel %vm907, %v3462, %v3453
        %v3571 = vsel %vm909, %v3471, %v3570
        %v3572 = vsel %vm911, %v3480, %v3571
        %v3573 = vsel %vm3520, %v3489, %v3572
        %v3574 = vsel %vm3522, %v3498, %v3573
        %v3575 = vsel %vm3524, %v3507, %v3574
        %v3576 = vsel %vm3526, %v3516, %v3575
        %vm3585 = vcmask 130048
        %v3586 = vsel %vm3585, %v3527, 0.0
        %3587 = vadd.xlane.f32.xlu0 %v3586
        %v3588 = vpop.xlane.xlu0 %3587
        %v3589 = vsel %vm3585, %v3534, 0.0
        %3590 = vadd.xlane.f32.xlu0 %v3589
        %v3591 = vpop.xlane.xlu0 %3590
        %v3592 = vsel %vm3585, %v3541, 0.0
        %3593 = vadd.xlane.f32.xlu0 %v3592
        %v3594 = vpop.xlane.xlu0 %3593
        %v3595 = vsel %vm3585, %v3548, 0.0
        %3596 = vadd.xlane.f32.xlu0 %v3595
        %v3597 = vpop.xlane.xlu0 %3596
        %v3598 = vsel %vm3585, %v3555, 0.0
        %3599 = vadd.xlane.f32.xlu0 %v3598
        %v3600 = vpop.xlane.xlu0 %3599
        %v3601 = vsel %vm3585, %v3562, 0.0
        %3602 = vadd.xlane.f32.xlu0 %v3601
        %v3603 = vpop.xlane.xlu0 %3602
        %v3604 = vsel %vm3585, %v3569, 0.0
        %3605 = vadd.xlane.f32.xlu0 %v3604
        %v3606 = vpop.xlane.xlu0 %3605
        %v3607 = vsel %vm3585, %v3576, 0.0
        %3608 = vadd.xlane.f32.xlu0 %v3607
        %v3609 = vpop.xlane.xlu0 %3608
        %v3610 = vmul.f32 %v2297, %v1681
        %v3611 = vmul.f32 %v2298, %v1682
        %v3612 = vmul.f32 %v2299, %v1681
        %v3613 = vmul.f32 %v2300, %v1682
        %v3614 = vmul.f32 %v2301, %v1681
        %v3615 = vmul.f32 %v2302, %v1682
        %v3616 = vmul.f32 %v2303, %v1681
        %v3617 = vmul.f32 %v2304, %v1682
        %v3618 = vmul.f32 %v2305, %v1681
        %v3619 = vmul.f32 %v2306, %v1682
        %v3620 = vmul.f32 %v2307, %v1681
        %v3621 = vmul.f32 %v2308, %v1682
        %v3622 = vmul.f32 %v2309, %v1681
        %v3623 = vmul.f32 %v2310, %v1682
        %v3624 = vmul.f32 %v2311, %v1681
        %v3625 = vmul.f32 %v2312, %v1682
        %v3626 = vmul.f32 %v2313, %v1681
        %v3627 = vmul.f32 %v2314, %v1682
        %v3628 = vmul.f32 %v2315, %v1681
        %v3629 = vmul.f32 %v2316, %v1682
        %v3630 = vmul.f32 %v2317, %v1681
        %v3631 = vmul.f32 %v2318, %v1682
        %v3632 = vmul.f32 %v2319, %v1681
        %v3633 = vmul.f32 %v2320, %v1682
        %v3634 = vmul.f32 %v2321, %v1681
        %v3635 = vmul.f32 %v2322, %v1682
        %v3636 = vmul.f32 %v2323, %v1681
        %v3637 = vmul.f32 %v2324, %v1682
        %v3638 = vmul.f32 %v2325, %v1681
        %v3639 = vmul.f32 %v2326, %v1682
        %v3640 = vmul.f32 %v2327, %v1681
        %v3641 = vmul.f32 %v2328, %v1682
        %v3642 = vmul.f32 %v2329, %v1683
        %v3643 = vmul.f32 %v2330, %v1684
        %v3644 = vmul.f32 %v2331, %v1683
        %v3645 = vmul.f32 %v2332, %v1684
        %v3646 = vmul.f32 %v2333, %v1683
        %v3647 = vmul.f32 %v2334, %v1684
        %v3648 = vmul.f32 %v2335, %v1683
        %v3649 = vmul.f32 %v2336, %v1684
        %v3650 = vmul.f32 %v2337, %v1683
        %v3651 = vmul.f32 %v2338, %v1684
        %v3652 = vmul.f32 %v2339, %v1683
        %v3653 = vmul.f32 %v2340, %v1684
        %v3654 = vmul.f32 %v2341, %v1683
        %v3655 = vmul.f32 %v2342, %v1684
        %v3656 = vmul.f32 %v2343, %v1683
        %v3657 = vmul.f32 %v2344, %v1684
        %v3658 = vmul.f32 %v2345, %v1683
        %v3659 = vmul.f32 %v2346, %v1684
        %v3660 = vmul.f32 %v2347, %v1683
        %v3661 = vmul.f32 %v2348, %v1684
        %v3662 = vmul.f32 %v2349, %v1683
        %v3663 = vmul.f32 %v2350, %v1684
        %v3664 = vmul.f32 %v2351, %v1683
        %v3665 = vmul.f32 %v2352, %v1684
        %v3666 = vmul.f32 %v2353, %v1683
        %v3667 = vmul.f32 %v2354, %v1684
        %v3668 = vmul.f32 %v2355, %v1683
        %v3669 = vmul.f32 %v2356, %v1684
        %v3670 = vmul.f32 %v2357, %v1683
        %v3671 = vmul.f32 %v2358, %v1684
        %v3672 = vmul.f32 %v2359, %v1683
        %v3673 = vmul.f32 %v2360, %v1684
        %v3674 = vmul.f32 %v2361, %v1685
        %v3675 = vmul.f32 %v2362, %v1686
        %v3676 = vmul.f32 %v2363, %v1685
        %v3677 = vmul.f32 %v2364, %v1686
        %v3678 = vmul.f32 %v2365, %v1685
        %v3679 = vmul.f32 %v2366, %v1686
        %v3680 = vmul.f32 %v2367, %v1685
        %v3681 = vmul.f32 %v2368, %v1686
        %v3682 = vmul.f32 %v2369, %v1685
        %v3683 = vmul.f32 %v2370, %v1686
        %v3684 = vmul.f32 %v2371, %v1685
        %v3685 = vmul.f32 %v2372, %v1686
        %v3686 = vmul.f32 %v2373, %v1685
        %v3687 = vmul.f32 %v2374, %v1686
        %v3688 = vmul.f32 %v2375, %v1685
        %v3689 = vmul.f32 %v2376, %v1686
        %v3690 = vmul.f32 %v2377, %v1685
        %v3691 = vmul.f32 %v2378, %v1686
        %v3692 = vmul.f32 %v2379, %v1685
        %v3693 = vmul.f32 %v2380, %v1686
        %v3694 = vmul.f32 %v2381, %v1685
        %v3695 = vmul.f32 %v2382, %v1686
        %v3696 = vmul.f32 %v2383, %v1685
        %v3697 = vmul.f32 %v2384, %v1686
        %v3698 = vmul.f32 %v2385, %v1685
        %v3699 = vmul.f32 %v2386, %v1686
        %v3700 = vmul.f32 %v2387, %v1685
        %v3701 = vmul.f32 %v2388, %v1686
        %v3702 = vmul.f32 %v2389, %v1685
        %v3703 = vmul.f32 %v2390, %v1686
        %v3704 = vmul.f32 %v2391, %v1685
        %v3705 = vmul.f32 %v2392, %v1686
        %v3706 = vmul.f32 %v2393, %v1687
        %v3707 = vmul.f32 %v2394, %v1688
        %v3708 = vmul.f32 %v2395, %v1687
        %v3709 = vmul.f32 %v2396, %v1688
        %v3710 = vmul.f32 %v2397, %v1687
        %v3711 = vmul.f32 %v2398, %v1688
        %v3712 = vmul.f32 %v2399, %v1687
        %v3713 = vmul.f32 %v2400, %v1688
        %v3714 = vmul.f32 %v2401, %v1687
        %v3715 = vmul.f32 %v2402, %v1688
        %v3716 = vmul.f32 %v2403, %v1687
        %v3717 = vmul.f32 %v2404, %v1688
        %v3718 = vmul.f32 %v2405, %v1687
        %v3719 = vmul.f32 %v2406, %v1688
        %v3720 = vmul.f32 %v2407, %v1687
        %v3721 = vmul.f32 %v2408, %v1688
        %v3722 = vmul.f32 %v2409, %v1687
        %v3723 = vmul.f32 %v2410, %v1688
        %v3724 = vmul.f32 %v2411, %v1687
        %v3725 = vmul.f32 %v2412, %v1688
        %v3726 = vmul.f32 %v2413, %v1687
        %v3727 = vmul.f32 %v2414, %v1688
        %v3728 = vmul.f32 %v2415, %v1687
        %v3729 = vmul.f32 %v2416, %v1688
        %v3730 = vmul.f32 %v2417, %v1687
        %v3731 = vmul.f32 %v2418, %v1688
        %v3732 = vmul.f32 %v2419, %v1687
        %v3733 = vmul.f32 %v2420, %v1688
        %v3734 = vmul.f32 %v2421, %v1687
        %v3735 = vmul.f32 %v2422, %v1688
        %v3736 = vmul.f32 %v2423, %v1687
        %v3737 = vmul.f32 %v2424, %v1688
        %3866 = vset.pattern.permute.xlu0 0
        %3867 = vperm.xlu0 %3866, %v3610
        %v3868 = vpop.permute.xlu0 %3867
        %3869 = vset.pattern.permute.xlu0 0
        %3870 = vperm.xlu0 %3869, %v3611
        %v3871 = vpop.permute.xlu0 %3870
        %3872 = vset.pattern.permute.xlu0 0
        %3873 = vperm.xlu0 %3872, %v3612
        %v3874 = vpop.permute.xlu0 %3873
        %3875 = vset.pattern.permute.xlu0 0
        %3876 = vperm.xlu0 %3875, %v3613
        %v3877 = vpop.permute.xlu0 %3876
        %3878 = vset.pattern.permute.xlu0 0
        %3879 = vperm.xlu0 %3878, %v3614
        %v3880 = vpop.permute.xlu0 %3879
        %3881 = vset.pattern.permute.xlu0 0
        %3882 = vperm.xlu0 %3881, %v3615
        %v3883 = vpop.permute.xlu0 %3882
        %3884 = vset.pattern.permute.xlu0 0
        %3885 = vperm.xlu0 %3884, %v3616
        %v3886 = vpop.permute.xlu0 %3885
        %3887 = vset.pattern.permute.xlu0 0
        %3888 = vperm.xlu0 %3887, %v3617
        %v3889 = vpop.permute.xlu0 %3888
        %3890 = vset.pattern.permute.xlu0 0
        %3891 = vperm.xlu0 %3890, %v3618
        %v3892 = vpop.permute.xlu0 %3891
        %3893 = vset.pattern.permute.xlu0 0
        %3894 = vperm.xlu0 %3893, %v3619
        %v3895 = vpop.permute.xlu0 %3894
        %3896 = vset.pattern.permute.xlu0 0
        %3897 = vperm.xlu0 %3896, %v3620
        %v3898 = vpop.permute.xlu0 %3897
        %3899 = vset.pattern.permute.xlu0 0
        %3900 = vperm.xlu0 %3899, %v3621
        %v3901 = vpop.permute.xlu0 %3900
        %3902 = vset.pattern.permute.xlu0 0
        %3903 = vperm.xlu0 %3902, %v3622
        %v3904 = vpop.permute.xlu0 %3903
        %3905 = vset.pattern.permute.xlu0 0
        %3906 = vperm.xlu0 %3905, %v3623
        %v3907 = vpop.permute.xlu0 %3906
        %3908 = vset.pattern.permute.xlu0 0
        %3909 = vperm.xlu0 %3908, %v3624
        %v3910 = vpop.permute.xlu0 %3909
        %3911 = vset.pattern.permute.xlu0 0
        %3912 = vperm.xlu0 %3911, %v3625
        %v3913 = vpop.permute.xlu0 %3912
        %3914 = vset.pattern.permute.xlu0 0
        %3915 = vperm.xlu0 %3914, %v3626
        %v3916 = vpop.permute.xlu0 %3915
        %3917 = vset.pattern.permute.xlu0 0
        %3918 = vperm.xlu0 %3917, %v3627
        %v3919 = vpop.permute.xlu0 %3918
        %3920 = vset.pattern.permute.xlu0 0
        %3921 = vperm.xlu0 %3920, %v3628
        %v3922 = vpop.permute.xlu0 %3921
        %3923 = vset.pattern.permute.xlu0 0
        %3924 = vperm.xlu0 %3923, %v3629
        %v3925 = vpop.permute.xlu0 %3924
        %3926 = vset.pattern.permute.xlu0 0
        %3927 = vperm.xlu0 %3926, %v3630
        %v3928 = vpop.permute.xlu0 %3927
        %3929 = vset.pattern.permute.xlu0 0
        %3930 = vperm.xlu0 %3929, %v3631
        %v3931 = vpop.permute.xlu0 %3930
        %3932 = vset.pattern.permute.xlu0 0
        %3933 = vperm.xlu0 %3932, %v3632
        %v3934 = vpop.permute.xlu0 %3933
        %3935 = vset.pattern.permute.xlu0 0
        %3936 = vperm.xlu0 %3935, %v3633
        %v3937 = vpop.permute.xlu0 %3936
        %3938 = vset.pattern.permute.xlu0 0
        %3939 = vperm.xlu0 %3938, %v3634
        %v3940 = vpop.permute.xlu0 %3939
        %3941 = vset.pattern.permute.xlu0 0
        %3942 = vperm.xlu0 %3941, %v3635
        %v3943 = vpop.permute.xlu0 %3942
        %3944 = vset.pattern.permute.xlu0 0
        %3945 = vperm.xlu0 %3944, %v3636
        %v3946 = vpop.permute.xlu0 %3945
        %3947 = vset.pattern.permute.xlu0 0
        %3948 = vperm.xlu0 %3947, %v3637
        %v3949 = vpop.permute.xlu0 %3948
        %3950 = vset.pattern.permute.xlu0 0
        %3951 = vperm.xlu0 %3950, %v3638
        %v3952 = vpop.permute.xlu0 %3951
        %3953 = vset.pattern.permute.xlu0 0
        %3954 = vperm.xlu0 %3953, %v3639
        %v3955 = vpop.permute.xlu0 %3954
        %3956 = vset.pattern.permute.xlu0 0
        %3957 = vperm.xlu0 %3956, %v3640
        %v3958 = vpop.permute.xlu0 %3957
        %3959 = vset.pattern.permute.xlu0 0
        %3960 = vperm.xlu0 %3959, %v3641
        %v3961 = vpop.permute.xlu0 %3960
        %3962 = vset.pattern.permute.xlu0 0
        %3963 = vperm.xlu0 %3962, %v3642
        %v3964 = vpop.permute.xlu0 %3963
        %3965 = vset.pattern.permute.xlu0 0
        %3966 = vperm.xlu0 %3965, %v3643
        %v3967 = vpop.permute.xlu0 %3966
        %3968 = vset.pattern.permute.xlu0 0
        %3969 = vperm.xlu0 %3968, %v3644
        %v3970 = vpop.permute.xlu0 %3969
        %3971 = vset.pattern.permute.xlu0 0
        %3972 = vperm.xlu0 %3971, %v3645
        %v3973 = vpop.permute.xlu0 %3972
        %3974 = vset.pattern.permute.xlu0 0
        %3975 = vperm.xlu0 %3974, %v3646
        %v3976 = vpop.permute.xlu0 %3975
        %3977 = vset.pattern.permute.xlu0 0
        %3978 = vperm.xlu0 %3977, %v3647
        %v3979 = vpop.permute.xlu0 %3978
        %3980 = vset.pattern.permute.xlu0 0
        %3981 = vperm.xlu0 %3980, %v3648
        %v3982 = vpop.permute.xlu0 %3981
        %3983 = vset.pattern.permute.xlu0 0
        %3984 = vperm.xlu0 %3983, %v3649
        %v3985 = vpop.permute.xlu0 %3984
        %3986 = vset.pattern.permute.xlu0 0
        %3987 = vperm.xlu0 %3986, %v3650
        %v3988 = vpop.permute.xlu0 %3987
        %3989 = vset.pattern.permute.xlu0 0
        %3990 = vperm.xlu0 %3989, %v3651
        %v3991 = vpop.permute.xlu0 %3990
        %3992 = vset.pattern.permute.xlu0 0
        %3993 = vperm.xlu0 %3992, %v3652
        %v3994 = vpop.permute.xlu0 %3993
        %3995 = vset.pattern.permute.xlu0 0
        %3996 = vperm.xlu0 %3995, %v3653
        %v3997 = vpop.permute.xlu0 %3996
        %3998 = vset.pattern.permute.xlu0 0
        %3999 = vperm.xlu0 %3998, %v3654
        %v4000 = vpop.permute.xlu0 %3999
        %4001 = vset.pattern.permute.xlu0 0
        %4002 = vperm.xlu0 %4001, %v3655
        %v4003 = vpop.permute.xlu0 %4002
        %4004 = vset.pattern.permute.xlu0 0
        %4005 = vperm.xlu0 %4004, %v3656
        %v4006 = vpop.permute.xlu0 %4005
        %4007 = vset.pattern.permute.xlu0 0
        %4008 = vperm.xlu0 %4007, %v3657
        %v4009 = vpop.permute.xlu0 %4008
        %4010 = vset.pattern.permute.xlu0 0
        %4011 = vperm.xlu0 %4010, %v3658
        %v4012 = vpop.permute.xlu0 %4011
        %4013 = vset.pattern.permute.xlu0 0
        %4014 = vperm.xlu0 %4013, %v3659
        %v4015 = vpop.permute.xlu0 %4014
        %4016 = vset.pattern.permute.xlu0 0
        %4017 = vperm.xlu0 %4016, %v3660
        %v4018 = vpop.permute.xlu0 %4017
        %4019 = vset.pattern.permute.xlu0 0
        %4020 = vperm.xlu0 %4019, %v3661
        %v4021 = vpop.permute.xlu0 %4020
        %4022 = vset.pattern.permute.xlu0 0
        %4023 = vperm.xlu0 %4022, %v3662
        %v4024 = vpop.permute.xlu0 %4023
        %4025 = vset.pattern.permute.xlu0 0
        %4026 = vperm.xlu0 %4025, %v3663
        %v4027 = vpop.permute.xlu0 %4026
        %4028 = vset.pattern.permute.xlu0 0
        %4029 = vperm.xlu0 %4028, %v3664
        %v4030 = vpop.permute.xlu0 %4029
        %4031 = vset.pattern.permute.xlu0 0
        %4032 = vperm.xlu0 %4031, %v3665
        %v4033 = vpop.permute.xlu0 %4032
        %4034 = vset.pattern.permute.xlu0 0
        %4035 = vperm.xlu0 %4034, %v3666
        %v4036 = vpop.permute.xlu0 %4035
        %4037 = vset.pattern.permute.xlu0 0
        %4038 = vperm.xlu0 %4037, %v3667
        %v4039 = vpop.permute.xlu0 %4038
        %4040 = vset.pattern.permute.xlu0 0
        %4041 = vperm.xlu0 %4040, %v3668
        %v4042 = vpop.permute.xlu0 %4041
        %4043 = vset.pattern.permute.xlu0 0
        %4044 = vperm.xlu0 %4043, %v3669
        %v4045 = vpop.permute.xlu0 %4044
        %4046 = vset.pattern.permute.xlu0 0
        %4047 = vperm.xlu0 %4046, %v3670
        %v4048 = vpop.permute.xlu0 %4047
        %4049 = vset.pattern.permute.xlu0 0
        %4050 = vperm.xlu0 %4049, %v3671
        %v4051 = vpop.permute.xlu0 %4050
        %4052 = vset.pattern.permute.xlu0 0
        %4053 = vperm.xlu0 %4052, %v3672
        %v4054 = vpop.permute.xlu0 %4053
        %4055 = vset.pattern.permute.xlu0 0
        %4056 = vperm.xlu0 %4055, %v3673
        %v4057 = vpop.permute.xlu0 %4056
        %4058 = vset.pattern.permute.xlu0 0
        %4059 = vperm.xlu0 %4058, %v3674
        %v4060 = vpop.permute.xlu0 %4059
        %4061 = vset.pattern.permute.xlu0 0
        %4062 = vperm.xlu0 %4061, %v3675
        %v4063 = vpop.permute.xlu0 %4062
        %4064 = vset.pattern.permute.xlu0 0
        %4065 = vperm.xlu0 %4064, %v3676
        %v4066 = vpop.permute.xlu0 %4065
        %4067 = vset.pattern.permute.xlu0 0
        %4068 = vperm.xlu0 %4067, %v3677
        %v4069 = vpop.permute.xlu0 %4068
        %4070 = vset.pattern.permute.xlu0 0
        %4071 = vperm.xlu0 %4070, %v3678
        %v4072 = vpop.permute.xlu0 %4071
        %4073 = vset.pattern.permute.xlu0 0
        %4074 = vperm.xlu0 %4073, %v3679
        %v4075 = vpop.permute.xlu0 %4074
        %4076 = vset.pattern.permute.xlu0 0
        %4077 = vperm.xlu0 %4076, %v3680
        %v4078 = vpop.permute.xlu0 %4077
        %4079 = vset.pattern.permute.xlu0 0
        %4080 = vperm.xlu0 %4079, %v3681
        %v4081 = vpop.permute.xlu0 %4080
        %4082 = vset.pattern.permute.xlu0 0
        %4083 = vperm.xlu0 %4082, %v3682
        %v4084 = vpop.permute.xlu0 %4083
        %4085 = vset.pattern.permute.xlu0 0
        %4086 = vperm.xlu0 %4085, %v3683
        %v4087 = vpop.permute.xlu0 %4086
        %4088 = vset.pattern.permute.xlu0 0
        %4089 = vperm.xlu0 %4088, %v3684
        %v4090 = vpop.permute.xlu0 %4089
        %4091 = vset.pattern.permute.xlu0 0
        %4092 = vperm.xlu0 %4091, %v3685
        %v4093 = vpop.permute.xlu0 %4092
        %4094 = vset.pattern.permute.xlu0 0
        %4095 = vperm.xlu0 %4094, %v3686
        %v4096 = vpop.permute.xlu0 %4095
        %4097 = vset.pattern.permute.xlu0 0
        %4098 = vperm.xlu0 %4097, %v3687
        %v4099 = vpop.permute.xlu0 %4098
        %4100 = vset.pattern.permute.xlu0 0
        %4101 = vperm.xlu0 %4100, %v3688
        %v4102 = vpop.permute.xlu0 %4101
        %4103 = vset.pattern.permute.xlu0 0
        %4104 = vperm.xlu0 %4103, %v3689
        %v4105 = vpop.permute.xlu0 %4104
        %4106 = vset.pattern.permute.xlu0 0
        %4107 = vperm.xlu0 %4106, %v3690
        %v4108 = vpop.permute.xlu0 %4107
        %4109 = vset.pattern.permute.xlu0 0
        %4110 = vperm.xlu0 %4109, %v3691
        %v4111 = vpop.permute.xlu0 %4110
        %4112 = vset.pattern.permute.xlu0 0
        %4113 = vperm.xlu0 %4112, %v3692
        %v4114 = vpop.permute.xlu0 %4113
        %4115 = vset.pattern.permute.xlu0 0
        %4116 = vperm.xlu0 %4115, %v3693
        %v4117 = vpop.permute.xlu0 %4116
        %4118 = vset.pattern.permute.xlu0 0
        %4119 = vperm.xlu0 %4118, %v3694
        %v4120 = vpop.permute.xlu0 %4119
        %4121 = vset.pattern.permute.xlu0 0
        %4122 = vperm.xlu0 %4121, %v3695
        %v4123 = vpop.permute.xlu0 %4122
        %4124 = vset.pattern.permute.xlu0 0
        %4125 = vperm.xlu0 %4124, %v3696
        %v4126 = vpop.permute.xlu0 %4125
        %4127 = vset.pattern.permute.xlu0 0
        %4128 = vperm.xlu0 %4127, %v3697
        %v4129 = vpop.permute.xlu0 %4128
        %4130 = vset.pattern.permute.xlu0 0
        %4131 = vperm.xlu0 %4130, %v3698
        %v4132 = vpop.permute.xlu0 %4131
        %4133 = vset.pattern.permute.xlu0 0
        %4134 = vperm.xlu0 %4133, %v3699
        %v4135 = vpop.permute.xlu0 %4134
        %4136 = vset.pattern.permute.xlu0 0
        %4137 = vperm.xlu0 %4136, %v3700
        %v4138 = vpop.permute.xlu0 %4137
        %4139 = vset.pattern.permute.xlu0 0
        %4140 = vperm.xlu0 %4139, %v3701
        %v4141 = vpop.permute.xlu0 %4140
        %4142 = vset.pattern.permute.xlu0 0
        %4143 = vperm.xlu0 %4142, %v3702
        %v4144 = vpop.permute.xlu0 %4143
        %4145 = vset.pattern.permute.xlu0 0
        %4146 = vperm.xlu0 %4145, %v3703
        %v4147 = vpop.permute.xlu0 %4146
        %4148 = vset.pattern.permute.xlu0 0
        %4149 = vperm.xlu0 %4148, %v3704
        %v4150 = vpop.permute.xlu0 %4149
        %4151 = vset.pattern.permute.xlu0 0
        %4152 = vperm.xlu0 %4151, %v3705
        %v4153 = vpop.permute.xlu0 %4152
        %4154 = vset.pattern.permute.xlu0 0
        %4155 = vperm.xlu0 %4154, %v3706
        %v4156 = vpop.permute.xlu0 %4155
        %4157 = vset.pattern.permute.xlu0 0
        %4158 = vperm.xlu0 %4157, %v3707
        %v4159 = vpop.permute.xlu0 %4158
        %4160 = vset.pattern.permute.xlu0 0
        %4161 = vperm.xlu0 %4160, %v3708
        %v4162 = vpop.permute.xlu0 %4161
        %4163 = vset.pattern.permute.xlu0 0
        %4164 = vperm.xlu0 %4163, %v3709
        %v4165 = vpop.permute.xlu0 %4164
        %4166 = vset.pattern.permute.xlu0 0
        %4167 = vperm.xlu0 %4166, %v3710
        %v4168 = vpop.permute.xlu0 %4167
        %4169 = vset.pattern.permute.xlu0 0
        %4170 = vperm.xlu0 %4169, %v3711
        %v4171 = vpop.permute.xlu0 %4170
        %4172 = vset.pattern.permute.xlu0 0
        %4173 = vperm.xlu0 %4172, %v3712
        %v4174 = vpop.permute.xlu0 %4173
        %4175 = vset.pattern.permute.xlu0 0
        %4176 = vperm.xlu0 %4175, %v3713
        %v4177 = vpop.permute.xlu0 %4176
        %4178 = vset.pattern.permute.xlu0 0
        %4179 = vperm.xlu0 %4178, %v3714
        %v4180 = vpop.permute.xlu0 %4179
        %4181 = vset.pattern.permute.xlu0 0
        %4182 = vperm.xlu0 %4181, %v3715
        %v4183 = vpop.permute.xlu0 %4182
        %4184 = vset.pattern.permute.xlu0 0
        %4185 = vperm.xlu0 %4184, %v3716
        %v4186 = vpop.permute.xlu0 %4185
        %4187 = vset.pattern.permute.xlu0 0
        %4188 = vperm.xlu0 %4187, %v3717
        %v4189 = vpop.permute.xlu0 %4188
        %4190 = vset.pattern.permute.xlu0 0
        %4191 = vperm.xlu0 %4190, %v3718
        %v4192 = vpop.permute.xlu0 %4191
        %4193 = vset.pattern.permute.xlu0 0
        %4194 = vperm.xlu0 %4193, %v3719
        %v4195 = vpop.permute.xlu0 %4194
        %4196 = vset.pattern.permute.xlu0 0
        %4197 = vperm.xlu0 %4196, %v3720
        %v4198 = vpop.permute.xlu0 %4197
        %4199 = vset.pattern.permute.xlu0 0
        %4200 = vperm.xlu0 %4199, %v3721
        %v4201 = vpop.permute.xlu0 %4200
        %4202 = vset.pattern.permute.xlu0 0
        %4203 = vperm.xlu0 %4202, %v3722
        %v4204 = vpop.permute.xlu0 %4203
        %4205 = vset.pattern.permute.xlu0 0
        %4206 = vperm.xlu0 %4205, %v3723
        %v4207 = vpop.permute.xlu0 %4206
        %4208 = vset.pattern.permute.xlu0 0
        %4209 = vperm.xlu0 %4208, %v3724
        %v4210 = vpop.permute.xlu0 %4209
        %4211 = vset.pattern.permute.xlu0 0
        %4212 = vperm.xlu0 %4211, %v3725
        %v4213 = vpop.permute.xlu0 %4212
        %4214 = vset.pattern.permute.xlu0 0
        %4215 = vperm.xlu0 %4214, %v3726
        %v4216 = vpop.permute.xlu0 %4215
        %4217 = vset.pattern.permute.xlu0 0
        %4218 = vperm.xlu0 %4217, %v3727
        %v4219 = vpop.permute.xlu0 %4218
        %4220 = vset.pattern.permute.xlu0 0
        %4221 = vperm.xlu0 %4220, %v3728
        %v4222 = vpop.permute.xlu0 %4221
        %4223 = vset.pattern.permute.xlu0 0
        %4224 = vperm.xlu0 %4223, %v3729
        %v4225 = vpop.permute.xlu0 %4224
        %4226 = vset.pattern.permute.xlu0 0
        %4227 = vperm.xlu0 %4226, %v3730
        %v4228 = vpop.permute.xlu0 %4227
        %4229 = vset.pattern.permute.xlu0 0
        %4230 = vperm.xlu0 %4229, %v3731
        %v4231 = vpop.permute.xlu0 %4230
        %4232 = vset.pattern.permute.xlu0 0
        %4233 = vperm.xlu0 %4232, %v3732
        %v4234 = vpop.permute.xlu0 %4233
        %4235 = vset.pattern.permute.xlu0 0
        %4236 = vperm.xlu0 %4235, %v3733
        %v4237 = vpop.permute.xlu0 %4236
        %4238 = vset.pattern.permute.xlu0 0
        %4239 = vperm.xlu0 %4238, %v3734
        %v4240 = vpop.permute.xlu0 %4239
        %4241 = vset.pattern.permute.xlu0 0
        %4242 = vperm.xlu0 %4241, %v3735
        %v4243 = vpop.permute.xlu0 %4242
        %4244 = vset.pattern.permute.xlu0 0
        %4245 = vperm.xlu0 %4244, %v3736
        %v4246 = vpop.permute.xlu0 %4245
        %4247 = vset.pattern.permute.xlu0 0
        %4248 = vperm.xlu0 %4247, %v3737
        %v4249 = vpop.permute.xlu0 %4248
        %v4250 = vlaneseq
        %v4251 = vshrl.u32 %v4250, 7
        %v4252 = vsub.s32 %v2938, %v4251
        %v4253 = vrot.slane %v3868, %v4252
        %v4254 = vlaneseq
        %v4255 = vshrl.u32 %v4254, 7
        %v4256 = vsub.s32 %v2943, %v4255
        %v4257 = vrot.slane %v3871, %v4256
        %v4258 = vsel %vm2948, %v4257, %v4253
        %v4259 = vlaneseq
        %v4260 = vshrl.u32 %v4259, 7
        %v4261 = vsub.s32 %v2938, %v4260
        %v4262 = vrot.slane %v3874, %v4261
        %v4263 = vlaneseq
        %v4264 = vshrl.u32 %v4263, 7
        %v4265 = vsub.s32 %v2943, %v4264
        %v4266 = vrot.slane %v3877, %v4265
        %v4267 = vsel %vm2948, %v4266, %v4262
        %v4268 = vlaneseq
        %v4269 = vshrl.u32 %v4268, 7
        %v4270 = vsub.s32 %v2938, %v4269
        %v4271 = vrot.slane %v3880, %v4270
        %v4272 = vlaneseq
        %v4273 = vshrl.u32 %v4272, 7
        %v4274 = vsub.s32 %v2943, %v4273
        %v4275 = vrot.slane %v3883, %v4274
        %v4276 = vsel %vm2948, %v4275, %v4271
        %v4277 = vlaneseq
        %v4278 = vshrl.u32 %v4277, 7
        %v4279 = vsub.s32 %v2938, %v4278
        %v4280 = vrot.slane %v3886, %v4279
        %v4281 = vlaneseq
        %v4282 = vshrl.u32 %v4281, 7
        %v4283 = vsub.s32 %v2943, %v4282
        %v4284 = vrot.slane %v3889, %v4283
        %v4285 = vsel %vm2948, %v4284, %v4280
        %v4286 = vlaneseq
        %v4287 = vshrl.u32 %v4286, 7
        %v4288 = vsub.s32 %v2938, %v4287
        %v4289 = vrot.slane %v3892, %v4288
        %v4290 = vlaneseq
        %v4291 = vshrl.u32 %v4290, 7
        %v4292 = vsub.s32 %v2943, %v4291
        %v4293 = vrot.slane %v3895, %v4292
        %v4294 = vsel %vm2948, %v4293, %v4289
        %v4295 = vlaneseq
        %v4296 = vshrl.u32 %v4295, 7
        %v4297 = vsub.s32 %v2938, %v4296
        %v4298 = vrot.slane %v3898, %v4297
        %v4299 = vlaneseq
        %v4300 = vshrl.u32 %v4299, 7
        %v4301 = vsub.s32 %v2943, %v4300
        %v4302 = vrot.slane %v3901, %v4301
        %v4303 = vsel %vm2948, %v4302, %v4298
        %v4304 = vlaneseq
        %v4305 = vshrl.u32 %v4304, 7
        %v4306 = vsub.s32 %v2938, %v4305
        %v4307 = vrot.slane %v3904, %v4306
        %v4308 = vlaneseq
        %v4309 = vshrl.u32 %v4308, 7
        %v4310 = vsub.s32 %v2943, %v4309
        %v4311 = vrot.slane %v3907, %v4310
        %v4312 = vsel %vm2948, %v4311, %v4307
        %v4313 = vlaneseq
        %v4314 = vshrl.u32 %v4313, 7
        %v4315 = vsub.s32 %v2938, %v4314
        %v4316 = vrot.slane %v3910, %v4315
        %v4317 = vlaneseq
        %v4318 = vshrl.u32 %v4317, 7
        %v4319 = vsub.s32 %v2943, %v4318
        %v4320 = vrot.slane %v3913, %v4319
        %v4321 = vsel %vm2948, %v4320, %v4316
        %v4322 = vlaneseq
        %v4323 = vshrl.u32 %v4322, 7
        %v4324 = vsub.s32 %v2938, %v4323
        %v4325 = vrot.slane %v3916, %v4324
        %v4326 = vlaneseq
        %v4327 = vshrl.u32 %v4326, 7
        %v4328 = vsub.s32 %v2943, %v4327
        %v4329 = vrot.slane %v3919, %v4328
        %v4330 = vsel %vm2948, %v4329, %v4325
        %v4331 = vlaneseq
        %v4332 = vshrl.u32 %v4331, 7
        %v4333 = vsub.s32 %v2938, %v4332
        %v4334 = vrot.slane %v3922, %v4333
        %v4335 = vlaneseq
        %v4336 = vshrl.u32 %v4335, 7
        %v4337 = vsub.s32 %v2943, %v4336
        %v4338 = vrot.slane %v3925, %v4337
        %v4339 = vsel %vm2948, %v4338, %v4334
        %v4340 = vlaneseq
        %v4341 = vshrl.u32 %v4340, 7
        %v4342 = vsub.s32 %v2938, %v4341
        %v4343 = vrot.slane %v3928, %v4342
        %v4344 = vlaneseq
        %v4345 = vshrl.u32 %v4344, 7
        %v4346 = vsub.s32 %v2943, %v4345
        %v4347 = vrot.slane %v3931, %v4346
        %v4348 = vsel %vm2948, %v4347, %v4343
        %v4349 = vlaneseq
        %v4350 = vshrl.u32 %v4349, 7
        %v4351 = vsub.s32 %v2938, %v4350
        %v4352 = vrot.slane %v3934, %v4351
        %v4353 = vlaneseq
        %v4354 = vshrl.u32 %v4353, 7
        %v4355 = vsub.s32 %v2943, %v4354
        %v4356 = vrot.slane %v3937, %v4355
        %v4357 = vsel %vm2948, %v4356, %v4352
        %v4358 = vlaneseq
        %v4359 = vshrl.u32 %v4358, 7
        %v4360 = vsub.s32 %v2938, %v4359
        %v4361 = vrot.slane %v3940, %v4360
        %v4362 = vlaneseq
        %v4363 = vshrl.u32 %v4362, 7
        %v4364 = vsub.s32 %v2943, %v4363
        %v4365 = vrot.slane %v3943, %v4364
        %v4366 = vsel %vm2948, %v4365, %v4361
        %v4367 = vlaneseq
        %v4368 = vshrl.u32 %v4367, 7
        %v4369 = vsub.s32 %v2938, %v4368
        %v4370 = vrot.slane %v3946, %v4369
        %v4371 = vlaneseq
        %v4372 = vshrl.u32 %v4371, 7
        %v4373 = vsub.s32 %v2943, %v4372
        %v4374 = vrot.slane %v3949, %v4373
        %v4375 = vsel %vm2948, %v4374, %v4370
        %v4376 = vlaneseq
        %v4377 = vshrl.u32 %v4376, 7
        %v4378 = vsub.s32 %v2938, %v4377
        %v4379 = vrot.slane %v3952, %v4378
        %v4380 = vlaneseq
        %v4381 = vshrl.u32 %v4380, 7
        %v4382 = vsub.s32 %v2943, %v4381
        %v4383 = vrot.slane %v3955, %v4382
        %v4384 = vsel %vm2948, %v4383, %v4379
        %v4385 = vlaneseq
        %v4386 = vshrl.u32 %v4385, 7
        %v4387 = vsub.s32 %v2938, %v4386
        %v4388 = vrot.slane %v3958, %v4387
        %v4389 = vlaneseq
        %v4390 = vshrl.u32 %v4389, 7
        %v4391 = vsub.s32 %v2943, %v4390
        %v4392 = vrot.slane %v3961, %v4391
        %v4393 = vsel %vm2948, %v4392, %v4388
        %v4394 = vlaneseq
        %v4395 = vshrl.u32 %v4394, 7
        %v4396 = vsub.s32 %v2938, %v4395
        %v4397 = vrot.slane %v3964, %v4396
        %v4398 = vlaneseq
        %v4399 = vshrl.u32 %v4398, 7
        %v4400 = vsub.s32 %v2943, %v4399
        %v4401 = vrot.slane %v3967, %v4400
        %v4402 = vsel %vm2948, %v4401, %v4397
        %v4403 = vlaneseq
        %v4404 = vshrl.u32 %v4403, 7
        %v4405 = vsub.s32 %v2938, %v4404
        %v4406 = vrot.slane %v3970, %v4405
        %v4407 = vlaneseq
        %v4408 = vshrl.u32 %v4407, 7
        %v4409 = vsub.s32 %v2943, %v4408
        %v4410 = vrot.slane %v3973, %v4409
        %v4411 = vsel %vm2948, %v4410, %v4406
        %v4412 = vlaneseq
        %v4413 = vshrl.u32 %v4412, 7
        %v4414 = vsub.s32 %v2938, %v4413
        %v4415 = vrot.slane %v3976, %v4414
        %v4416 = vlaneseq
        %v4417 = vshrl.u32 %v4416, 7
        %v4418 = vsub.s32 %v2943, %v4417
        %v4419 = vrot.slane %v3979, %v4418
        %v4420 = vsel %vm2948, %v4419, %v4415
        %v4421 = vlaneseq
        %v4422 = vshrl.u32 %v4421, 7
        %v4423 = vsub.s32 %v2938, %v4422
        %v4424 = vrot.slane %v3982, %v4423
        %v4425 = vlaneseq
        %v4426 = vshrl.u32 %v4425, 7
        %v4427 = vsub.s32 %v2943, %v4426
        %v4428 = vrot.slane %v3985, %v4427
        %v4429 = vsel %vm2948, %v4428, %v4424
        %v4430 = vlaneseq
        %v4431 = vshrl.u32 %v4430, 7
        %v4432 = vsub.s32 %v2938, %v4431
        %v4433 = vrot.slane %v3988, %v4432
        %v4434 = vlaneseq
        %v4435 = vshrl.u32 %v4434, 7
        %v4436 = vsub.s32 %v2943, %v4435
        %v4437 = vrot.slane %v3991, %v4436
        %v4438 = vsel %vm2948, %v4437, %v4433
        %v4439 = vlaneseq
        %v4440 = vshrl.u32 %v4439, 7
        %v4441 = vsub.s32 %v2938, %v4440
        %v4442 = vrot.slane %v3994, %v4441
        %v4443 = vlaneseq
        %v4444 = vshrl.u32 %v4443, 7
        %v4445 = vsub.s32 %v2943, %v4444
        %v4446 = vrot.slane %v3997, %v4445
        %v4447 = vsel %vm2948, %v4446, %v4442
        %v4448 = vlaneseq
        %v4449 = vshrl.u32 %v4448, 7
        %v4450 = vsub.s32 %v2938, %v4449
        %v4451 = vrot.slane %v4000, %v4450
        %v4452 = vlaneseq
        %v4453 = vshrl.u32 %v4452, 7
        %v4454 = vsub.s32 %v2943, %v4453
        %v4455 = vrot.slane %v4003, %v4454
        %v4456 = vsel %vm2948, %v4455, %v4451
        %v4457 = vlaneseq
        %v4458 = vshrl.u32 %v4457, 7
        %v4459 = vsub.s32 %v2938, %v4458
        %v4460 = vrot.slane %v4006, %v4459
        %v4461 = vlaneseq
        %v4462 = vshrl.u32 %v4461, 7
        %v4463 = vsub.s32 %v2943, %v4462
        %v4464 = vrot.slane %v4009, %v4463
        %v4465 = vsel %vm2948, %v4464, %v4460
        %v4466 = vlaneseq
        %v4467 = vshrl.u32 %v4466, 7
        %v4468 = vsub.s32 %v2938, %v4467
        %v4469 = vrot.slane %v4012, %v4468
        %v4470 = vlaneseq
        %v4471 = vshrl.u32 %v4470, 7
        %v4472 = vsub.s32 %v2943, %v4471
        %v4473 = vrot.slane %v4015, %v4472
        %v4474 = vsel %vm2948, %v4473, %v4469
        %v4475 = vlaneseq
        %v4476 = vshrl.u32 %v4475, 7
        %v4477 = vsub.s32 %v2938, %v4476
        %v4478 = vrot.slane %v4018, %v4477
        %v4479 = vlaneseq
        %v4480 = vshrl.u32 %v4479, 7
        %v4481 = vsub.s32 %v2943, %v4480
        %v4482 = vrot.slane %v4021, %v4481
        %v4483 = vsel %vm2948, %v4482, %v4478
        %v4484 = vlaneseq
        %v4485 = vshrl.u32 %v4484, 7
        %v4486 = vsub.s32 %v2938, %v4485
        %v4487 = vrot.slane %v4024, %v4486
        %v4488 = vlaneseq
        %v4489 = vshrl.u32 %v4488, 7
        %v4490 = vsub.s32 %v2943, %v4489
        %v4491 = vrot.slane %v4027, %v4490
        %v4492 = vsel %vm2948, %v4491, %v4487
        %v4493 = vlaneseq
        %v4494 = vshrl.u32 %v4493, 7
        %v4495 = vsub.s32 %v2938, %v4494
        %v4496 = vrot.slane %v4030, %v4495
        %v4497 = vlaneseq
        %v4498 = vshrl.u32 %v4497, 7
        %v4499 = vsub.s32 %v2943, %v4498
        %v4500 = vrot.slane %v4033, %v4499
        %v4501 = vsel %vm2948, %v4500, %v4496
        %v4502 = vlaneseq
        %v4503 = vshrl.u32 %v4502, 7
        %v4504 = vsub.s32 %v2938, %v4503
        %v4505 = vrot.slane %v4036, %v4504
        %v4506 = vlaneseq
        %v4507 = vshrl.u32 %v4506, 7
        %v4508 = vsub.s32 %v2943, %v4507
        %v4509 = vrot.slane %v4039, %v4508
        %v4510 = vsel %vm2948, %v4509, %v4505
        %v4511 = vlaneseq
        %v4512 = vshrl.u32 %v4511, 7
        %v4513 = vsub.s32 %v2938, %v4512
        %v4514 = vrot.slane %v4042, %v4513
        %v4515 = vlaneseq
        %v4516 = vshrl.u32 %v4515, 7
        %v4517 = vsub.s32 %v2943, %v4516
        %v4518 = vrot.slane %v4045, %v4517
        %v4519 = vsel %vm2948, %v4518, %v4514
        %v4520 = vlaneseq
        %v4521 = vshrl.u32 %v4520, 7
        %v4522 = vsub.s32 %v2938, %v4521
        %v4523 = vrot.slane %v4048, %v4522
        %v4524 = vlaneseq
        %v4525 = vshrl.u32 %v4524, 7
        %v4526 = vsub.s32 %v2943, %v4525
        %v4527 = vrot.slane %v4051, %v4526
        %v4528 = vsel %vm2948, %v4527, %v4523
        %v4529 = vlaneseq
        %v4530 = vshrl.u32 %v4529, 7
        %v4531 = vsub.s32 %v2938, %v4530
        %v4532 = vrot.slane %v4054, %v4531
        %v4533 = vlaneseq
        %v4534 = vshrl.u32 %v4533, 7
        %v4535 = vsub.s32 %v2943, %v4534
        %v4536 = vrot.slane %v4057, %v4535
        %v4537 = vsel %vm2948, %v4536, %v4532
        %v4538 = vlaneseq
        %v4539 = vshrl.u32 %v4538, 7
        %v4540 = vsub.s32 %v2938, %v4539
        %v4541 = vrot.slane %v4060, %v4540
        %v4542 = vlaneseq
        %v4543 = vshrl.u32 %v4542, 7
        %v4544 = vsub.s32 %v2943, %v4543
        %v4545 = vrot.slane %v4063, %v4544
        %v4546 = vsel %vm2948, %v4545, %v4541
        %v4547 = vlaneseq
        %v4548 = vshrl.u32 %v4547, 7
        %v4549 = vsub.s32 %v2938, %v4548
        %v4550 = vrot.slane %v4066, %v4549
        %v4551 = vlaneseq
        %v4552 = vshrl.u32 %v4551, 7
        %v4553 = vsub.s32 %v2943, %v4552
        %v4554 = vrot.slane %v4069, %v4553
        %v4555 = vsel %vm2948, %v4554, %v4550
        %v4556 = vlaneseq
        %v4557 = vshrl.u32 %v4556, 7
        %v4558 = vsub.s32 %v2938, %v4557
        %v4559 = vrot.slane %v4072, %v4558
        %v4560 = vlaneseq
        %v4561 = vshrl.u32 %v4560, 7
        %v4562 = vsub.s32 %v2943, %v4561
        %v4563 = vrot.slane %v4075, %v4562
        %v4564 = vsel %vm2948, %v4563, %v4559
        %v4565 = vlaneseq
        %v4566 = vshrl.u32 %v4565, 7
        %v4567 = vsub.s32 %v2938, %v4566
        %v4568 = vrot.slane %v4078, %v4567
        %v4569 = vlaneseq
        %v4570 = vshrl.u32 %v4569, 7
        %v4571 = vsub.s32 %v2943, %v4570
        %v4572 = vrot.slane %v4081, %v4571
        %v4573 = vsel %vm2948, %v4572, %v4568
        %v4574 = vlaneseq
        %v4575 = vshrl.u32 %v4574, 7
        %v4576 = vsub.s32 %v2938, %v4575
        %v4577 = vrot.slane %v4084, %v4576
        %v4578 = vlaneseq
        %v4579 = vshrl.u32 %v4578, 7
        %v4580 = vsub.s32 %v2943, %v4579
        %v4581 = vrot.slane %v4087, %v4580
        %v4582 = vsel %vm2948, %v4581, %v4577
        %v4583 = vlaneseq
        %v4584 = vshrl.u32 %v4583, 7
        %v4585 = vsub.s32 %v2938, %v4584
        %v4586 = vrot.slane %v4090, %v4585
        %v4587 = vlaneseq
        %v4588 = vshrl.u32 %v4587, 7
        %v4589 = vsub.s32 %v2943, %v4588
        %v4590 = vrot.slane %v4093, %v4589
        %v4591 = vsel %vm2948, %v4590, %v4586
        %v4592 = vlaneseq
        %v4593 = vshrl.u32 %v4592, 7
        %v4594 = vsub.s32 %v2938, %v4593
        %v4595 = vrot.slane %v4096, %v4594
        %v4596 = vlaneseq
        %v4597 = vshrl.u32 %v4596, 7
        %v4598 = vsub.s32 %v2943, %v4597
        %v4599 = vrot.slane %v4099, %v4598
        %v4600 = vsel %vm2948, %v4599, %v4595
        %v4601 = vlaneseq
        %v4602 = vshrl.u32 %v4601, 7
        %v4603 = vsub.s32 %v2938, %v4602
        %v4604 = vrot.slane %v4102, %v4603
        %v4605 = vlaneseq
        %v4606 = vshrl.u32 %v4605, 7
        %v4607 = vsub.s32 %v2943, %v4606
        %v4608 = vrot.slane %v4105, %v4607
        %v4609 = vsel %vm2948, %v4608, %v4604
        %v4610 = vlaneseq
        %v4611 = vshrl.u32 %v4610, 7
        %v4612 = vsub.s32 %v2938, %v4611
        %v4613 = vrot.slane %v4108, %v4612
        %v4614 = vlaneseq
        %v4615 = vshrl.u32 %v4614, 7
        %v4616 = vsub.s32 %v2943, %v4615
        %v4617 = vrot.slane %v4111, %v4616
        %v4618 = vsel %vm2948, %v4617, %v4613
        %v4619 = vlaneseq
        %v4620 = vshrl.u32 %v4619, 7
        %v4621 = vsub.s32 %v2938, %v4620
        %v4622 = vrot.slane %v4114, %v4621
        %v4623 = vlaneseq
        %v4624 = vshrl.u32 %v4623, 7
        %v4625 = vsub.s32 %v2943, %v4624
        %v4626 = vrot.slane %v4117, %v4625
        %v4627 = vsel %vm2948, %v4626, %v4622
        %v4628 = vlaneseq
        %v4629 = vshrl.u32 %v4628, 7
        %v4630 = vsub.s32 %v2938, %v4629
        %v4631 = vrot.slane %v4120, %v4630
        %v4632 = vlaneseq
        %v4633 = vshrl.u32 %v4632, 7
        %v4634 = vsub.s32 %v2943, %v4633
        %v4635 = vrot.slane %v4123, %v4634
        %v4636 = vsel %vm2948, %v4635, %v4631
        %v4637 = vlaneseq
        %v4638 = vshrl.u32 %v4637, 7
        %v4639 = vsub.s32 %v2938, %v4638
        %v4640 = vrot.slane %v4126, %v4639
        %v4641 = vlaneseq
        %v4642 = vshrl.u32 %v4641, 7
        %v4643 = vsub.s32 %v2943, %v4642
        %v4644 = vrot.slane %v4129, %v4643
        %v4645 = vsel %vm2948, %v4644, %v4640
        %v4646 = vlaneseq
        %v4647 = vshrl.u32 %v4646, 7
        %v4648 = vsub.s32 %v2938, %v4647
        %v4649 = vrot.slane %v4132, %v4648
        %v4650 = vlaneseq
        %v4651 = vshrl.u32 %v4650, 7
        %v4652 = vsub.s32 %v2943, %v4651
        %v4653 = vrot.slane %v4135, %v4652
        %v4654 = vsel %vm2948, %v4653, %v4649
        %v4655 = vlaneseq
        %v4656 = vshrl.u32 %v4655, 7
        %v4657 = vsub.s32 %v2938, %v4656
        %v4658 = vrot.slane %v4138, %v4657
        %v4659 = vlaneseq
        %v4660 = vshrl.u32 %v4659, 7
        %v4661 = vsub.s32 %v2943, %v4660
        %v4662 = vrot.slane %v4141, %v4661
        %v4663 = vsel %vm2948, %v4662, %v4658
        %v4664 = vlaneseq
        %v4665 = vshrl.u32 %v4664, 7
        %v4666 = vsub.s32 %v2938, %v4665
        %v4667 = vrot.slane %v4144, %v4666
        %v4668 = vlaneseq
        %v4669 = vshrl.u32 %v4668, 7
        %v4670 = vsub.s32 %v2943, %v4669
        %v4671 = vrot.slane %v4147, %v4670
        %v4672 = vsel %vm2948, %v4671, %v4667
        %v4673 = vlaneseq
        %v4674 = vshrl.u32 %v4673, 7
        %v4675 = vsub.s32 %v2938, %v4674
        %v4676 = vrot.slane %v4150, %v4675
        %v4677 = vlaneseq
        %v4678 = vshrl.u32 %v4677, 7
        %v4679 = vsub.s32 %v2943, %v4678
        %v4680 = vrot.slane %v4153, %v4679
        %v4681 = vsel %vm2948, %v4680, %v4676
        %v4682 = vlaneseq
        %v4683 = vshrl.u32 %v4682, 7
        %v4684 = vsub.s32 %v2938, %v4683
        %v4685 = vrot.slane %v4156, %v4684
        %v4686 = vlaneseq
        %v4687 = vshrl.u32 %v4686, 7
        %v4688 = vsub.s32 %v2943, %v4687
        %v4689 = vrot.slane %v4159, %v4688
        %v4690 = vsel %vm2948, %v4689, %v4685
        %v4691 = vlaneseq
        %v4692 = vshrl.u32 %v4691, 7
        %v4693 = vsub.s32 %v2938, %v4692
        %v4694 = vrot.slane %v4162, %v4693
        %v4695 = vlaneseq
        %v4696 = vshrl.u32 %v4695, 7
        %v4697 = vsub.s32 %v2943, %v4696
        %v4698 = vrot.slane %v4165, %v4697
        %v4699 = vsel %vm2948, %v4698, %v4694
        %v4700 = vlaneseq
        %v4701 = vshrl.u32 %v4700, 7
        %v4702 = vsub.s32 %v2938, %v4701
        %v4703 = vrot.slane %v4168, %v4702
        %v4704 = vlaneseq
        %v4705 = vshrl.u32 %v4704, 7
        %v4706 = vsub.s32 %v2943, %v4705
        %v4707 = vrot.slane %v4171, %v4706
        %v4708 = vsel %vm2948, %v4707, %v4703
        %v4709 = vlaneseq
        %v4710 = vshrl.u32 %v4709, 7
        %v4711 = vsub.s32 %v2938, %v4710
        %v4712 = vrot.slane %v4174, %v4711
        %v4713 = vlaneseq
        %v4714 = vshrl.u32 %v4713, 7
        %v4715 = vsub.s32 %v2943, %v4714
        %v4716 = vrot.slane %v4177, %v4715
        %v4717 = vsel %vm2948, %v4716, %v4712
        %v4718 = vlaneseq
        %v4719 = vshrl.u32 %v4718, 7
        %v4720 = vsub.s32 %v2938, %v4719
        %v4721 = vrot.slane %v4180, %v4720
        %v4722 = vlaneseq
        %v4723 = vshrl.u32 %v4722, 7
        %v4724 = vsub.s32 %v2943, %v4723
        %v4725 = vrot.slane %v4183, %v4724
        %v4726 = vsel %vm2948, %v4725, %v4721
        %v4727 = vlaneseq
        %v4728 = vshrl.u32 %v4727, 7
        %v4729 = vsub.s32 %v2938, %v4728
        %v4730 = vrot.slane %v4186, %v4729
        %v4731 = vlaneseq
        %v4732 = vshrl.u32 %v4731, 7
        %v4733 = vsub.s32 %v2943, %v4732
        %v4734 = vrot.slane %v4189, %v4733
        %v4735 = vsel %vm2948, %v4734, %v4730
        %v4736 = vlaneseq
        %v4737 = vshrl.u32 %v4736, 7
        %v4738 = vsub.s32 %v2938, %v4737
        %v4739 = vrot.slane %v4192, %v4738
        %v4740 = vlaneseq
        %v4741 = vshrl.u32 %v4740, 7
        %v4742 = vsub.s32 %v2943, %v4741
        %v4743 = vrot.slane %v4195, %v4742
        %v4744 = vsel %vm2948, %v4743, %v4739
        %v4745 = vlaneseq
        %v4746 = vshrl.u32 %v4745, 7
        %v4747 = vsub.s32 %v2938, %v4746
        %v4748 = vrot.slane %v4198, %v4747
        %v4749 = vlaneseq
        %v4750 = vshrl.u32 %v4749, 7
        %v4751 = vsub.s32 %v2943, %v4750
        %v4752 = vrot.slane %v4201, %v4751
        %v4753 = vsel %vm2948, %v4752, %v4748
        %v4754 = vlaneseq
        %v4755 = vshrl.u32 %v4754, 7
        %v4756 = vsub.s32 %v2938, %v4755
        %v4757 = vrot.slane %v4204, %v4756
        %v4758 = vlaneseq
        %v4759 = vshrl.u32 %v4758, 7
        %v4760 = vsub.s32 %v2943, %v4759
        %v4761 = vrot.slane %v4207, %v4760
        %v4762 = vsel %vm2948, %v4761, %v4757
        %v4763 = vlaneseq
        %v4764 = vshrl.u32 %v4763, 7
        %v4765 = vsub.s32 %v2938, %v4764
        %v4766 = vrot.slane %v4210, %v4765
        %v4767 = vlaneseq
        %v4768 = vshrl.u32 %v4767, 7
        %v4769 = vsub.s32 %v2943, %v4768
        %v4770 = vrot.slane %v4213, %v4769
        %v4771 = vsel %vm2948, %v4770, %v4766
        %v4772 = vlaneseq
        %v4773 = vshrl.u32 %v4772, 7
        %v4774 = vsub.s32 %v2938, %v4773
        %v4775 = vrot.slane %v4216, %v4774
        %v4776 = vlaneseq
        %v4777 = vshrl.u32 %v4776, 7
        %v4778 = vsub.s32 %v2943, %v4777
        %v4779 = vrot.slane %v4219, %v4778
        %v4780 = vsel %vm2948, %v4779, %v4775
        %v4781 = vlaneseq
        %v4782 = vshrl.u32 %v4781, 7
        %v4783 = vsub.s32 %v2938, %v4782
        %v4784 = vrot.slane %v4222, %v4783
        %v4785 = vlaneseq
        %v4786 = vshrl.u32 %v4785, 7
        %v4787 = vsub.s32 %v2943, %v4786
        %v4788 = vrot.slane %v4225, %v4787
        %v4789 = vsel %vm2948, %v4788, %v4784
        %v4790 = vlaneseq
        %v4791 = vshrl.u32 %v4790, 7
        %v4792 = vsub.s32 %v2938, %v4791
        %v4793 = vrot.slane %v4228, %v4792
        %v4794 = vlaneseq
        %v4795 = vshrl.u32 %v4794, 7
        %v4796 = vsub.s32 %v2943, %v4795
        %v4797 = vrot.slane %v4231, %v4796
        %v4798 = vsel %vm2948, %v4797, %v4793
        %v4799 = vlaneseq
        %v4800 = vshrl.u32 %v4799, 7
        %v4801 = vsub.s32 %v2938, %v4800
        %v4802 = vrot.slane %v4234, %v4801
        %v4803 = vlaneseq
        %v4804 = vshrl.u32 %v4803, 7
        %v4805 = vsub.s32 %v2943, %v4804
        %v4806 = vrot.slane %v4237, %v4805
        %v4807 = vsel %vm2948, %v4806, %v4802
        %v4808 = vlaneseq
        %v4809 = vshrl.u32 %v4808, 7
        %v4810 = vsub.s32 %v2938, %v4809
        %v4811 = vrot.slane %v4240, %v4810
        %v4812 = vlaneseq
        %v4813 = vshrl.u32 %v4812, 7
        %v4814 = vsub.s32 %v2943, %v4813
        %v4815 = vrot.slane %v4243, %v4814
        %v4816 = vsel %vm2948, %v4815, %v4811
        %v4817 = vlaneseq
        %v4818 = vshrl.u32 %v4817, 7
        %v4819 = vsub.s32 %v2938, %v4818
        %v4820 = vrot.slane %v4246, %v4819
        %v4821 = vlaneseq
        %v4822 = vshrl.u32 %v4821, 7
        %v4823 = vsub.s32 %v2943, %v4822
        %v4824 = vrot.slane %v4249, %v4823
        %v4825 = vsel %vm2948, %v4824, %v4820
        %v4826 = vsel %vm907, %v4267, %v4258
        %v4827 = vsel %vm909, %v4276, %v4826
        %v4828 = vsel %vm911, %v4285, %v4827
        %v4829 = vsel %vm3520, %v4294, %v4828
        %v4830 = vsel %vm3522, %v4303, %v4829
        %v4831 = vsel %vm3524, %v4312, %v4830
        %v4832 = vsel %vm3526, %v4321, %v4831
        %v4833 = vsel %vm907, %v4339, %v4330
        %v4834 = vsel %vm909, %v4348, %v4833
        %v4835 = vsel %vm911, %v4357, %v4834
        %v4836 = vsel %vm3520, %v4366, %v4835
        %v4837 = vsel %vm3522, %v4375, %v4836
        %v4838 = vsel %vm3524, %v4384, %v4837
        %v4839 = vsel %vm3526, %v4393, %v4838
        %v4840 = vsel %vm907, %v4411, %v4402
        %v4841 = vsel %vm909, %v4420, %v4840
        %v4842 = vsel %vm911, %v4429, %v4841
        %v4843 = vsel %vm3520, %v4438, %v4842
        %v4844 = vsel %vm3522, %v4447, %v4843
        %v4845 = vsel %vm3524, %v4456, %v4844
        %v4846 = vsel %vm3526, %v4465, %v4845
        %v4847 = vsel %vm907, %v4483, %v4474
        %v4848 = vsel %vm909, %v4492, %v4847
        %v4849 = vsel %vm911, %v4501, %v4848
        %v4850 = vsel %vm3520, %v4510, %v4849
        %v4851 = vsel %vm3522, %v4519, %v4850
        %v4852 = vsel %vm3524, %v4528, %v4851
        %v4853 = vsel %vm3526, %v4537, %v4852
        %v4854 = vsel %vm907, %v4555, %v4546
        %v4855 = vsel %vm909, %v4564, %v4854
        %v4856 = vsel %vm911, %v4573, %v4855
        %v4857 = vsel %vm3520, %v4582, %v4856
        %v4858 = vsel %vm3522, %v4591, %v4857
        %v4859 = vsel %vm3524, %v4600, %v4858
        %v4860 = vsel %vm3526, %v4609, %v4859
        %v4861 = vsel %vm907, %v4627, %v4618
        %v4862 = vsel %vm909, %v4636, %v4861
        %v4863 = vsel %vm911, %v4645, %v4862
        %v4864 = vsel %vm3520, %v4654, %v4863
        %v4865 = vsel %vm3522, %v4663, %v4864
        %v4866 = vsel %vm3524, %v4672, %v4865
        %v4867 = vsel %vm3526, %v4681, %v4866
        %v4868 = vsel %vm907, %v4699, %v4690
        %v4869 = vsel %vm909, %v4708, %v4868
        %v4870 = vsel %vm911, %v4717, %v4869
        %v4871 = vsel %vm3520, %v4726, %v4870
        %v4872 = vsel %vm3522, %v4735, %v4871
        %v4873 = vsel %vm3524, %v4744, %v4872
        %v4874 = vsel %vm3526, %v4753, %v4873
        %v4875 = vsel %vm907, %v4771, %v4762
        %v4876 = vsel %vm909, %v4780, %v4875
        %v4877 = vsel %vm911, %v4789, %v4876
        %v4878 = vsel %vm3520, %v4798, %v4877
        %v4879 = vsel %vm3522, %v4807, %v4878
        %v4880 = vsel %vm3524, %v4816, %v4879
        %v4881 = vsel %vm3526, %v4825, %v4880
        %v4890 = vsel %vm3585, %v4832, 0.0
        %4891 = vadd.xlane.f32.xlu0 %v4890
        %v4892 = vpop.xlane.xlu0 %4891
        %v4893 = vsel %vm3585, %v4839, 0.0
        %4894 = vadd.xlane.f32.xlu0 %v4893
        %v4895 = vpop.xlane.xlu0 %4894
        %v4896 = vsel %vm3585, %v4846, 0.0
        %4897 = vadd.xlane.f32.xlu0 %v4896
        %v4898 = vpop.xlane.xlu0 %4897
        %v4899 = vsel %vm3585, %v4853, 0.0
        %4900 = vadd.xlane.f32.xlu0 %v4899
        %v4901 = vpop.xlane.xlu0 %4900
        %v4902 = vsel %vm3585, %v4860, 0.0
        %4903 = vadd.xlane.f32.xlu0 %v4902
        %v4904 = vpop.xlane.xlu0 %4903
        %v4905 = vsel %vm3585, %v4867, 0.0
        %4906 = vadd.xlane.f32.xlu0 %v4905
        %v4907 = vpop.xlane.xlu0 %4906
        %v4908 = vsel %vm3585, %v4874, 0.0
        %4909 = vadd.xlane.f32.xlu0 %v4908
        %v4910 = vpop.xlane.xlu0 %4909
        %v4911 = vsel %vm3585, %v4881, 0.0
        %4912 = vadd.xlane.f32.xlu0 %v4911
        %v4913 = vpop.xlane.xlu0 %4912
        %v4914 = vmul.f32 %v3588, %v1681
        %v4915 = vmul.f32 %v3591, %v1682
        %v4916 = vmul.f32 %v3594, %v1683
        %v4917 = vmul.f32 %v3597, %v1684
        %v4918 = vmul.f32 %v3600, %v1685
        %v4919 = vmul.f32 %v3603, %v1686
        %v4920 = vmul.f32 %v3606, %v1687
        %v4921 = vmul.f32 %v3609, %v1688
        %v4922 = vadd.f32 %v4914, 1.0
        %v4923 = vadd.f32 %v4915, 1.0
        %v4924 = vadd.f32 %v4916, 1.0
        %v4925 = vadd.f32 %v4917, 1.0
        %v4926 = vadd.f32 %v4918, 1.0
        %v4927 = vadd.f32 %v4919, 1.0
        %v4928 = vadd.f32 %v4920, 1.0
        %v4929 = vadd.f32 %v4921, 1.0
        %vm4930 = vcmp.gt.f32.partialorder %v4922, %v4892
        %vm4931 = vcmp.gt.f32.partialorder %v4923, %v4895
        %vm4932 = vcmp.gt.f32.partialorder %v4924, %v4898
        %vm4933 = vcmp.gt.f32.partialorder %v4925, %v4901
        %vm4934 = vcmp.gt.f32.partialorder %v4926, %v4904
        %vm4935 = vcmp.gt.f32.partialorder %v4927, %v4907
        %vm4936 = vcmp.gt.f32.partialorder %v4928, %v4910
        %vm4937 = vcmp.gt.f32.partialorder %v4929, %v4913
        %v4938 = vsel %vm4930, 1, 0
        %v4939 = vsel %vm4931, 1, 0
        %v4940 = vsel %vm4932, 1, 0
        %v4941 = vsel %vm4933, 1, 0
        %v4942 = vsel %vm4934, 1, 0
        %v4943 = vsel %vm4935, 1, 0
        %v4944 = vsel %vm4936, 1, 0
        %v4945 = vsel %vm4937, 1, 0
        %v4946 = vcvt.s32.f32 %v4938
        %v4947 = vcvt.s32.f32 %v4939
        %v4948 = vcvt.s32.f32 %v4940
        %v4949 = vcvt.s32.f32 %v4941
        %v4950 = vcvt.s32.f32 %v4942
        %v4951 = vcvt.s32.f32 %v4943
        %v4952 = vcvt.s32.f32 %v4944
        %v4953 = vcvt.s32.f32 %v4945
        %v4954 = vsel %vm1197, %v4946, 0.0
        %v4955 = vsel %vm1197, %v4947, 0.0
        %v4956 = vadd.f32 %v4954, %v4955
        %v4957 = vrot.slane %v4956, 4
        %v4958 = vadd.f32 %v4956, %v4957
        %v4959 = vrot.slane %v4958, 2
        %v4960 = vadd.f32 %v4958, %v4959
        %v4961 = vrot.slane %v4960, 1
        %v4962 = vadd.f32 %v4960, %v4961
        %v4963 = vsel %vm1197, %v4948, 0.0
        %v4964 = vsel %vm1197, %v4949, 0.0
        %v4965 = vadd.f32 %v4963, %v4964
        %v4966 = vrot.slane %v4965, 4
        %v4967 = vadd.f32 %v4965, %v4966
        %v4968 = vrot.slane %v4967, 2
        %v4969 = vadd.f32 %v4967, %v4968
        %v4970 = vrot.slane %v4969, 1
        %v4971 = vadd.f32 %v4969, %v4970
        %v4972 = vsel %vm1197, %v4950, 0.0
        %v4973 = vsel %vm1197, %v4951, 0.0
        %v4974 = vadd.f32 %v4972, %v4973
        %v4975 = vrot.slane %v4974, 4
        %v4976 = vadd.f32 %v4974, %v4975
        %v4977 = vrot.slane %v4976, 2
        %v4978 = vadd.f32 %v4976, %v4977
        %v4979 = vrot.slane %v4978, 1
        %v4980 = vadd.f32 %v4978, %v4979
        %v4981 = vsel %vm1197, %v4952, 0.0
        %v4982 = vsel %vm1197, %v4953, 0.0
        %v4983 = vadd.f32 %v4981, %v4982
        %v4984 = vrot.slane %v4983, 4
        %v4985 = vadd.f32 %v4983, %v4984
        %v4986 = vrot.slane %v4985, 2
        %v4987 = vadd.f32 %v4985, %v4986
        %v4988 = vrot.slane %v4987, 1
        %v4989 = vadd.f32 %v4987, %v4988
        %v4990 = vmul.f32 %v4946, %v1681
        %v4991 = vmul.f32 %v4947, %v1682
        %v4992 = vmul.f32 %v4948, %v1683
        %v4993 = vmul.f32 %v4949, %v1684
        %v4994 = vmul.f32 %v4950, %v1685
        %v4995 = vmul.f32 %v4951, %v1686
        %v4996 = vmul.f32 %v4952, %v1687
        %v4997 = vmul.f32 %v4953, %v1688
        %v4998 = vsel %vm1197, %v4990, 0.0
        %v4999 = vsel %vm1197, %v4991, 0.0
        %v5000 = vadd.f32 %v4998, %v4999
        %v5001 = vrot.slane %v5000, 4
        %v5002 = vadd.f32 %v5000, %v5001
        %v5003 = vrot.slane %v5002, 2
        %v5004 = vadd.f32 %v5002, %v5003
        %v5005 = vrot.slane %v5004, 1
        %v5006 = vadd.f32 %v5004, %v5005
        %v5007 = vsel %vm1197, %v4992, 0.0
        %v5008 = vsel %vm1197, %v4993, 0.0
        %v5009 = vadd.f32 %v5007, %v5008
        %v5010 = vrot.slane %v5009, 4
        %v5011 = vadd.f32 %v5009, %v5010
        %v5012 = vrot.slane %v5011, 2
        %v5013 = vadd.f32 %v5011, %v5012
        %v5014 = vrot.slane %v5013, 1
        %v5015 = vadd.f32 %v5013, %v5014
        %v5016 = vsel %vm1197, %v4994, 0.0
        %v5017 = vsel %vm1197, %v4995, 0.0
        %v5018 = vadd.f32 %v5016, %v5017
        %v5019 = vrot.slane %v5018, 4
        %v5020 = vadd.f32 %v5018, %v5019
        %v5021 = vrot.slane %v5020, 2
        %v5022 = vadd.f32 %v5020, %v5021
        %v5023 = vrot.slane %v5022, 1
        %v5024 = vadd.f32 %v5022, %v5023
        %v5025 = vsel %vm1197, %v4996, 0.0
        %v5026 = vsel %vm1197, %v4997, 0.0
        %v5027 = vadd.f32 %v5025, %v5026
        %v5028 = vrot.slane %v5027, 4
        %v5029 = vadd.f32 %v5027, %v5028
        %v5030 = vrot.slane %v5029, 2
        %v5031 = vadd.f32 %v5029, %v5030
        %v5032 = vrot.slane %v5031, 1
        %v5033 = vadd.f32 %v5031, %v5032
        %v5034 = vsub.f32 %v5006, 1.0
        %v5035 = vsub.f32 %v5015, 1.0
        %v5036 = vsub.f32 %v5024, 1.0
        %v5037 = vsub.f32 %v5033, 1.0
        %v5038 = vrcp.pop %v4962
        %v5039 = vmul.f32 %v5034, %v5038
        %v5040 = vrcp.pop %v4971
        %v5041 = vmul.f32 %v5035, %v5040
        %v5042 = vrcp.pop %v4980
        %v5043 = vmul.f32 %v5036, %v5042
        %v5044 = vrcp.pop %v4989
        %v5045 = vmul.f32 %v5037, %v5044
        %5047 = vset.pattern.permute.xlu0 0
        %5048 = vperm.xlu0 %5047, %v5039
        %v5049 = vpop.permute.xlu0 %5048
        %5052 = vset.pattern.permute.xlu0 0
        %5053 = vperm.xlu0 %5052, %v5041
        %v5054 = vpop.permute.xlu0 %5053
        %5057 = vset.pattern.permute.xlu0 0
        %5058 = vperm.xlu0 %5057, %v5043
        %v5059 = vpop.permute.xlu0 %5058
        %5062 = vset.pattern.permute.xlu0 0
        %5063 = vperm.xlu0 %5062, %v5045
        %v5064 = vpop.permute.xlu0 %5063
        %v5066 = vsub.f32 %v1681, %v5049
        %v5067 = vsub.f32 %v1682, %v5049
        %v5068 = vsub.f32 %v1683, %v5054
        %v5069 = vsub.f32 %v1684, %v5054
        %v5070 = vsub.f32 %v1685, %v5059
        %v5071 = vsub.f32 %v1686, %v5059
        %v5072 = vsub.f32 %v1687, %v5064
        %v5073 = vsub.f32 %v1688, %v5064
        %v5074 = vmax.f32 %v5066, 0.0
        %v5075 = vmax.f32 %v5067, 0.0
        %v5076 = vmax.f32 %v5068, 0.0
        %v5077 = vmax.f32 %v5069, 0.0
        %v5078 = vmax.f32 %v5070, 0.0
        %v5079 = vmax.f32 %v5071, 0.0
        %v5080 = vmax.f32 %v5072, 0.0
        %v5081 = vmax.f32 %v5073, 0.0
        %5090 = vset.pattern.permute.xlu0 0
        %5091 = vperm.xlu0 %5090, %v5074
        %v5092 = vpop.permute.xlu0 %5091
        %5093 = vset.pattern.permute.xlu0 0
        %5094 = vperm.xlu0 %5093, %v5075
        %v5095 = vpop.permute.xlu0 %5094
        %5096 = vset.pattern.permute.xlu0 0
        %5097 = vperm.xlu0 %5096, %v5076
        %v5098 = vpop.permute.xlu0 %5097
        %5099 = vset.pattern.permute.xlu0 0
        %5100 = vperm.xlu0 %5099, %v5077
        %v5101 = vpop.permute.xlu0 %5100
        %5102 = vset.pattern.permute.xlu0 0
        %5103 = vperm.xlu0 %5102, %v5078
        %v5104 = vpop.permute.xlu0 %5103
        %5105 = vset.pattern.permute.xlu0 0
        %5106 = vperm.xlu0 %5105, %v5079
        %v5107 = vpop.permute.xlu0 %5106
        %5108 = vset.pattern.permute.xlu0 0
        %5109 = vperm.xlu0 %5108, %v5080
        %v5110 = vpop.permute.xlu0 %5109
        %5111 = vset.pattern.permute.xlu0 0
        %5112 = vperm.xlu0 %5111, %v5081
        %v5113 = vpop.permute.xlu0 %5112
        %v5114 = vlaneseq
        %v5115 = vshrl.u32 %v5114, 7
        %v5116 = vsub.s32 %v2938, %v5115
        %v5117 = vrot.slane %v5092, %v5116
        %v5118 = vlaneseq
        %v5119 = vshrl.u32 %v5118, 7
        %v5120 = vsub.s32 %v2943, %v5119
        %v5121 = vrot.slane %v5095, %v5120
        %v5122 = vsel %vm2948, %v5121, %v5117
        %v5123 = vlaneseq
        %v5124 = vshrl.u32 %v5123, 7
        %v5125 = vsub.s32 %v2938, %v5124
        %v5126 = vrot.slane %v5098, %v5125
        %v5127 = vlaneseq
        %v5128 = vshrl.u32 %v5127, 7
        %v5129 = vsub.s32 %v2943, %v5128
        %v5130 = vrot.slane %v5101, %v5129
        %v5131 = vsel %vm2948, %v5130, %v5126
        %v5132 = vlaneseq
        %v5133 = vshrl.u32 %v5132, 7
        %v5134 = vsub.s32 %v2938, %v5133
        %v5135 = vrot.slane %v5104, %v5134
        %v5136 = vlaneseq
        %v5137 = vshrl.u32 %v5136, 7
        %v5138 = vsub.s32 %v2943, %v5137
        %v5139 = vrot.slane %v5107, %v5138
        %v5140 = vsel %vm2948, %v5139, %v5135
        %v5141 = vlaneseq
        %v5142 = vshrl.u32 %v5141, 7
        %v5143 = vsub.s32 %v2938, %v5142
        %v5144 = vrot.slane %v5110, %v5143
        %v5145 = vlaneseq
        %v5146 = vshrl.u32 %v5145, 7
        %v5147 = vsub.s32 %v2943, %v5146
        %v5148 = vrot.slane %v5113, %v5147
        %v5149 = vsel %vm2948, %v5148, %v5144
        %vm5154 = vcmask 122880
        %5155 = vst.msk [vmem:[%s410] sm:$0x1] %vm5154, %v5122
        %5156 = vst.msk [vmem:[%s410 + $0x1] sm:$0x1] %vm5154, %v5131
        %5157 = vst.msk [vmem:[%s410 + $0x2] sm:$0x1] %vm5154, %v5140
        %5158 = vst.msk [vmem:[%s410 + $0x3] sm:$0x1] %vm5154, %v5149
        %5167 = vst.msk [vmem:[%s437] sm:$0xff] %vm480, %v711
        %5168 = vst.msk [vmem:[%s437 + $0x8] sm:$0xff] %vm480, %v713
        %5169 = vst.msk [vmem:[%s437 + $0x10] sm:$0xff] %vm480, %v715
        %5170 = vst.msk [vmem:[%s437 + $0x18] sm:$0xff] %vm480, %v717
        %5171 = vst.msk [vmem:[%s437 + $0x20] sm:$0xff] %vm480, %v719
        %5172 = vst.msk [vmem:[%s437 + $0x28] sm:$0xff] %vm480, %v721
        %5173 = vst.msk [vmem:[%s437 + $0x30] sm:$0xff] %vm480, %v723
        %5174 = vst.msk [vmem:[%s437 + $0x38] sm:$0xff] %vm480, %v725
        %s5175 = sand.u32 %s237, 1
        %s5176 = scalar_lea.sflag [#allocation4], %s5175
        %s5177 = sand.u32 %s237, 1
        %s5178 = smul.addr %s5177, 4
        %s5179 = scalar_lea.vmem [#allocation3], %s5178
        %s5180 = sand.u32 %s263, 1
        %s5181 = scalar_lea.sflag [#allocation6], %s5180
        %s5182 = sand.u32 %s263, 1
        %s5183 = smul.addr %s5182, 4
        %s5184 = scalar_lea.vmem [#allocation5], %s5183
        %s5185 = smul.u32 8, %s30
        %p5186 = scmp.lt.s32.totalorder %s5185, 15
        %s5187 = scalar_select %p5186, %s5185, 15
        %s5188 = smul.addr %s5187, 8
        %s5189 = scalar_lea.vmem %s11, %s5188
        // Predicated region
        $region57: #{tpu_custom_call.1} parent=55 // pred_check
          %p5190 = pneg %p247
        $region58: #{tpu_custom_call.1} parent=55 // pred_check_branch
          %5192 = sbr.rel (%p5190) target = $region60
        $region59: #{tpu_custom_call.1} parent=55 // pred_region
          %s5193 = smul.u32 4, %s30
          %s5195 = ssub.s32 64, 64
          %5196 = vsyncadd %s5176, %s5195
          %s5197 = smul.addr %s5193, 16
          %s5198 = scalar_lea.hbm %s9, %s5197
          %s5199 = sshll.u32 %s5179, 4
          %s5200 = int_to_ptr.vmem [resolvable:$true] %s5199
          %5205 = dma.vmem_to_hbm [thread:$0]  %s5200, 64, %s5198, %s5176, 16, 16, 1
        $region60: #{tpu_custom_call.1} parent=55 // pred_fallthru
          _
        // Predicated region
        $region61: #{tpu_custom_call.1} parent=55 // pred_check
          %p5206 = pneg %p273
        $region62: #{tpu_custom_call.1} parent=55 // pred_check_branch
          %5208 = sbr.rel (%p5206) target = $region64
        $region63: #{tpu_custom_call.1} parent=55 // pred_region
          %s5209 = smul.u32 4, %s30
          %s5211 = ssub.s32 64, 64
          %5212 = vsyncadd %s5181, %s5211
          %s5213 = smul.addr %s5209, 16
          %s5214 = scalar_lea.hbm %s10, %s5213
          %s5215 = sshll.u32 %s5184, 4
          %s5216 = int_to_ptr.vmem [resolvable:$true] %s5215
          %5221 = dma.vmem_to_hbm [thread:$0]  %s5216, 64, %s5214, %s5181, 16, 16, 1
        $region64: #{tpu_custom_call.1} parent=55 // pred_fallthru
          _
        // Predicated region
        $region65: #{tpu_custom_call.1} parent=55 // pred_check
          %p5222 = pneg %p299
        $region66: #{tpu_custom_call.1} parent=55 // pred_check_branch
          %5224 = sbr.rel (%p5222) target = $region68
        $region67: #{tpu_custom_call.1} parent=55 // pred_region
          %s5225 = smul.u32 8, %s30
        $region68: #{tpu_custom_call.1} parent=55 // pred_fallthru
          _
      $region56: #{tpu_custom_call.1} parent=5 // pred_fallthru
        _
      %p5226 = scmp.le.s32.totalorder 2, %s25
      // Predicated region
      $region69: #{tpu_custom_call.1} parent=5 // pred_check
        %p5227 = pneg %p5226
      $region70: #{tpu_custom_call.1} parent=5 // pred_check_branch
        %5229 = sbr.rel (%p5227) target = $region72
      $region71: #{tpu_custom_call.1} parent=5 // pred_region
        %s5230 = ssub.s32 %s25, 2
        // Predicated region
        $region73: #{tpu_custom_call.1} parent=71 // pred_check
          %p5231 = pneg %p253
        $region74: #{tpu_custom_call.1} parent=71 // pred_check_branch
          %5233 = sbr.rel (%p5231) target = $region76
        $region75: #{tpu_custom_call.1} parent=71 // pred_region
          %s5234 = sand.u32 %s238, 1
          %s5235 = scalar_lea.sflag [#allocation4], %s5234
          %s5236 = sand.u32 %s238, 1
          %s5237 = smul.addr %s5236, 4
          %s5238 = scalar_lea.vmem [#allocation3], %s5237
          %5239 = dma.done %s5235, 64
        $region76: #{tpu_custom_call.1} parent=71 // pred_fallthru
          _
        // Predicated region
        $region77: #{tpu_custom_call.1} parent=71 // pred_check
          %p5240 = pneg %p279
        $region78: #{tpu_custom_call.1} parent=71 // pred_check_branch
          %5242 = sbr.rel (%p5240) target = $region80
        $region79: #{tpu_custom_call.1} parent=71 // pred_region
          %s5243 = sand.u32 %s264, 1
          %s5244 = scalar_lea.sflag [#allocation6], %s5243
          %s5245 = sand.u32 %s264, 1
          %s5246 = smul.addr %s5245, 4
          %s5247 = scalar_lea.vmem [#allocation5], %s5246
          %5248 = dma.done %s5244, 64
        $region80: #{tpu_custom_call.1} parent=71 // pred_fallthru
          _
        // Predicated region
        $region81: #{tpu_custom_call.1} parent=71 // pred_check
          %p5249 = pneg %p305
        $region82: #{tpu_custom_call.1} parent=71 // pred_check_branch
          %5251 = sbr.rel (%p5249) target = $region84
        $region83: #{tpu_custom_call.1} parent=71 // pred_region
          %s5252 = smul.u32 8, %s31
          %p5253 = scmp.lt.s32.totalorder %s5252, 15
          %s5254 = scalar_select %p5253, %s5252, 15
          %s5255 = smul.addr %s5254, 8
          %s5256 = scalar_lea.vmem %s11, %s5255
        $region84: #{tpu_custom_call.1} parent=71 // pred_fallthru
          _
      $region72: #{tpu_custom_call.1} parent=5 // pred_fallthru
        _
    $region6: #{tpu_custom_call.1} parent=1 // loop_footer
      %s29 = sadd.s32 1, %s25
    $region7: #{tpu_custom_call.1} parent=1 // loop_footer_branch
      %24 = sbr.rel target = $region3
    $region8: #{tpu_custom_call.1} parent=1 // loop_exit
      _
    %5257 = vsyncpa [#allocation4], 1
    %s5258 = scalar_lea.sflag [#allocation4], 1
    %5259 = vsyncpa %s5258, 1
    %5260 = vsyncpa [#allocation6], 1
    %s5261 = scalar_lea.sflag [#allocation6], 1
    %5262 = vsyncpa %s5261, 1

</llo_original>
